<compile_context>
chip_gen: v5e
topology: v5e:2x2
jax: 0.10.0
libtpu: 0.0.40
codegen_flags: <defaults>
</compile_context>

<pallas_src>
import functools
import math

import jax
import jax.numpy as jnp
from jax import lax
from jax.experimental import pallas as pl
from jax.experimental.pallas import tpu as pltpu


# ----------------------------------------------------------------------------
# Fused kernel: per grid step, process `bt_tile` (batch, step) groups end-to-end
# ----------------------------------------------------------------------------
def _fused_spatial_attention_kernel(
    x_ref, ste_ref,             # (bt_tile, N, D) f32
    wx_ref, ws_ref,             # (D, 3D) bf16  (x-half / ste-half of [Wq|Wk|Wv])
    wo_ref,                     # (D, 2D) bf16  ([Wo1|Wo2])
    b_ref,                      # (1, 5D) f32   ([bq|bk|bv|bo1|bo2])
    o_ref,                      # (bt_tile, N, D)
    *, K, D, N, bt_tile):
    d = D // K
    rows = bt_tile * N
    f32 = jnp.float32
    bf16 = jnp.bfloat16

    # --- fused QKV projection + ReLU (one wide MXU matmul pair, f32 accum) ---
    # concat(x, ste) @ [Wq|Wk|Wv] == x @ Wx + ste @ Ws ; scale folded into Wq/bq.
    xf = x_ref[...].reshape(rows, D).astype(bf16)
    sf = ste_ref[...].reshape(rows, D).astype(bf16)
    qkv = jnp.dot(xf, wx_ref[...], preferred_element_type=f32)
    qkv = qkv + jnp.dot(sf, ws_ref[...], preferred_element_type=f32)
    qkv = jnp.maximum(qkv + b_ref[:, :3 * D], 0.0)          # (rows, 3D) f32
    qkv_b = qkv.astype(bf16)                                 # MXU operand copy

    w_o = wo_ref[...]                                        # (D, 2D) bf16
    wo1 = w_o[:, :D]                                         # (D, D)
    wo2 = w_o[:, D:]                                         # (D, D)

    # --- per-head attention, head-merge folded into the first output FC ------
    # fc1 = concat_h(o_h) @ Wo1 == sum_h o_h @ Wo1[h*d:(h+1)*d, :]
    fc1 = jnp.zeros((rows, D), dtype=f32)
    for h in range(K):                                       # static, K small
        qh = qkv_b[:, 0 * D + h * d:0 * D + (h + 1) * d].reshape(bt_tile, N, d)
        kh = qkv_b[:, 1 * D + h * d:1 * D + (h + 1) * d].reshape(bt_tile, N, d)
        vh = qkv_b[:, 2 * D + h * d:2 * D + (h + 1) * d].reshape(bt_tile, N, d)

        # scores, batched over the bt groups (single leading batch dim).
        s = jnp.einsum("bnd,bmd->bnm", qh, kh,
                       preferred_element_type=f32)           # (bt, N, N) f32
        s = s - jnp.max(s, axis=-1, keepdims=True)
        p = jnp.exp(s)
        p = p * pl.reciprocal(jnp.sum(p, axis=-1, keepdims=True), approx=True)

        oh = jnp.einsum("bnm,bmd->bnd", p.astype(bf16), vh,
                        preferred_element_type=f32)          # (bt, N, d) f32

        fc1 = fc1 + jnp.dot(oh.reshape(rows, d).astype(bf16),
                            wo1[h * d:(h + 1) * d, :],
                            preferred_element_type=f32)      # (rows, D) f32

    # --- output FC: D -> D (ReLU) -> D (linear) -------------------------------
    h1 = jnp.maximum(fc1 + b_ref[:, 3 * D:4 * D], 0.0)
    out = jnp.dot(h1.astype(bf16), wo2, preferred_element_type=f32)
    out = out + b_ref[:, 4 * D:]
    o_ref[...] = out.reshape(bt_tile, N, D).astype(o_ref.dtype)


# ----------------------------------------------------------------------------
# Generation-aware tiling helpers
# ----------------------------------------------------------------------------
def _device_kind():
    try:
        return jax.devices()[0].device_kind.lower()
    except Exception:
        return ""


def _pick_bt_tile(BT, N, D, K, num_cores, vmem_budget_bytes):
    """Largest divisor of BT whose per-step footprint fits the VMEM budget.

    On multi-TensorCore parts prefer a grid that is a multiple of the core
    count so every core gets work; on single-core parts fewer (bigger) steps
    win (per-step overhead ~0.35us dominates at these shapes).
    """
    d = D // K

    def per_step_bytes(bt):
        rows = bt * N
        act_blocks = 3 * 2 * rows * D * 4            # x, ste, out; double-buffered f32
        qkv = rows * 3 * D * (4 + 2)                 # f32 slab + bf16 copy
        scores = bt * N * N * 10                     # s, p (f32) + bf16 p  (one head live)
        head_tmp = 3 * bt * N * d * 2 + rows * d * 2 # qh/kh/vh + oh (bf16)
        acc = 2 * rows * D * 4                       # fc1 accum + h1
        weights = (2 * D * 3 * D + D * 2 * D) * 2 + 5 * D * 4
        return act_blocks + qkv + scores + head_tmp + acc + weights + (2 << 20)

    max_rows = 2048                                  # MXU-fill / overhead-amortization cap
    cap = max(1, max_rows // N)
    cands = [t for t in range(1, BT + 1)
             if BT % t == 0 and t <= cap and per_step_bytes(t) <= vmem_budget_bytes]
    if not cands:
        cands = [1]
    if num_cores > 1:
        even = [t for t in cands if (BT // t) % num_cores == 0]
        if even:
            cands = even
    return max(cands)


# ----------------------------------------------------------------------------
# Wrapper: weight fusion / scale folding, tiling, single pallas_call
# ----------------------------------------------------------------------------
def spatial_attention(x, ste, params, K, D, bt_tile=None):
    B, T, N, _ = x.shape
    BT = B * T
    d = D // K

    kind = _device_kind()
    is_v7 = "v7" in kind
    num_cores = 2 if is_v7 else 1
    # v7x: 64 MiB physical VMEM -> stay well under; v5e/v6e: 128 MiB physical.
    vmem_limit = (48 if is_v7 else 100) * 1024 * 1024

    if bt_tile is None or BT % bt_tile != 0:
        bt_tile = _pick_bt_tile(BT, N, D, K, num_cores, int(vmem_limit * 0.75))
    grid = BT // bt_tile

    x3 = x.reshape(BT, N, D)
    s3 = ste.reshape(BT, N, D)

    # Fold 1/sqrt(d) into the query projection (ReLU commutes with a positive
    # scale) and fuse Wq|Wk|Wv into (D, 3D) slabs split by input half.
    scale = 1.0 / math.sqrt(float(D) / float(K))
    wq = params["wq"] * scale
    bq = params["bq"] * scale
    w_x = jnp.concatenate([wq[:D], params["wk"][:D], params["wv"][:D]],
                          axis=1).astype(jnp.bfloat16)            # (D, 3D)
    w_s = jnp.concatenate([wq[D:], params["wk"][D:], params["wv"][D:]],
                          axis=1).astype(jnp.bfloat16)            # (D, 3D)
    w_o = jnp.concatenate([params["wo1"], params["wo2"]],
                          axis=1).astype(jnp.bfloat16)            # (D, 2D)
    biases = jnp.concatenate([bq, params["bk"], params["bv"],
                              params["bo1"], params["bo2"]]
                             ).reshape(1, 5 * D).astype(jnp.float32)

    act_spec = pl.BlockSpec((bt_tile, N, D), lambda i: (i, 0, 0))
    full = lambda shape: pl.BlockSpec(shape, lambda i: (0,) * len(shape))

    out = pl.pallas_call(
        functools.partial(_fused_spatial_attention_kernel,
                          K=K, D=D, N=N, bt_tile=bt_tile),
        out_shape=jax.ShapeDtypeStruct((BT, N, D), x.dtype),
        grid_spec=pltpu.PrefetchScalarGridSpec(
            num_scalar_prefetch=0,
            grid=(grid,),
            in_specs=[
                act_spec, act_spec,
                full((D, 3 * D)), full((D, 3 * D)),
                full((D, 2 * D)), full((1, 5 * D)),
            ],
            out_specs=act_spec,
        ),
        compiler_params=pltpu.CompilerParams(
            dimension_semantics=("parallel",),
            vmem_limit_bytes=int(vmem_limit),
        ),
    )(x3, s3, w_x, w_s, w_o, biases)

    return out.reshape(B, T, N, D)


# ----------------------------------------------------------------------------
# Deterministic parameter init (xavier_normal_ on (out, in, 1, 1) conv weights,
# zero bias), stored transposed as (in, out) for x @ W.
# ----------------------------------------------------------------------------
def xavier_normal_linear(key, c_in, c_out):
    std = math.sqrt(2.0 / (c_in + c_out))
    w_conv = std * jax.random.normal(key, (c_out, c_in), dtype=jnp.float32)
    return w_conv.T                                   # (c_in, c_out)


def init_params(key, D):
    ks = jax.random.split(key, 5)
    return {
        "wq": xavier_normal_linear(ks[0], 2 * D, D), "bq": jnp.zeros((D,), jnp.float32),
        "wk": xavier_normal_linear(ks[1], 2 * D, D), "bk": jnp.zeros((D,), jnp.float32),
        "wv": xavier_normal_linear(ks[2], 2 * D, D), "bv": jnp.zeros((D,), jnp.float32),
        "wo1": xavier_normal_linear(ks[3], D, D), "bo1": jnp.zeros((D,), jnp.float32),
        "wo2": xavier_normal_linear(ks[4], D, D), "bo2": jnp.zeros((D,), jnp.float32),
    }


# ----------------------------------------------------------------------------
# Pure-JAX reference (same math as the PyTorch module) for a correctness check
# ----------------------------------------------------------------------------
def reference(x, ste, params, K, D):
    B, T, N, _ = x.shape
    d = D // K
    xc = jnp.concatenate([x, ste], axis=-1)
    q = jax.nn.relu(xc @ params["wq"] + params["bq"])
    k = jax.nn.relu(xc @ params["wk"] + params["bk"])
    v = jax.nn.relu(xc @ params["wv"] + params["bv"])

    def split_heads(a):
        a = a.reshape(B, T, N, K, d)
        return jnp.transpose(a, (3, 0, 1, 2, 4))       # (K, B, T, N, d)

    qh, kh, vh = split_heads(q), split_heads(k), split_heads(v)
    s = jnp.einsum("kbtnd,kbtmd->kbtnm", qh, kh) / math.sqrt(float(D) / float(K))
    p = jax.nn.softmax(s, axis=-1)
    o = jnp.einsum("kbtnm,kbtmd->kbtnd", p, vh)
    o = jnp.transpose(o, (1, 2, 3, 0, 4)).reshape(B, T, N, D)
    h1 = jax.nn.relu(o @ params["wo1"] + params["bo1"])
    return h1 @ params["wo2"] + params["bo2"]


if __name__ == "__main__":
    B, T, N, D, K = 2, 4, 16, 32, 4          # num_step=4, num_nodes=16, K*d=32

    key = jax.random.PRNGKey(0)
    kx, ks, kp = jax.random.split(key, 3)
    x = jax.random.normal(kx, (B, T, N, D), dtype=jnp.float32)
    ste = jax.random.normal(ks, (B, T, N, D), dtype=jnp.float32)
    params = init_params(kp, D)

    out = spatial_attention(x, ste, params, K, D)
    out = jax.block_until_ready(out)

    ref = jax.block_until_ready(reference(x, ste, params, K, D))
    assert out.shape == (B, T, N, D)
    assert jnp.allclose(out, ref, rtol=2e-2, atol=2e-2), "mismatch vs reference"

    print("KERNEL_OK")
</pallas_src>

<mosaic_0001>
module attributes {stable_mosaic.version = 11 : i64} {
  func.func @_fused_spatial_attention_kernel(%arg0: i32, %arg1: memref<8x16x32xf32, #tpu.memory_space<vmem>>, %arg2: memref<8x16x32xf32, #tpu.memory_space<vmem>>, %arg3: memref<32x96xbf16, #tpu.memory_space<vmem>>, %arg4: memref<32x96xbf16, #tpu.memory_space<vmem>>, %arg5: memref<32x64xbf16, #tpu.memory_space<vmem>>, %arg6: memref<1x160xf32, #tpu.memory_space<vmem>>, %arg7: memref<8x16x32xf32, #tpu.memory_space<vmem>>) attributes {dimension_semantics = [#tpu.dimension_semantics<parallel>], iteration_bounds = array<i64: 1>, scalar_prefetch = 0 : i64, scratch_operands = 0 : i64, tpu.core_type = #tpu.core_type<tc>, window_params = [{transform_indices = @transform_0, window_bounds = array<i64: 8, 16, 32>}, {transform_indices = @transform_1, window_bounds = array<i64: 8, 16, 32>}, {pipeline_mode = #tpu.pipeline_mode<synchronous>, transform_indices = @transform_2, window_bounds = array<i64: 32, 96>}, {pipeline_mode = #tpu.pipeline_mode<synchronous>, transform_indices = @transform_3, window_bounds = array<i64: 32, 96>}, {pipeline_mode = #tpu.pipeline_mode<synchronous>, transform_indices = @transform_4, window_bounds = array<i64: 32, 64>}, {pipeline_mode = #tpu.pipeline_mode<synchronous>, transform_indices = @transform_5, window_bounds = array<i64: 1, 160>}, {transform_indices = @transform_6, window_bounds = array<i64: 8, 16, 32>}]} {
    %c0 = arith.constant 0 : index
    %c0_0 = arith.constant 0 : index
    %c0_1 = arith.constant 0 : index
    %0 = vector.load %arg1[%c0, %c0_0, %c0_1] : memref<8x16x32xf32, #tpu.memory_space<vmem>>, vector<8x16x32xf32>
    %1 = vector.shape_cast %0 : vector<8x16x32xf32> to vector<128x32xf32>
    %2 = arith.truncf %1 : vector<128x32xf32> to vector<128x32xbf16>
    %c0_2 = arith.constant 0 : index
    %c0_3 = arith.constant 0 : index
    %c0_4 = arith.constant 0 : index
    %3 = vector.load %arg2[%c0_2, %c0_3, %c0_4] : memref<8x16x32xf32, #tpu.memory_space<vmem>>, vector<8x16x32xf32>
    %4 = vector.shape_cast %3 : vector<8x16x32xf32> to vector<128x32xf32>
    %5 = arith.truncf %4 : vector<128x32xf32> to vector<128x32xbf16>
    %c0_5 = arith.constant 0 : index
    %c0_6 = arith.constant 0 : index
    %6 = vector.load %arg3[%c0_5, %c0_6] : memref<32x96xbf16, #tpu.memory_space<vmem>>, vector<32x96xbf16>
    %cst = arith.constant dense<0.000000e+00> : vector<128x96xf32>
    %7 = tpu.matmul %2, %6, %cst {dimension_numbers = #tpu.dot_dimension_numbers<[1], [0], [0], [1], [0, 0, 1, 1], [], []>} : vector<128x32xbf16>, vector<32x96xbf16>, vector<128x96xf32> -> vector<128x96xf32>
    %c0_7 = arith.constant 0 : index
    %c0_8 = arith.constant 0 : index
    %8 = vector.load %arg4[%c0_7, %c0_8] : memref<32x96xbf16, #tpu.memory_space<vmem>>, vector<32x96xbf16>
    %cst_9 = arith.constant dense<0.000000e+00> : vector<128x96xf32>
    %9 = tpu.matmul %5, %8, %cst_9 {dimension_numbers = #tpu.dot_dimension_numbers<[1], [0], [0], [1], [0, 0, 1, 1], [], []>} : vector<128x32xbf16>, vector<32x96xbf16>, vector<128x96xf32> -> vector<128x96xf32>
    %10 = arith.addf %7, %9 : vector<128x96xf32>
    %c0_10 = arith.constant 0 : index
    %c0_11 = arith.constant 0 : index
    %11 = vector.load %arg6[%c0_10, %c0_11] : memref<1x160xf32, #tpu.memory_space<vmem>>, vector<1x96xf32>
    %12 = vector.broadcast %11 : vector<1x96xf32> to vector<128x96xf32>
    %13 = arith.addf %10, %12 : vector<128x96xf32>
    %cst_12 = arith.constant 0.000000e+00 : f32
    %14 = vector.broadcast %cst_12 : f32 to vector<128x96xf32>
    %15 = arith.maximumf %13, %14 : vector<128x96xf32>
    %16 = arith.truncf %15 : vector<128x96xf32> to vector<128x96xbf16>
    %c0_13 = arith.constant 0 : index
    %c0_14 = arith.constant 0 : index
    %17 = vector.load %arg5[%c0_13, %c0_14] : memref<32x64xbf16, #tpu.memory_space<vmem>>, vector<32x64xbf16>
    %18 = vector.extract_strided_slice %17 {offsets = [0, 0], sizes = [32, 32], strides = [1, 1]} : vector<32x64xbf16> to vector<32x32xbf16>
    %19 = vector.extract_strided_slice %17 {offsets = [0, 32], sizes = [32, 32], strides = [1, 1]} : vector<32x64xbf16> to vector<32x32xbf16>
    %cst_15 = arith.constant 0.000000e+00 : f32
    %20 = vector.broadcast %cst_15 : f32 to vector<128x32xf32>
    %21 = vector.extract_strided_slice %16 {offsets = [0, 0], sizes = [128, 8], strides = [1, 1]} : vector<128x96xbf16> to vector<128x8xbf16>
    %22 = vector.shape_cast %21 : vector<128x8xbf16> to vector<8x16x8xbf16>
    %23 = vector.extract_strided_slice %16 {offsets = [0, 32], sizes = [128, 8], strides = [1, 1]} : vector<128x96xbf16> to vector<128x8xbf16>
    %24 = vector.shape_cast %23 : vector<128x8xbf16> to vector<8x16x8xbf16>
    %25 = vector.extract_strided_slice %16 {offsets = [0, 64], sizes = [128, 8], strides = [1, 1]} : vector<128x96xbf16> to vector<128x8xbf16>
    %26 = vector.shape_cast %25 : vector<128x8xbf16> to vector<8x16x8xbf16>
    "tpu.trace_start"() <{level = 10 : i32, message = "bnd,bmd->bnm"}> : () -> ()
    %cst_16 = arith.constant dense<0.000000e+00> : vector<8x16x16xf32>
    %27 = tpu.matmul %22, %24, %cst_16 {dimension_numbers = #tpu.dot_dimension_numbers<[2], [2], [1], [1], [0, 0, 0, 1, 1, 1], [0], [0]>} : vector<8x16x8xbf16>, vector<8x16x8xbf16>, vector<8x16x16xf32> -> vector<8x16x16xf32>
    "tpu.trace_stop"() : () -> ()
    %cst_17 = arith.constant dense<0xFF800000> : vector<8x16xf32>
    %28 = vector.multi_reduction <maximumf>, %27, %cst_17 [2] : vector<8x16x16xf32> to vector<8x16xf32>
    %29 = vector.shape_cast %28 : vector<8x16xf32> to vector<8x16x1xf32>
    %30 = vector.broadcast %29 : vector<8x16x1xf32> to vector<8x16x16xf32>
    %31 = arith.subf %27, %30 : vector<8x16x16xf32>
    %32 = math.exp %31 : vector<8x16x16xf32>
    %cst_18 = arith.constant dense<0.000000e+00> : vector<8x16xf32>
    %33 = vector.multi_reduction <add>, %32, %cst_18 [2] : vector<8x16x16xf32> to vector<8x16xf32>
    %34 = vector.shape_cast %33 : vector<8x16xf32> to vector<8x16x1xf32>
    %35 = tpu.reciprocal %34 {approx = true} : vector<8x16x1xf32> -> vector<8x16x1xf32>
    %36 = vector.broadcast %35 : vector<8x16x1xf32> to vector<8x16x16xf32>
    %37 = arith.mulf %32, %36 : vector<8x16x16xf32>
    %38 = arith.truncf %37 : vector<8x16x16xf32> to vector<8x16x16xbf16>
    "tpu.trace_start"() <{level = 10 : i32, message = "bnm,bmd->bnd"}> : () -> ()
    %cst_19 = arith.constant dense<0.000000e+00> : vector<8x16x8xf32>
    %39 = tpu.matmul %38, %26, %cst_19 {dimension_numbers = #tpu.dot_dimension_numbers<[2], [1], [1], [2], [0, 0, 0, 1, 1, 2], [0], [0]>} : vector<8x16x16xbf16>, vector<8x16x8xbf16>, vector<8x16x8xf32> -> vector<8x16x8xf32>
    "tpu.trace_stop"() : () -> ()
    %40 = vector.shape_cast %39 : vector<8x16x8xf32> to vector<128x8xf32>
    %41 = arith.truncf %40 : vector<128x8xf32> to vector<128x8xbf16>
    %42 = vector.extract_strided_slice %18 {offsets = [0, 0], sizes = [8, 32], strides = [1, 1]} : vector<32x32xbf16> to vector<8x32xbf16>
    %cst_20 = arith.constant dense<0.000000e+00> : vector<128x32xf32>
    %43 = tpu.matmul %41, %42, %cst_20 {dimension_numbers = #tpu.dot_dimension_numbers<[1], [0], [0], [1], [0, 0, 1, 1], [], []>} : vector<128x8xbf16>, vector<8x32xbf16>, vector<128x32xf32> -> vector<128x32xf32>
    %44 = arith.addf %20, %43 : vector<128x32xf32>
    %45 = vector.extract_strided_slice %16 {offsets = [0, 8], sizes = [128, 8], strides = [1, 1]} : vector<128x96xbf16> to vector<128x8xbf16>
    %46 = vector.shape_cast %45 : vector<128x8xbf16> to vector<8x16x8xbf16>
    %47 = vector.extract_strided_slice %16 {offsets = [0, 40], sizes = [128, 8], strides = [1, 1]} : vector<128x96xbf16> to vector<128x8xbf16>
    %48 = vector.shape_cast %47 : vector<128x8xbf16> to vector<8x16x8xbf16>
    %49 = vector.extract_strided_slice %16 {offsets = [0, 72], sizes = [128, 8], strides = [1, 1]} : vector<128x96xbf16> to vector<128x8xbf16>
    %50 = vector.shape_cast %49 : vector<128x8xbf16> to vector<8x16x8xbf16>
    "tpu.trace_start"() <{level = 10 : i32, message = "bnd,bmd->bnm"}> : () -> ()
    %cst_21 = arith.constant dense<0.000000e+00> : vector<8x16x16xf32>
    %51 = tpu.matmul %46, %48, %cst_21 {dimension_numbers = #tpu.dot_dimension_numbers<[2], [2], [1], [1], [0, 0, 0, 1, 1, 1], [0], [0]>} : vector<8x16x8xbf16>, vector<8x16x8xbf16>, vector<8x16x16xf32> -> vector<8x16x16xf32>
    "tpu.trace_stop"() : () -> ()
    %cst_22 = arith.constant dense<0xFF800000> : vector<8x16xf32>
    %52 = vector.multi_reduction <maximumf>, %51, %cst_22 [2] : vector<8x16x16xf32> to vector<8x16xf32>
    %53 = vector.shape_cast %52 : vector<8x16xf32> to vector<8x16x1xf32>
    %54 = vector.broadcast %53 : vector<8x16x1xf32> to vector<8x16x16xf32>
    %55 = arith.subf %51, %54 : vector<8x16x16xf32>
    %56 = math.exp %55 : vector<8x16x16xf32>
    %cst_23 = arith.constant dense<0.000000e+00> : vector<8x16xf32>
    %57 = vector.multi_reduction <add>, %56, %cst_23 [2] : vector<8x16x16xf32> to vector<8x16xf32>
    %58 = vector.shape_cast %57 : vector<8x16xf32> to vector<8x16x1xf32>
    %59 = tpu.reciprocal %58 {approx = true} : vector<8x16x1xf32> -> vector<8x16x1xf32>
    %60 = vector.broadcast %59 : vector<8x16x1xf32> to vector<8x16x16xf32>
    %61 = arith.mulf %56, %60 : vector<8x16x16xf32>
    %62 = arith.truncf %61 : vector<8x16x16xf32> to vector<8x16x16xbf16>
    "tpu.trace_start"() <{level = 10 : i32, message = "bnm,bmd->bnd"}> : () -> ()
    %cst_24 = arith.constant dense<0.000000e+00> : vector<8x16x8xf32>
    %63 = tpu.matmul %62, %50, %cst_24 {dimension_numbers = #tpu.dot_dimension_numbers<[2], [1], [1], [2], [0, 0, 0, 1, 1, 2], [0], [0]>} : vector<8x16x16xbf16>, vector<8x16x8xbf16>, vector<8x16x8xf32> -> vector<8x16x8xf32>
    "tpu.trace_stop"() : () -> ()
    %64 = vector.shape_cast %63 : vector<8x16x8xf32> to vector<128x8xf32>
    %65 = arith.truncf %64 : vector<128x8xf32> to vector<128x8xbf16>
    %66 = vector.extract_strided_slice %18 {offsets = [8, 0], sizes = [8, 32], strides = [1, 1]} : vector<32x32xbf16> to vector<8x32xbf16>
    %cst_25 = arith.constant dense<0.000000e+00> : vector<128x32xf32>
    %67 = tpu.matmul %65, %66, %cst_25 {dimension_numbers = #tpu.dot_dimension_numbers<[1], [0], [0], [1], [0, 0, 1, 1], [], []>} : vector<128x8xbf16>, vector<8x32xbf16>, vector<128x32xf32> -> vector<128x32xf32>
    %68 = arith.addf %44, %67 : vector<128x32xf32>
    %69 = vector.extract_strided_slice %16 {offsets = [0, 16], sizes = [128, 8], strides = [1, 1]} : vector<128x96xbf16> to vector<128x8xbf16>
    %70 = vector.shape_cast %69 : vector<128x8xbf16> to vector<8x16x8xbf16>
    %71 = vector.extract_strided_slice %16 {offsets = [0, 48], sizes = [128, 8], strides = [1, 1]} : vector<128x96xbf16> to vector<128x8xbf16>
    %72 = vector.shape_cast %71 : vector<128x8xbf16> to vector<8x16x8xbf16>
    %73 = vector.extract_strided_slice %16 {offsets = [0, 80], sizes = [128, 8], strides = [1, 1]} : vector<128x96xbf16> to vector<128x8xbf16>
    %74 = vector.shape_cast %73 : vector<128x8xbf16> to vector<8x16x8xbf16>
    "tpu.trace_start"() <{level = 10 : i32, message = "bnd,bmd->bnm"}> : () -> ()
    %cst_26 = arith.constant dense<0.000000e+00> : vector<8x16x16xf32>
    %75 = tpu.matmul %70, %72, %cst_26 {dimension_numbers = #tpu.dot_dimension_numbers<[2], [2], [1], [1], [0, 0, 0, 1, 1, 1], [0], [0]>} : vector<8x16x8xbf16>, vector<8x16x8xbf16>, vector<8x16x16xf32> -> vector<8x16x16xf32>
    "tpu.trace_stop"() : () -> ()
    %cst_27 = arith.constant dense<0xFF800000> : vector<8x16xf32>
    %76 = vector.multi_reduction <maximumf>, %75, %cst_27 [2] : vector<8x16x16xf32> to vector<8x16xf32>
    %77 = vector.shape_cast %76 : vector<8x16xf32> to vector<8x16x1xf32>
    %78 = vector.broadcast %77 : vector<8x16x1xf32> to vector<8x16x16xf32>
    %79 = arith.subf %75, %78 : vector<8x16x16xf32>
    %80 = math.exp %79 : vector<8x16x16xf32>
    %cst_28 = arith.constant dense<0.000000e+00> : vector<8x16xf32>
    %81 = vector.multi_reduction <add>, %80, %cst_28 [2] : vector<8x16x16xf32> to vector<8x16xf32>
    %82 = vector.shape_cast %81 : vector<8x16xf32> to vector<8x16x1xf32>
    %83 = tpu.reciprocal %82 {approx = true} : vector<8x16x1xf32> -> vector<8x16x1xf32>
    %84 = vector.broadcast %83 : vector<8x16x1xf32> to vector<8x16x16xf32>
    %85 = arith.mulf %80, %84 : vector<8x16x16xf32>
    %86 = arith.truncf %85 : vector<8x16x16xf32> to vector<8x16x16xbf16>
    "tpu.trace_start"() <{level = 10 : i32, message = "bnm,bmd->bnd"}> : () -> ()
    %cst_29 = arith.constant dense<0.000000e+00> : vector<8x16x8xf32>
    %87 = tpu.matmul %86, %74, %cst_29 {dimension_numbers = #tpu.dot_dimension_numbers<[2], [1], [1], [2], [0, 0, 0, 1, 1, 2], [0], [0]>} : vector<8x16x16xbf16>, vector<8x16x8xbf16>, vector<8x16x8xf32> -> vector<8x16x8xf32>
    "tpu.trace_stop"() : () -> ()
    %88 = vector.shape_cast %87 : vector<8x16x8xf32> to vector<128x8xf32>
    %89 = arith.truncf %88 : vector<128x8xf32> to vector<128x8xbf16>
    %90 = vector.extract_strided_slice %18 {offsets = [16, 0], sizes = [8, 32], strides = [1, 1]} : vector<32x32xbf16> to vector<8x32xbf16>
    %cst_30 = arith.constant dense<0.000000e+00> : vector<128x32xf32>
    %91 = tpu.matmul %89, %90, %cst_30 {dimension_numbers = #tpu.dot_dimension_numbers<[1], [0], [0], [1], [0, 0, 1, 1], [], []>} : vector<128x8xbf16>, vector<8x32xbf16>, vector<128x32xf32> -> vector<128x32xf32>
    %92 = arith.addf %68, %91 : vector<128x32xf32>
    %93 = vector.extract_strided_slice %16 {offsets = [0, 24], sizes = [128, 8], strides = [1, 1]} : vector<128x96xbf16> to vector<128x8xbf16>
    %94 = vector.shape_cast %93 : vector<128x8xbf16> to vector<8x16x8xbf16>
    %95 = vector.extract_strided_slice %16 {offsets = [0, 56], sizes = [128, 8], strides = [1, 1]} : vector<128x96xbf16> to vector<128x8xbf16>
    %96 = vector.shape_cast %95 : vector<128x8xbf16> to vector<8x16x8xbf16>
    %97 = vector.extract_strided_slice %16 {offsets = [0, 88], sizes = [128, 8], strides = [1, 1]} : vector<128x96xbf16> to vector<128x8xbf16>
    %98 = vector.shape_cast %97 : vector<128x8xbf16> to vector<8x16x8xbf16>
    "tpu.trace_start"() <{level = 10 : i32, message = "bnd,bmd->bnm"}> : () -> ()
    %cst_31 = arith.constant dense<0.000000e+00> : vector<8x16x16xf32>
    %99 = tpu.matmul %94, %96, %cst_31 {dimension_numbers = #tpu.dot_dimension_numbers<[2], [2], [1], [1], [0, 0, 0, 1, 1, 1], [0], [0]>} : vector<8x16x8xbf16>, vector<8x16x8xbf16>, vector<8x16x16xf32> -> vector<8x16x16xf32>
    "tpu.trace_stop"() : () -> ()
    %cst_32 = arith.constant dense<0xFF800000> : vector<8x16xf32>
    %100 = vector.multi_reduction <maximumf>, %99, %cst_32 [2] : vector<8x16x16xf32> to vector<8x16xf32>
    %101 = vector.shape_cast %100 : vector<8x16xf32> to vector<8x16x1xf32>
    %102 = vector.broadcast %101 : vector<8x16x1xf32> to vector<8x16x16xf32>
    %103 = arith.subf %99, %102 : vector<8x16x16xf32>
    %104 = math.exp %103 : vector<8x16x16xf32>
    %cst_33 = arith.constant dense<0.000000e+00> : vector<8x16xf32>
    %105 = vector.multi_reduction <add>, %104, %cst_33 [2] : vector<8x16x16xf32> to vector<8x16xf32>
    %106 = vector.shape_cast %105 : vector<8x16xf32> to vector<8x16x1xf32>
    %107 = tpu.reciprocal %106 {approx = true} : vector<8x16x1xf32> -> vector<8x16x1xf32>
    %108 = vector.broadcast %107 : vector<8x16x1xf32> to vector<8x16x16xf32>
    %109 = arith.mulf %104, %108 : vector<8x16x16xf32>
    %110 = arith.truncf %109 : vector<8x16x16xf32> to vector<8x16x16xbf16>
    "tpu.trace_start"() <{level = 10 : i32, message = "bnm,bmd->bnd"}> : () -> ()
    %cst_34 = arith.constant dense<0.000000e+00> : vector<8x16x8xf32>
    %111 = tpu.matmul %110, %98, %cst_34 {dimension_numbers = #tpu.dot_dimension_numbers<[2], [1], [1], [2], [0, 0, 0, 1, 1, 2], [0], [0]>} : vector<8x16x16xbf16>, vector<8x16x8xbf16>, vector<8x16x8xf32> -> vector<8x16x8xf32>
    "tpu.trace_stop"() : () -> ()
    %112 = vector.shape_cast %111 : vector<8x16x8xf32> to vector<128x8xf32>
    %113 = arith.truncf %112 : vector<128x8xf32> to vector<128x8xbf16>
    %114 = vector.extract_strided_slice %18 {offsets = [24, 0], sizes = [8, 32], strides = [1, 1]} : vector<32x32xbf16> to vector<8x32xbf16>
    %cst_35 = arith.constant dense<0.000000e+00> : vector<128x32xf32>
    %115 = tpu.matmul %113, %114, %cst_35 {dimension_numbers = #tpu.dot_dimension_numbers<[1], [0], [0], [1], [0, 0, 1, 1], [], []>} : vector<128x8xbf16>, vector<8x32xbf16>, vector<128x32xf32> -> vector<128x32xf32>
    %116 = arith.addf %92, %115 : vector<128x32xf32>
    %c0_36 = arith.constant 0 : index
    %c96 = arith.constant 96 : index
    %117 = vector.load %arg6[%c0_36, %c96] : memref<1x160xf32, #tpu.memory_space<vmem>>, vector<1x32xf32>
    %118 = vector.broadcast %117 : vector<1x32xf32> to vector<128x32xf32>
    %119 = arith.addf %116, %118 : vector<128x32xf32>
    %cst_37 = arith.constant 0.000000e+00 : f32
    %120 = vector.broadcast %cst_37 : f32 to vector<128x32xf32>
    %121 = arith.maximumf %119, %120 : vector<128x32xf32>
    %122 = arith.truncf %121 : vector<128x32xf32> to vector<128x32xbf16>
    %cst_38 = arith.constant dense<0.000000e+00> : vector<128x32xf32>
    %123 = tpu.matmul %122, %19, %cst_38 {dimension_numbers = #tpu.dot_dimension_numbers<[1], [0], [0], [1], [0, 0, 1, 1], [], []>} : vector<128x32xbf16>, vector<32x32xbf16>, vector<128x32xf32> -> vector<128x32xf32>
    %c0_39 = arith.constant 0 : index
    %c128 = arith.constant 128 : index
    %124 = vector.load %arg6[%c0_39, %c128] : memref<1x160xf32, #tpu.memory_space<vmem>>, vector<1x32xf32>
    %125 = vector.broadcast %124 : vector<1x32xf32> to vector<128x32xf32>
    %126 = arith.addf %123, %125 : vector<128x32xf32>
    %127 = vector.shape_cast %126 : vector<128x32xf32> to vector<8x16x32xf32>
    %c0_40 = arith.constant 0 : index
    %c0_41 = arith.constant 0 : index
    %c0_42 = arith.constant 0 : index
    %128 = vector.load %arg7[%c0_40, %c0_41, %c0_42] : memref<8x16x32xf32, #tpu.memory_space<vmem>>, vector<8x16x32xf32>
    tpu.vector_store %arg7[%c0_40, %c0_41, %c0_42], %127 {strides = array<i32>} : memref<8x16x32xf32, #tpu.memory_space<vmem>>, vector<8x16x32xf32>,
    return
  }
  func.func @transform_0(%arg0: i32) -> (i32, i32, i32) {
    %c0_i32 = arith.constant 0 : i32
    %c0_i32_0 = arith.constant 0 : i32
    %c0_i32_1 = arith.constant 0 : i32
    return %arg0, %c0_i32, %c0_i32_0 : i32, i32, i32
  }
  func.func @transform_1(%arg0: i32) -> (i32, i32, i32) {
    %c0_i32 = arith.constant 0 : i32
    %c0_i32_0 = arith.constant 0 : i32
    %c0_i32_1 = arith.constant 0 : i32
    return %arg0, %c0_i32, %c0_i32_0 : i32, i32, i32
  }
  func.func @transform_2(%arg0: i32) -> (i32, i32) {
    %c0_i32 = arith.constant 0 : i32
    %c0_i32_0 = arith.constant 0 : i32
    %c0_i32_1 = arith.constant 0 : i32
    return %c0_i32, %c0_i32_0 : i32, i32
  }
  func.func @transform_3(%arg0: i32) -> (i32, i32) {
    %c0_i32 = arith.constant 0 : i32
    %c0_i32_0 = arith.constant 0 : i32
    %c0_i32_1 = arith.constant 0 : i32
    return %c0_i32, %c0_i32_0 : i32, i32
  }
  func.func @transform_4(%arg0: i32) -> (i32, i32) {
    %c0_i32 = arith.constant 0 : i32
    %c0_i32_0 = arith.constant 0 : i32
    %c0_i32_1 = arith.constant 0 : i32
    return %c0_i32, %c0_i32_0 : i32, i32
  }
  func.func @transform_5(%arg0: i32) -> (i32, i32) {
    %c0_i32 = arith.constant 0 : i32
    %c0_i32_0 = arith.constant 0 : i32
    %c0_i32_1 = arith.constant 0 : i32
    return %c0_i32, %c0_i32_0 : i32, i32
  }
  func.func @transform_6(%arg0: i32) -> (i32, i32, i32) {
    %c0_i32 = arith.constant 0 : i32
    %c0_i32_0 = arith.constant 0 : i32
    %c0_i32_1 = arith.constant 0 : i32
    return %arg0, %c0_i32, %c0_i32_0 : i32, i32, i32
  }
}

</mosaic_0001>

<llo_original>
// kernel: tpu_custom_call.1
$region0: #{tpu_custom_call.1}
  #allocation0 [shape = 'u32[]', space=smem, size = 0x4, offset = 0x4, fixed_abs, tag = 'smem constant byte address 0x4 - core index']
  #allocation1 [shape = 'u32[72,128]{1,0:T(1,128)}', space=vmem, size = 0x9000, scoped, tag = 'internal scratch']
  %s0 = inlined_call_operand.hbm [shape: f32[8,16,32], index: 0, kind: input, shape index: {}]
  %s1 = inlined_call_operand.hbm [shape: f32[8,16,32], index: 1, kind: input, shape index: {}]
  %s2 = inlined_call_operand.hbm [shape: bf16[32,96], index: 2, kind: input, shape index: {}]
  %s3 = inlined_call_operand.hbm [shape: bf16[32,96], index: 3, kind: input, shape index: {}]
  %s4 = inlined_call_operand.hbm [shape: bf16[32,64], index: 4, kind: input, shape index: {}]
  %s5 = inlined_call_operand.vmem [shape: f32[1,160], index: 5, kind: input, shape index: {}]
  %s6 = inlined_call_operand.hbm [shape: f32[8,16,32], index: 6, kind: output, shape index: {}]
  %s7 = sld [smem:[#allocation0]]
  $region54: #{tpu_custom_call.1} parent=0
    _
  %s9 = ssub.s32 1, %s7
  %s10 = scalar_select 0, %s9, %s7
  $region1: #{tpu_custom_call.1} parent=0
    #allocation2 [shape = 'u8[65536]{0}', space=vmem, size = 0x10000, scoped, tag = 'input window, operand 0, single buffered']
    #allocation3 [shape = 's32[1]{0}', space=sflag, size = 0x4, scoped, tag = 'scoped memory for tpu_custom_call.1']
    #allocation4 [shape = 's32[1]{0}', space=sflag, size = 0x4, scoped, tag = 'scoped memory for tpu_custom_call.1']
    #allocation5 [shape = 'u8[65536]{0}', space=vmem, size = 0x10000, scoped, tag = 'input window, operand 1, single buffered']
    #allocation6 [shape = 's32[1]{0}', space=sflag, size = 0x4, scoped, tag = 'scoped memory for tpu_custom_call.1']
    #allocation7 [shape = 'u8[8192]{0}', space=vmem, size = 0x2000, scoped, tag = 'input window, operand 2, single buffered']
    #allocation8 [shape = 'u8[8192]{0}', space=vmem, size = 0x2000, scoped, tag = 'input window, operand 3, single buffered']
    #allocation9 [shape = 's32[1]{0}', space=sflag, size = 0x4, scoped, tag = 'scoped memory for tpu_custom_call.1']
    #allocation10 [shape = 'u8[8192]{0}', space=vmem, size = 0x2000, scoped, tag = 'input window, operand 4, single buffered']
    #allocation11 [shape = 'u8[65536]{0}', space=vmem, size = 0x10000, scoped, tag = 'output window, operand 0, single buffered']
    %11 = vsyncpa [#allocation3], 0
    %12 = vsyncpa [#allocation6], 0
    %13 = vsyncpa [#allocation9], 0
    %14 = vsyncpa [#allocation4], 0
    // Predicated region
    $region2: #{tpu_custom_call.1} parent=1 // pred_check
      _
    $region3: #{tpu_custom_call.1} parent=1 // pred_check_branch
      %16 = sbr.rel (0) target = $region5
    $region4: #{tpu_custom_call.1} parent=1 // pred_region
      %18 = vsyncadd [#allocation3], 0
      %s19 = sshll.u32 %s0, 4
      %s20 = int_to_ptr.hbm [resolvable:$true] %s19
      %s21 = sshll.u32 [#allocation2], 4
      %s22 = int_to_ptr.vmem [resolvable:$true] %s21
      %27 = dma.hbm_to_vmem [thread:$0]  %s20, 2048, %s22, [#allocation3], 128, 128, 8
    $region5: #{tpu_custom_call.1} parent=1 // pred_fallthru
      _
    // Predicated region
    $region6: #{tpu_custom_call.1} parent=1 // pred_check
      _
    $region7: #{tpu_custom_call.1} parent=1 // pred_check_branch
      %29 = sbr.rel (0) target = $region9
    $region8: #{tpu_custom_call.1} parent=1 // pred_region
      %31 = vsyncadd [#allocation6], 0
      %s32 = sshll.u32 %s1, 4
      %s33 = int_to_ptr.hbm [resolvable:$true] %s32
      %s34 = sshll.u32 [#allocation5], 4
      %s35 = int_to_ptr.vmem [resolvable:$true] %s34
      %40 = dma.hbm_to_vmem [thread:$0]  %s33, 2048, %s35, [#allocation6], 128, 128, 8
    $region9: #{tpu_custom_call.1} parent=1 // pred_fallthru
      _
    // Predicated region
    $region10: #{tpu_custom_call.1} parent=1 // pred_check
      _
    $region11: #{tpu_custom_call.1} parent=1 // pred_check_branch
      %42 = sbr.rel (0) target = $region13
    $region12: #{tpu_custom_call.1} parent=1 // pred_region
      %44 = vsyncadd [#allocation6], 0
      %s45 = sshll.u32 %s2, 4
      %s46 = int_to_ptr.hbm [resolvable:$true] %s45
      %s47 = sshll.u32 [#allocation7], 4
      %s48 = int_to_ptr.vmem [resolvable:$true] %s47
      %53 = dma.hbm_to_vmem [thread:$0]  %s46, 256, %s48, [#allocation6], 64, 64, 4
    $region13: #{tpu_custom_call.1} parent=1 // pred_fallthru
      _
    // Predicated region
    $region14: #{tpu_custom_call.1} parent=1 // pred_check
      _
    $region15: #{tpu_custom_call.1} parent=1 // pred_check_branch
      %55 = sbr.rel (0) target = $region17
    $region16: #{tpu_custom_call.1} parent=1 // pred_region
      %57 = vsyncadd [#allocation9], 0
      %s58 = sshll.u32 %s3, 4
      %s59 = int_to_ptr.hbm [resolvable:$true] %s58
      %s60 = sshll.u32 [#allocation8], 4
      %s61 = int_to_ptr.vmem [resolvable:$true] %s60
      %66 = dma.hbm_to_vmem [thread:$0]  %s59, 256, %s61, [#allocation9], 64, 64, 4
    $region17: #{tpu_custom_call.1} parent=1 // pred_fallthru
      _
    // Predicated region
    $region18: #{tpu_custom_call.1} parent=1 // pred_check
      _
    $region19: #{tpu_custom_call.1} parent=1 // pred_check_branch
      %68 = sbr.rel (0) target = $region21
    $region20: #{tpu_custom_call.1} parent=1 // pred_region
      %70 = vsyncadd [#allocation9], 0
      %s71 = sshll.u32 %s4, 4
      %s72 = int_to_ptr.hbm [resolvable:$true] %s71
      %s73 = sshll.u32 [#allocation10], 4
      %s74 = int_to_ptr.vmem [resolvable:$true] %s73
      %79 = dma.hbm_to_vmem [thread:$0]  %s72, 256, %s74, [#allocation9], 64, 64, 4
    $region21: #{tpu_custom_call.1} parent=1 // pred_fallthru
      _
    // Predicated region
    $region22: #{tpu_custom_call.1} parent=1 // pred_check
      _
    $region23: #{tpu_custom_call.1} parent=1 // pred_check_branch
      %81 = sbr.rel (0) target = $region25
    $region24: #{tpu_custom_call.1} parent=1 // pred_region
      _
    $region25: #{tpu_custom_call.1} parent=1 // pred_fallthru
      _
    // Predicated region
    $region26: #{tpu_custom_call.1} parent=1 // pred_check
      _
    $region27: #{tpu_custom_call.1} parent=1 // pred_check_branch
      %83 = sbr.rel (0) target = $region29
    $region28: #{tpu_custom_call.1} parent=1 // pred_region
      %85 = dma.done [#allocation3], 2048
    $region29: #{tpu_custom_call.1} parent=1 // pred_fallthru
      _
    // Predicated region
    $region30: #{tpu_custom_call.1} parent=1 // pred_check
      _
    $region31: #{tpu_custom_call.1} parent=1 // pred_check_branch
      %87 = sbr.rel (0) target = $region33
    $region32: #{tpu_custom_call.1} parent=1 // pred_region
      %89 = dma.done [#allocation6], 2048
    $region33: #{tpu_custom_call.1} parent=1 // pred_fallthru
      _
    // Predicated region
    $region34: #{tpu_custom_call.1} parent=1 // pred_check
      _
    $region35: #{tpu_custom_call.1} parent=1 // pred_check_branch
      %91 = sbr.rel (0) target = $region37
    $region36: #{tpu_custom_call.1} parent=1 // pred_region
      %93 = dma.done [#allocation6], 256
    $region37: #{tpu_custom_call.1} parent=1 // pred_fallthru
      _
    // Predicated region
    $region38: #{tpu_custom_call.1} parent=1 // pred_check
      _
    $region39: #{tpu_custom_call.1} parent=1 // pred_check_branch
      %95 = sbr.rel (0) target = $region41
    $region40: #{tpu_custom_call.1} parent=1 // pred_region
      %97 = dma.done [#allocation9], 256
    $region41: #{tpu_custom_call.1} parent=1 // pred_fallthru
      _
    // Predicated region
    $region42: #{tpu_custom_call.1} parent=1 // pred_check
      _
    $region43: #{tpu_custom_call.1} parent=1 // pred_check_branch
      %99 = sbr.rel (0) target = $region45
    $region44: #{tpu_custom_call.1} parent=1 // pred_region
      %101 = dma.done [#allocation9], 256
    $region45: #{tpu_custom_call.1} parent=1 // pred_fallthru
      _
    %v103 = vld [vmem:[#allocation2] sm:$0xff]
    %v104 = vld [vmem:[#allocation2 + $0x8] sm:$0xff]
    %v105 = vld [vmem:[#allocation2 + $0x10] sm:$0xff]
    %v106 = vld [vmem:[#allocation2 + $0x18] sm:$0xff]
    %v107 = vld [vmem:[#allocation2 + $0x20] sm:$0xff]
    %v108 = vld [vmem:[#allocation2 + $0x28] sm:$0xff]
    %v109 = vld [vmem:[#allocation2 + $0x30] sm:$0xff]
    %v110 = vld [vmem:[#allocation2 + $0x38] sm:$0xff]
    %v111 = vld [vmem:[#allocation2 + $0x40] sm:$0xff]
    %v112 = vld [vmem:[#allocation2 + $0x48] sm:$0xff]
    %v113 = vld [vmem:[#allocation2 + $0x50] sm:$0xff]
    %v114 = vld [vmem:[#allocation2 + $0x58] sm:$0xff]
    %v115 = vld [vmem:[#allocation2 + $0x60] sm:$0xff]
    %v116 = vld [vmem:[#allocation2 + $0x68] sm:$0xff]
    %v117 = vld [vmem:[#allocation2 + $0x70] sm:$0xff]
    %v118 = vld [vmem:[#allocation2 + $0x78] sm:$0xff]
    %v119 = vpack.c.bf16 %v104, %v103
    %v120 = vpack.c.bf16 %v106, %v105
    %v121 = vpack.c.bf16 %v108, %v107
    %v122 = vpack.c.bf16 %v110, %v109
    %v123 = vpack.c.bf16 %v112, %v111
    %v124 = vpack.c.bf16 %v114, %v113
    %v125 = vpack.c.bf16 %v116, %v115
    %v126 = vpack.c.bf16 %v118, %v117
    %v127 = vld [vmem:[#allocation5] sm:$0xff]
    %v128 = vld [vmem:[#allocation5 + $0x8] sm:$0xff]
    %v129 = vld [vmem:[#allocation5 + $0x10] sm:$0xff]
    %v130 = vld [vmem:[#allocation5 + $0x18] sm:$0xff]
    %v131 = vld [vmem:[#allocation5 + $0x20] sm:$0xff]
    %v132 = vld [vmem:[#allocation5 + $0x28] sm:$0xff]
    %v133 = vld [vmem:[#allocation5 + $0x30] sm:$0xff]
    %v134 = vld [vmem:[#allocation5 + $0x38] sm:$0xff]
    %v135 = vld [vmem:[#allocation5 + $0x40] sm:$0xff]
    %v136 = vld [vmem:[#allocation5 + $0x48] sm:$0xff]
    %v137 = vld [vmem:[#allocation5 + $0x50] sm:$0xff]
    %v138 = vld [vmem:[#allocation5 + $0x58] sm:$0xff]
    %v139 = vld [vmem:[#allocation5 + $0x60] sm:$0xff]
    %v140 = vld [vmem:[#allocation5 + $0x68] sm:$0xff]
    %v141 = vld [vmem:[#allocation5 + $0x70] sm:$0xff]
    %v142 = vld [vmem:[#allocation5 + $0x78] sm:$0xff]
    %v143 = vpack.c.bf16 %v128, %v127
    %v144 = vpack.c.bf16 %v130, %v129
    %v145 = vpack.c.bf16 %v132, %v131
    %v146 = vpack.c.bf16 %v134, %v133
    %v147 = vpack.c.bf16 %v136, %v135
    %v148 = vpack.c.bf16 %v138, %v137
    %v149 = vpack.c.bf16 %v140, %v139
    %v150 = vpack.c.bf16 %v142, %v141
    %v151 = vld [vmem:[#allocation7] sm:$0xf]
    %v152 = vld [vmem:[#allocation7 + $0x4] sm:$0xf]
    %v153 = vld [vmem:[#allocation7 + $0x8] sm:$0xf]
    %v154 = vld [vmem:[#allocation7 + $0xc] sm:$0xf]
    %v155 = vld [vmem:[#allocation8] sm:$0xf]
    %v156 = vld [vmem:[#allocation8 + $0x4] sm:$0xf]
    %v157 = vld [vmem:[#allocation8 + $0x8] sm:$0xf]
    %v158 = vld [vmem:[#allocation8 + $0xc] sm:$0xf]
    %v163 = vunpack.c.l.b16 %v155
    %v164 = vunpack.c.l.b16 %v156
    %v165 = vunpack.c.l.b16 %v157
    %v166 = vunpack.c.l.b16 %v158
    %v167 = vpack.c.b16 %v164, %v163
    %v168 = vpack.c.b16 %v166, %v165
    %vm171 = vcmask 261120
    %v173 = vsel %vm171, %v143, 0
    %v176 = vsel %vm171, %v144, 0
    %v179 = vsel %vm171, %v145, 0
    %v182 = vsel %vm171, %v146, 0
    %v185 = vsel %vm171, %v147, 0
    %v188 = vsel %vm171, %v148, 0
    %v191 = vsel %vm171, %v149, 0
    %v194 = vsel %vm171, %v150, 0
    %196 = vmatpush.bf16.msra.mxu0 0
    %197 = vmatpush.bf16.msra.mxu0 0
    %198 = vmatpush.bf16.msra.mxu0 0
    %199 = vmatpush.bf16.msra.mxu0 0
    %200 = vmatpush.bf16.msra.mxu0 0
    %201 = vmatpush.bf16.msra.mxu0 0
    %202 = vmatpush.bf16.msra.mxu0 %v168
    %203 = vmatpush.bf16.msra.mxu0 %v167
    %204 = vmatmul.bf16.gmra.mxu0 %v173
    %v205 = vpop.f32.mrf.mxu0
    %v206 = vadd.f32 0.0, %v205
    %v207 = vpop.f32.mrf.mxu0
    %v208 = vadd.f32 0.0, %v207
    %209 = vmatmul.bf16.gmra.mxu0 %v176
    %v210 = vpop.f32.mrf.mxu0
    %v211 = vadd.f32 0.0, %v210
    %v212 = vpop.f32.mrf.mxu0
    %v213 = vadd.f32 0.0, %v212
    %214 = vmatmul.bf16.gmra.mxu0 %v179
    %v215 = vpop.f32.mrf.mxu0
    %v216 = vadd.f32 0.0, %v215
    %v217 = vpop.f32.mrf.mxu0
    %v218 = vadd.f32 0.0, %v217
    %219 = vmatmul.bf16.gmra.mxu0 %v182
    %v220 = vpop.f32.mrf.mxu0
    %v221 = vadd.f32 0.0, %v220
    %v222 = vpop.f32.mrf.mxu0
    %v223 = vadd.f32 0.0, %v222
    %224 = vmatmul.bf16.gmra.mxu0 %v185
    %v225 = vpop.f32.mrf.mxu0
    %v226 = vadd.f32 0.0, %v225
    %v227 = vpop.f32.mrf.mxu0
    %v228 = vadd.f32 0.0, %v227
    %229 = vmatmul.bf16.gmra.mxu0 %v188
    %v230 = vpop.f32.mrf.mxu0
    %v231 = vadd.f32 0.0, %v230
    %v232 = vpop.f32.mrf.mxu0
    %v233 = vadd.f32 0.0, %v232
    %234 = vmatmul.bf16.gmra.mxu0 %v191
    %v235 = vpop.f32.mrf.mxu0
    %v236 = vadd.f32 0.0, %v235
    %v237 = vpop.f32.mrf.mxu0
    %v238 = vadd.f32 0.0, %v237
    %239 = vmatmul.bf16.gmra.mxu0 %v194
    %v240 = vpop.f32.mrf.mxu0
    %v241 = vadd.f32 0.0, %v240
    %v242 = vpop.f32.mrf.mxu0
    %v243 = vadd.f32 0.0, %v242
    %244 = vdwg.mxu0
    %v249 = vunpack.c.l.b16 %v151
    %v250 = vunpack.c.l.b16 %v152
    %v251 = vunpack.c.l.b16 %v153
    %v252 = vunpack.c.l.b16 %v154
    %v253 = vpack.c.b16 %v250, %v249
    %v254 = vpack.c.b16 %v252, %v251
    %v258 = vsel %vm171, %v119, 0
    %v261 = vsel %vm171, %v120, 0
    %v264 = vsel %vm171, %v121, 0
    %v267 = vsel %vm171, %v122, 0
    %v270 = vsel %vm171, %v123, 0
    %v273 = vsel %vm171, %v124, 0
    %v276 = vsel %vm171, %v125, 0
    %v279 = vsel %vm171, %v126, 0
    %281 = vmatpush.bf16.msra.mxu0 0
    %282 = vmatpush.bf16.msra.mxu0 0
    %283 = vmatpush.bf16.msra.mxu0 0
    %284 = vmatpush.bf16.msra.mxu0 0
    %285 = vmatpush.bf16.msra.mxu0 0
    %286 = vmatpush.bf16.msra.mxu0 0
    %287 = vmatpush.bf16.msra.mxu0 %v254
    %288 = vmatpush.bf16.msra.mxu0 %v253
    %289 = vmatmul.bf16.gmra.mxu0 %v258
    %v290 = vpop.f32.mrf.mxu0
    %v291 = vadd.f32 %v206, %v290
    %v292 = vpop.f32.mrf.mxu0
    %v293 = vadd.f32 %v208, %v292
    %294 = vmatmul.bf16.gmra.mxu0 %v261
    %v295 = vpop.f32.mrf.mxu0
    %v296 = vadd.f32 %v211, %v295
    %v297 = vpop.f32.mrf.mxu0
    %v298 = vadd.f32 %v213, %v297
    %299 = vmatmul.bf16.gmra.mxu0 %v264
    %v300 = vpop.f32.mrf.mxu0
    %v301 = vadd.f32 %v216, %v300
    %v302 = vpop.f32.mrf.mxu0
    %v303 = vadd.f32 %v218, %v302
    %304 = vmatmul.bf16.gmra.mxu0 %v267
    %v305 = vpop.f32.mrf.mxu0
    %v306 = vadd.f32 %v221, %v305
    %v307 = vpop.f32.mrf.mxu0
    %v308 = vadd.f32 %v223, %v307
    %309 = vmatmul.bf16.gmra.mxu0 %v270
    %v310 = vpop.f32.mrf.mxu0
    %v311 = vadd.f32 %v226, %v310
    %v312 = vpop.f32.mrf.mxu0
    %v313 = vadd.f32 %v228, %v312
    %314 = vmatmul.bf16.gmra.mxu0 %v273
    %v315 = vpop.f32.mrf.mxu0
    %v316 = vadd.f32 %v231, %v315
    %v317 = vpop.f32.mrf.mxu0
    %v318 = vadd.f32 %v233, %v317
    %319 = vmatmul.bf16.gmra.mxu0 %v276
    %v320 = vpop.f32.mrf.mxu0
    %v321 = vadd.f32 %v236, %v320
    %v322 = vpop.f32.mrf.mxu0
    %v323 = vadd.f32 %v238, %v322
    %324 = vmatmul.bf16.gmra.mxu0 %v279
    %v325 = vpop.f32.mrf.mxu0
    %v326 = vadd.f32 %v241, %v325
    %v327 = vpop.f32.mrf.mxu0
    %v328 = vadd.f32 %v243, %v327
    %329 = vdwg.mxu0
    %v330 = vld [vmem:[%s5] sm:$0x1]
    %v332 = vperm.slane %v330, 0
    %v334 = vadd.f32 %v291, %v332
    %v335 = vadd.f32 %v293, %v332
    %v336 = vadd.f32 %v296, %v332
    %v337 = vadd.f32 %v298, %v332
    %v338 = vadd.f32 %v301, %v332
    %v339 = vadd.f32 %v303, %v332
    %v340 = vadd.f32 %v306, %v332
    %v341 = vadd.f32 %v308, %v332
    %v342 = vadd.f32 %v311, %v332
    %v343 = vadd.f32 %v313, %v332
    %v344 = vadd.f32 %v316, %v332
    %v345 = vadd.f32 %v318, %v332
    %v346 = vadd.f32 %v321, %v332
    %v347 = vadd.f32 %v323, %v332
    %v348 = vadd.f32 %v326, %v332
    %v349 = vadd.f32 %v328, %v332
    %v350 = vmax.f32 %v334, 0.0
    %v351 = vmax.f32 %v335, 0.0
    %v352 = vmax.f32 %v336, 0.0
    %v353 = vmax.f32 %v337, 0.0
    %v354 = vmax.f32 %v338, 0.0
    %v355 = vmax.f32 %v339, 0.0
    %v356 = vmax.f32 %v340, 0.0
    %v357 = vmax.f32 %v341, 0.0
    %v358 = vmax.f32 %v342, 0.0
    %v359 = vmax.f32 %v343, 0.0
    %v360 = vmax.f32 %v344, 0.0
    %v361 = vmax.f32 %v345, 0.0
    %v362 = vmax.f32 %v346, 0.0
    %v363 = vmax.f32 %v347, 0.0
    %v364 = vmax.f32 %v348, 0.0
    %v365 = vmax.f32 %v349, 0.0
    %v366 = vpack.c.bf16 %v350, %v350
    %v367 = vpack.c.bf16 %v351, %v351
    %v368 = vpack.c.bf16 %v352, %v352
    %v369 = vpack.c.bf16 %v353, %v353
    %v370 = vpack.c.bf16 %v354, %v354
    %v371 = vpack.c.bf16 %v355, %v355
    %v372 = vpack.c.bf16 %v356, %v356
    %v373 = vpack.c.bf16 %v357, %v357
    %v374 = vpack.c.bf16 %v358, %v358
    %v375 = vpack.c.bf16 %v359, %v359
    %v376 = vpack.c.bf16 %v360, %v360
    %v377 = vpack.c.bf16 %v361, %v361
    %v378 = vpack.c.bf16 %v362, %v362
    %v379 = vpack.c.bf16 %v363, %v363
    %v380 = vpack.c.bf16 %v364, %v364
    %v381 = vpack.c.bf16 %v365, %v365
    %v382 = vld [vmem:[#allocation10] sm:$0xf]
    %v383 = vld [vmem:[#allocation10 + $0x4] sm:$0xf]
    %v384 = vld [vmem:[#allocation10 + $0x8] sm:$0xf]
    %v385 = vld [vmem:[#allocation10 + $0xc] sm:$0xf]
    %v388 = vunpack.c.l.b16 %v366
    %v389 = vunpack.c.l.b16 %v367
    %v390 = vpack.c.b16 %v389, %v388
    %391 = vrot.lane.b32.xlu0 %v390, 96
    %v392 = vpop.permute.xlu0 %391
    %vm393 = vcmask 64512
    %v395 = vsel %vm393, %v390, 0
    %v398 = vsel %vm393, %v392, 0
    %400 = vmatpush.bf16.xpose.msra.mxu0 0
    %401 = vmatpush.bf16.xpose.msra.mxu0 0
    %402 = vmatpush.bf16.xpose.msra.mxu0 0
    %403 = vmatpush.bf16.xpose.msra.mxu0 0
    %404 = vmatpush.bf16.xpose.msra.mxu0 0
    %405 = vmatpush.bf16.xpose.msra.mxu0 0
    %406 = vmatpush.bf16.xpose.msra.mxu0 0
    %407 = vmatpush.bf16.xpose.msra.mxu0 %v398
    %408 = vmatmul.bf16.gmra.mxu0 %v395
    %v409 = vpop.f32.mrf.mxu0
    %v410 = vadd.f32 0.0, %v409
    %v411 = vpop.f32.mrf.mxu0
    %v412 = vadd.f32 0.0, %v411
    %413 = vdwg.mxu0
    %v416 = vunpack.c.l.b16 %v368
    %v417 = vunpack.c.l.b16 %v369
    %v418 = vpack.c.b16 %v417, %v416
    %419 = vrot.lane.b32.xlu0 %v418, 96
    %v420 = vpop.permute.xlu0 %419
    %v422 = vsel %vm393, %v418, 0
    %v425 = vsel %vm393, %v420, 0
    %427 = vmatpush.bf16.xpose.msra.mxu0 0
    %428 = vmatpush.bf16.xpose.msra.mxu0 0
    %429 = vmatpush.bf16.xpose.msra.mxu0 0
    %430 = vmatpush.bf16.xpose.msra.mxu0 0
    %431 = vmatpush.bf16.xpose.msra.mxu0 0
    %432 = vmatpush.bf16.xpose.msra.mxu0 0
    %433 = vmatpush.bf16.xpose.msra.mxu0 0
    %434 = vmatpush.bf16.xpose.msra.mxu0 %v425
    %435 = vmatmul.bf16.gmra.mxu0 %v422
    %v436 = vpop.f32.mrf.mxu0
    %v437 = vadd.f32 0.0, %v436
    %v438 = vpop.f32.mrf.mxu0
    %v439 = vadd.f32 0.0, %v438
    %440 = vdwg.mxu0
    %v443 = vunpack.c.l.b16 %v370
    %v444 = vunpack.c.l.b16 %v371
    %v445 = vpack.c.b16 %v444, %v443
    %446 = vrot.lane.b32.xlu0 %v445, 96
    %v447 = vpop.permute.xlu0 %446
    %v449 = vsel %vm393, %v445, 0
    %v452 = vsel %vm393, %v447, 0
    %454 = vmatpush.bf16.xpose.msra.mxu0 0
    %455 = vmatpush.bf16.xpose.msra.mxu0 0
    %456 = vmatpush.bf16.xpose.msra.mxu0 0
    %457 = vmatpush.bf16.xpose.msra.mxu0 0
    %458 = vmatpush.bf16.xpose.msra.mxu0 0
    %459 = vmatpush.bf16.xpose.msra.mxu0 0
    %460 = vmatpush.bf16.xpose.msra.mxu0 0
    %461 = vmatpush.bf16.xpose.msra.mxu0 %v452
    %462 = vmatmul.bf16.gmra.mxu0 %v449
    %v463 = vpop.f32.mrf.mxu0
    %v464 = vadd.f32 0.0, %v463
    %v465 = vpop.f32.mrf.mxu0
    %v466 = vadd.f32 0.0, %v465
    %467 = vdwg.mxu0
    %v470 = vunpack.c.l.b16 %v372
    %v471 = vunpack.c.l.b16 %v373
    %v472 = vpack.c.b16 %v471, %v470
    %473 = vrot.lane.b32.xlu0 %v472, 96
    %v474 = vpop.permute.xlu0 %473
    %v476 = vsel %vm393, %v472, 0
    %v479 = vsel %vm393, %v474, 0
    %481 = vmatpush.bf16.xpose.msra.mxu0 0
    %482 = vmatpush.bf16.xpose.msra.mxu0 0
    %483 = vmatpush.bf16.xpose.msra.mxu0 0
    %484 = vmatpush.bf16.xpose.msra.mxu0 0
    %485 = vmatpush.bf16.xpose.msra.mxu0 0
    %486 = vmatpush.bf16.xpose.msra.mxu0 0
    %487 = vmatpush.bf16.xpose.msra.mxu0 0
    %488 = vmatpush.bf16.xpose.msra.mxu0 %v479
    %489 = vmatmul.bf16.gmra.mxu0 %v476
    %v490 = vpop.f32.mrf.mxu0
    %v491 = vadd.f32 0.0, %v490
    %v492 = vpop.f32.mrf.mxu0
    %v493 = vadd.f32 0.0, %v492
    %494 = vdwg.mxu0
    %v497 = vunpack.c.l.b16 %v374
    %v498 = vunpack.c.l.b16 %v375
    %v499 = vpack.c.b16 %v498, %v497
    %500 = vrot.lane.b32.xlu0 %v499, 96
    %v501 = vpop.permute.xlu0 %500
    %v503 = vsel %vm393, %v499, 0
    %v506 = vsel %vm393, %v501, 0
    %508 = vmatpush.bf16.xpose.msra.mxu0 0
    %509 = vmatpush.bf16.xpose.msra.mxu0 0
    %510 = vmatpush.bf16.xpose.msra.mxu0 0
    %511 = vmatpush.bf16.xpose.msra.mxu0 0
    %512 = vmatpush.bf16.xpose.msra.mxu0 0
    %513 = vmatpush.bf16.xpose.msra.mxu0 0
    %514 = vmatpush.bf16.xpose.msra.mxu0 0
    %515 = vmatpush.bf16.xpose.msra.mxu0 %v506
    %516 = vmatmul.bf16.gmra.mxu0 %v503
    %v517 = vpop.f32.mrf.mxu0
    %v518 = vadd.f32 0.0, %v517
    %v519 = vpop.f32.mrf.mxu0
    %v520 = vadd.f32 0.0, %v519
    %521 = vdwg.mxu0
    %v524 = vunpack.c.l.b16 %v376
    %v525 = vunpack.c.l.b16 %v377
    %v526 = vpack.c.b16 %v525, %v524
    %527 = vrot.lane.b32.xlu0 %v526, 96
    %v528 = vpop.permute.xlu0 %527
    %v530 = vsel %vm393, %v526, 0
    %v533 = vsel %vm393, %v528, 0
    %535 = vmatpush.bf16.xpose.msra.mxu0 0
    %536 = vmatpush.bf16.xpose.msra.mxu0 0
    %537 = vmatpush.bf16.xpose.msra.mxu0 0
    %538 = vmatpush.bf16.xpose.msra.mxu0 0
    %539 = vmatpush.bf16.xpose.msra.mxu0 0
    %540 = vmatpush.bf16.xpose.msra.mxu0 0
    %541 = vmatpush.bf16.xpose.msra.mxu0 0
    %542 = vmatpush.bf16.xpose.msra.mxu0 %v533
    %543 = vmatmul.bf16.gmra.mxu0 %v530
    %v544 = vpop.f32.mrf.mxu0
    %v545 = vadd.f32 0.0, %v544
    %v546 = vpop.f32.mrf.mxu0
    %v547 = vadd.f32 0.0, %v546
    %548 = vdwg.mxu0
    %v551 = vunpack.c.l.b16 %v378
    %v552 = vunpack.c.l.b16 %v379
    %v553 = vpack.c.b16 %v552, %v551
    %554 = vrot.lane.b32.xlu0 %v553, 96
    %v555 = vpop.permute.xlu0 %554
    %v557 = vsel %vm393, %v553, 0
    %v560 = vsel %vm393, %v555, 0
    %562 = vmatpush.bf16.xpose.msra.mxu0 0
    %563 = vmatpush.bf16.xpose.msra.mxu0 0
    %564 = vmatpush.bf16.xpose.msra.mxu0 0
    %565 = vmatpush.bf16.xpose.msra.mxu0 0
    %566 = vmatpush.bf16.xpose.msra.mxu0 0
    %567 = vmatpush.bf16.xpose.msra.mxu0 0
    %568 = vmatpush.bf16.xpose.msra.mxu0 0
    %569 = vmatpush.bf16.xpose.msra.mxu0 %v560
    %570 = vmatmul.bf16.gmra.mxu0 %v557
    %v571 = vpop.f32.mrf.mxu0
    %v572 = vadd.f32 0.0, %v571
    %v573 = vpop.f32.mrf.mxu0
    %v574 = vadd.f32 0.0, %v573
    %575 = vdwg.mxu0
    %v578 = vunpack.c.l.b16 %v380
    %v579 = vunpack.c.l.b16 %v381
    %v580 = vpack.c.b16 %v579, %v578
    %581 = vrot.lane.b32.xlu0 %v580, 96
    %v582 = vpop.permute.xlu0 %581
    %v584 = vsel %vm393, %v580, 0
    %v587 = vsel %vm393, %v582, 0
    %589 = vmatpush.bf16.xpose.msra.mxu0 0
    %590 = vmatpush.bf16.xpose.msra.mxu0 0
    %591 = vmatpush.bf16.xpose.msra.mxu0 0
    %592 = vmatpush.bf16.xpose.msra.mxu0 0
    %593 = vmatpush.bf16.xpose.msra.mxu0 0
    %594 = vmatpush.bf16.xpose.msra.mxu0 0
    %595 = vmatpush.bf16.xpose.msra.mxu0 0
    %596 = vmatpush.bf16.xpose.msra.mxu0 %v587
    %597 = vmatmul.bf16.gmra.mxu0 %v584
    %v598 = vpop.f32.mrf.mxu0
    %v599 = vadd.f32 0.0, %v598
    %v600 = vpop.f32.mrf.mxu0
    %v601 = vadd.f32 0.0, %v600
    %602 = vdwg.mxu0
    %vm603 = vcmask 130048
    %v604 = vsel %vm603, %v410, -inf
    %605 = vmax.xlane.f32.xlu0 %v604
    %v606 = vpop.xlane.xlu0 %605
    %v607 = vsel %vm603, %v412, -inf
    %608 = vmax.xlane.f32.xlu0 %v607
    %v609 = vpop.xlane.xlu0 %608
    %v610 = vsel %vm603, %v437, -inf
    %611 = vmax.xlane.f32.xlu0 %v610
    %v612 = vpop.xlane.xlu0 %611
    %v613 = vsel %vm603, %v439, -inf
    %614 = vmax.xlane.f32.xlu0 %v613
    %v615 = vpop.xlane.xlu0 %614
    %v616 = vsel %vm603, %v464, -inf
    %617 = vmax.xlane.f32.xlu0 %v616
    %v618 = vpop.xlane.xlu0 %617
    %v619 = vsel %vm603, %v466, -inf
    %620 = vmax.xlane.f32.xlu0 %v619
    %v621 = vpop.xlane.xlu0 %620
    %v622 = vsel %vm603, %v491, -inf
    %623 = vmax.xlane.f32.xlu0 %v622
    %v624 = vpop.xlane.xlu0 %623
    %v625 = vsel %vm603, %v493, -inf
    %626 = vmax.xlane.f32.xlu0 %v625
    %v627 = vpop.xlane.xlu0 %626
    %v628 = vsel %vm603, %v518, -inf
    %629 = vmax.xlane.f32.xlu0 %v628
    %v630 = vpop.xlane.xlu0 %629
    %v631 = vsel %vm603, %v520, -inf
    %632 = vmax.xlane.f32.xlu0 %v631
    %v633 = vpop.xlane.xlu0 %632
    %v634 = vsel %vm603, %v545, -inf
    %635 = vmax.xlane.f32.xlu0 %v634
    %v636 = vpop.xlane.xlu0 %635
    %v637 = vsel %vm603, %v547, -inf
    %638 = vmax.xlane.f32.xlu0 %v637
    %v639 = vpop.xlane.xlu0 %638
    %v640 = vsel %vm603, %v572, -inf
    %641 = vmax.xlane.f32.xlu0 %v640
    %v642 = vpop.xlane.xlu0 %641
    %v643 = vsel %vm603, %v574, -inf
    %644 = vmax.xlane.f32.xlu0 %v643
    %v645 = vpop.xlane.xlu0 %644
    %v646 = vsel %vm603, %v599, -inf
    %647 = vmax.xlane.f32.xlu0 %v646
    %v648 = vpop.xlane.xlu0 %647
    %v649 = vsel %vm603, %v601, -inf
    %650 = vmax.xlane.f32.xlu0 %v649
    %v651 = vpop.xlane.xlu0 %650
    %v652 = vsub.f32 %v410, %v606
    %v653 = vsub.f32 %v412, %v609
    %v654 = vsub.f32 %v437, %v612
    %v655 = vsub.f32 %v439, %v615
    %v656 = vsub.f32 %v464, %v618
    %v657 = vsub.f32 %v466, %v621
    %v658 = vsub.f32 %v491, %v624
    %v659 = vsub.f32 %v493, %v627
    %v660 = vsub.f32 %v518, %v630
    %v661 = vsub.f32 %v520, %v633
    %v662 = vsub.f32 %v545, %v636
    %v663 = vsub.f32 %v547, %v639
    %v664 = vsub.f32 %v572, %v642
    %v665 = vsub.f32 %v574, %v645
    %v666 = vsub.f32 %v599, %v648
    %v667 = vsub.f32 %v601, %v651
    %v668 = vmul.f32 %v652, 1.442695
    %v669 = vpow.pop %v668
    %v670 = vmul.f32 %v653, 1.442695
    %v671 = vpow.pop %v670
    %v672 = vmul.f32 %v654, 1.442695
    %v673 = vpow.pop %v672
    %v674 = vmul.f32 %v655, 1.442695
    %v675 = vpow.pop %v674
    %v676 = vmul.f32 %v656, 1.442695
    %v677 = vpow.pop %v676
    %v678 = vmul.f32 %v657, 1.442695
    %v679 = vpow.pop %v678
    %v680 = vmul.f32 %v658, 1.442695
    %v681 = vpow.pop %v680
    %v682 = vmul.f32 %v659, 1.442695
    %v683 = vpow.pop %v682
    %v684 = vmul.f32 %v660, 1.442695
    %v685 = vpow.pop %v684
    %v686 = vmul.f32 %v661, 1.442695
    %v687 = vpow.pop %v686
    %v688 = vmul.f32 %v662, 1.442695
    %v689 = vpow.pop %v688
    %v690 = vmul.f32 %v663, 1.442695
    %v691 = vpow.pop %v690
    %v692 = vmul.f32 %v664, 1.442695
    %v693 = vpow.pop %v692
    %v694 = vmul.f32 %v665, 1.442695
    %v695 = vpow.pop %v694
    %v696 = vmul.f32 %v666, 1.442695
    %v697 = vpow.pop %v696
    %v698 = vmul.f32 %v667, 1.442695
    %v699 = vpow.pop %v698
    %v700 = vsel %vm603, %v669, 0.0
    %701 = vadd.xlane.f32.xlu0 %v700
    %v702 = vpop.xlane.xlu0 %701
    %v703 = vsel %vm603, %v671, 0.0
    %704 = vadd.xlane.f32.xlu0 %v703
    %v705 = vpop.xlane.xlu0 %704
    %v706 = vsel %vm603, %v673, 0.0
    %707 = vadd.xlane.f32.xlu0 %v706
    %v708 = vpop.xlane.xlu0 %707
    %v709 = vsel %vm603, %v675, 0.0
    %710 = vadd.xlane.f32.xlu0 %v709
    %v711 = vpop.xlane.xlu0 %710
    %v712 = vsel %vm603, %v677, 0.0
    %713 = vadd.xlane.f32.xlu0 %v712
    %v714 = vpop.xlane.xlu0 %713
    %v715 = vsel %vm603, %v679, 0.0
    %716 = vadd.xlane.f32.xlu0 %v715
    %v717 = vpop.xlane.xlu0 %716
    %v718 = vsel %vm603, %v681, 0.0
    %719 = vadd.xlane.f32.xlu0 %v718
    %v720 = vpop.xlane.xlu0 %719
    %v721 = vsel %vm603, %v683, 0.0
    %722 = vadd.xlane.f32.xlu0 %v721
    %v723 = vpop.xlane.xlu0 %722
    %v724 = vsel %vm603, %v685, 0.0
    %725 = vadd.xlane.f32.xlu0 %v724
    %v726 = vpop.xlane.xlu0 %725
    %v727 = vsel %vm603, %v687, 0.0
    %728 = vadd.xlane.f32.xlu0 %v727
    %v729 = vpop.xlane.xlu0 %728
    %v730 = vsel %vm603, %v689, 0.0
    %731 = vadd.xlane.f32.xlu0 %v730
    %v732 = vpop.xlane.xlu0 %731
    %v733 = vsel %vm603, %v691, 0.0
    %734 = vadd.xlane.f32.xlu0 %v733
    %v735 = vpop.xlane.xlu0 %734
    %v736 = vsel %vm603, %v693, 0.0
    %737 = vadd.xlane.f32.xlu0 %v736
    %v738 = vpop.xlane.xlu0 %737
    %v739 = vsel %vm603, %v695, 0.0
    %740 = vadd.xlane.f32.xlu0 %v739
    %v741 = vpop.xlane.xlu0 %740
    %v742 = vsel %vm603, %v697, 0.0
    %743 = vadd.xlane.f32.xlu0 %v742
    %v744 = vpop.xlane.xlu0 %743
    %v745 = vsel %vm603, %v699, 0.0
    %746 = vadd.xlane.f32.xlu0 %v745
    %v747 = vpop.xlane.xlu0 %746
    %v748 = vrcp.pop %v702
    %v749 = vrcp.pop %v705
    %v750 = vrcp.pop %v708
    %v751 = vrcp.pop %v711
    %v752 = vrcp.pop %v714
    %v753 = vrcp.pop %v717
    %v754 = vrcp.pop %v720
    %v755 = vrcp.pop %v723
    %v756 = vrcp.pop %v726
    %v757 = vrcp.pop %v729
    %v758 = vrcp.pop %v732
    %v759 = vrcp.pop %v735
    %v760 = vrcp.pop %v738
    %v761 = vrcp.pop %v741
    %v762 = vrcp.pop %v744
    %v763 = vrcp.pop %v747
    %v764 = vmul.f32 %v669, %v748
    %v765 = vmul.f32 %v671, %v749
    %v766 = vmul.f32 %v673, %v750
    %v767 = vmul.f32 %v675, %v751
    %v768 = vmul.f32 %v677, %v752
    %v769 = vmul.f32 %v679, %v753
    %v770 = vmul.f32 %v681, %v754
    %v771 = vmul.f32 %v683, %v755
    %v772 = vmul.f32 %v685, %v756
    %v773 = vmul.f32 %v687, %v757
    %v774 = vmul.f32 %v689, %v758
    %v775 = vmul.f32 %v691, %v759
    %v776 = vmul.f32 %v693, %v760
    %v777 = vmul.f32 %v695, %v761
    %v778 = vmul.f32 %v697, %v762
    %v779 = vmul.f32 %v699, %v763
    %v780 = vpack.c.bf16 %v764, %v764
    %v781 = vpack.c.bf16 %v765, %v765
    %v782 = vpack.c.bf16 %v766, %v766
    %v783 = vpack.c.bf16 %v767, %v767
    %v784 = vpack.c.bf16 %v768, %v768
    %v785 = vpack.c.bf16 %v769, %v769
    %v786 = vpack.c.bf16 %v770, %v770
    %v787 = vpack.c.bf16 %v771, %v771
    %v788 = vpack.c.bf16 %v772, %v772
    %v789 = vpack.c.bf16 %v773, %v773
    %v790 = vpack.c.bf16 %v774, %v774
    %v791 = vpack.c.bf16 %v775, %v775
    %v792 = vpack.c.bf16 %v776, %v776
    %v793 = vpack.c.bf16 %v777, %v777
    %v794 = vpack.c.bf16 %v778, %v778
    %v795 = vpack.c.bf16 %v779, %v779
    %v798 = vunpack.c.l.b16 %v780
    %v799 = vunpack.c.l.b16 %v781
    %v800 = vpack.c.b16 %v799, %v798
    %801 = vrot.lane.b32.xlu0 %v390, 64
    %v802 = vpop.permute.xlu0 %801
    %v805 = vsel %vm603, %v800, 0
    %807 = vmatpush.bf16.msra.mxu0 0
    %808 = vmatpush.bf16.msra.mxu0 0
    %809 = vmatpush.bf16.msra.mxu0 0
    %810 = vmatpush.bf16.msra.mxu0 0
    %811 = vmatpush.bf16.msra.mxu0 0
    %812 = vmatpush.bf16.msra.mxu0 0
    %813 = vmatpush.bf16.msra.mxu0 0
    %814 = vmatpush.bf16.msra.mxu0 %v802
    %815 = vmatmul.bf16.gmra.mxu0 %v805
    %v816 = vpop.f32.mrf.mxu0
    %v817 = vadd.f32 0.0, %v816
    %v818 = vpop.f32.mrf.mxu0
    %v819 = vadd.f32 0.0, %v818
    %820 = vdwg.mxu0
    %v823 = vunpack.c.l.b16 %v782
    %v824 = vunpack.c.l.b16 %v783
    %v825 = vpack.c.b16 %v824, %v823
    %826 = vrot.lane.b32.xlu0 %v418, 64
    %v827 = vpop.permute.xlu0 %826
    %v830 = vsel %vm603, %v825, 0
    %832 = vmatpush.bf16.msra.mxu0 0
    %833 = vmatpush.bf16.msra.mxu0 0
    %834 = vmatpush.bf16.msra.mxu0 0
    %835 = vmatpush.bf16.msra.mxu0 0
    %836 = vmatpush.bf16.msra.mxu0 0
    %837 = vmatpush.bf16.msra.mxu0 0
    %838 = vmatpush.bf16.msra.mxu0 0
    %839 = vmatpush.bf16.msra.mxu0 %v827
    %840 = vmatmul.bf16.gmra.mxu0 %v830
    %v841 = vpop.f32.mrf.mxu0
    %v842 = vadd.f32 0.0, %v841
    %v843 = vpop.f32.mrf.mxu0
    %v844 = vadd.f32 0.0, %v843
    %845 = vdwg.mxu0
    %v848 = vunpack.c.l.b16 %v784
    %v849 = vunpack.c.l.b16 %v785
    %v850 = vpack.c.b16 %v849, %v848
    %851 = vrot.lane.b32.xlu0 %v445, 64
    %v852 = vpop.permute.xlu0 %851
    %v855 = vsel %vm603, %v850, 0
    %857 = vmatpush.bf16.msra.mxu0 0
    %858 = vmatpush.bf16.msra.mxu0 0
    %859 = vmatpush.bf16.msra.mxu0 0
    %860 = vmatpush.bf16.msra.mxu0 0
    %861 = vmatpush.bf16.msra.mxu0 0
    %862 = vmatpush.bf16.msra.mxu0 0
    %863 = vmatpush.bf16.msra.mxu0 0
    %864 = vmatpush.bf16.msra.mxu0 %v852
    %865 = vmatmul.bf16.gmra.mxu0 %v855
    %v866 = vpop.f32.mrf.mxu0
    %v867 = vadd.f32 0.0, %v866
    %v868 = vpop.f32.mrf.mxu0
    %v869 = vadd.f32 0.0, %v868
    %870 = vdwg.mxu0
    %v873 = vunpack.c.l.b16 %v786
    %v874 = vunpack.c.l.b16 %v787
    %v875 = vpack.c.b16 %v874, %v873
    %876 = vrot.lane.b32.xlu0 %v472, 64
    %v877 = vpop.permute.xlu0 %876
    %v880 = vsel %vm603, %v875, 0
    %882 = vmatpush.bf16.msra.mxu0 0
    %883 = vmatpush.bf16.msra.mxu0 0
    %884 = vmatpush.bf16.msra.mxu0 0
    %885 = vmatpush.bf16.msra.mxu0 0
    %886 = vmatpush.bf16.msra.mxu0 0
    %887 = vmatpush.bf16.msra.mxu0 0
    %888 = vmatpush.bf16.msra.mxu0 0
    %889 = vmatpush.bf16.msra.mxu0 %v877
    %890 = vmatmul.bf16.gmra.mxu0 %v880
    %v891 = vpop.f32.mrf.mxu0
    %v892 = vadd.f32 0.0, %v891
    %v893 = vpop.f32.mrf.mxu0
    %v894 = vadd.f32 0.0, %v893
    %895 = vdwg.mxu0
    %v898 = vunpack.c.l.b16 %v788
    %v899 = vunpack.c.l.b16 %v789
    %v900 = vpack.c.b16 %v899, %v898
    %901 = vrot.lane.b32.xlu0 %v499, 64
    %v902 = vpop.permute.xlu0 %901
    %v905 = vsel %vm603, %v900, 0
    %907 = vmatpush.bf16.msra.mxu0 0
    %908 = vmatpush.bf16.msra.mxu0 0
    %909 = vmatpush.bf16.msra.mxu0 0
    %910 = vmatpush.bf16.msra.mxu0 0
    %911 = vmatpush.bf16.msra.mxu0 0
    %912 = vmatpush.bf16.msra.mxu0 0
    %913 = vmatpush.bf16.msra.mxu0 0
    %914 = vmatpush.bf16.msra.mxu0 %v902
    %915 = vmatmul.bf16.gmra.mxu0 %v905
    %v916 = vpop.f32.mrf.mxu0
    %v917 = vadd.f32 0.0, %v916
    %v918 = vpop.f32.mrf.mxu0
    %v919 = vadd.f32 0.0, %v918
    %920 = vdwg.mxu0
    %v923 = vunpack.c.l.b16 %v790
    %v924 = vunpack.c.l.b16 %v791
    %v925 = vpack.c.b16 %v924, %v923
    %926 = vrot.lane.b32.xlu0 %v526, 64
    %v927 = vpop.permute.xlu0 %926
    %v930 = vsel %vm603, %v925, 0
    %932 = vmatpush.bf16.msra.mxu0 0
    %933 = vmatpush.bf16.msra.mxu0 0
    %934 = vmatpush.bf16.msra.mxu0 0
    %935 = vmatpush.bf16.msra.mxu0 0
    %936 = vmatpush.bf16.msra.mxu0 0
    %937 = vmatpush.bf16.msra.mxu0 0
    %938 = vmatpush.bf16.msra.mxu0 0
    %939 = vmatpush.bf16.msra.mxu0 %v927
    %940 = vmatmul.bf16.gmra.mxu0 %v930
    %v941 = vpop.f32.mrf.mxu0
    %v942 = vadd.f32 0.0, %v941
    %v943 = vpop.f32.mrf.mxu0
    %v944 = vadd.f32 0.0, %v943
    %945 = vdwg.mxu0
    %v948 = vunpack.c.l.b16 %v792
    %v949 = vunpack.c.l.b16 %v793
    %v950 = vpack.c.b16 %v949, %v948
    %951 = vrot.lane.b32.xlu0 %v553, 64
    %v952 = vpop.permute.xlu0 %951
    %v955 = vsel %vm603, %v950, 0
    %957 = vmatpush.bf16.msra.mxu0 0
    %958 = vmatpush.bf16.msra.mxu0 0
    %959 = vmatpush.bf16.msra.mxu0 0
    %960 = vmatpush.bf16.msra.mxu0 0
    %961 = vmatpush.bf16.msra.mxu0 0
    %962 = vmatpush.bf16.msra.mxu0 0
    %963 = vmatpush.bf16.msra.mxu0 0
    %964 = vmatpush.bf16.msra.mxu0 %v952
    %965 = vmatmul.bf16.gmra.mxu0 %v955
    %v966 = vpop.f32.mrf.mxu0
    %v967 = vadd.f32 0.0, %v966
    %v968 = vpop.f32.mrf.mxu0
    %v969 = vadd.f32 0.0, %v968
    %970 = vdwg.mxu0
    %v973 = vunpack.c.l.b16 %v794
    %v974 = vunpack.c.l.b16 %v795
    %v975 = vpack.c.b16 %v974, %v973
    %976 = vrot.lane.b32.xlu0 %v580, 64
    %v977 = vpop.permute.xlu0 %976
    %v980 = vsel %vm603, %v975, 0
    %982 = vmatpush.bf16.msra.mxu0 0
    %983 = vmatpush.bf16.msra.mxu0 0
    %984 = vmatpush.bf16.msra.mxu0 0
    %985 = vmatpush.bf16.msra.mxu0 0
    %986 = vmatpush.bf16.msra.mxu0 0
    %987 = vmatpush.bf16.msra.mxu0 0
    %988 = vmatpush.bf16.msra.mxu0 0
    %989 = vmatpush.bf16.msra.mxu0 %v977
    %990 = vmatmul.bf16.gmra.mxu0 %v980
    %v991 = vpop.f32.mrf.mxu0
    %v992 = vadd.f32 0.0, %v991
    %v993 = vpop.f32.mrf.mxu0
    %v994 = vadd.f32 0.0, %v993
    %995 = vdwg.mxu0
    %v996 = vpack.c.bf16 %v819, %v817
    %v997 = vpack.c.bf16 %v844, %v842
    %v998 = vpack.c.bf16 %v869, %v867
    %v999 = vpack.c.bf16 %v894, %v892
    %v1000 = vpack.c.bf16 %v919, %v917
    %v1001 = vpack.c.bf16 %v944, %v942
    %v1002 = vpack.c.bf16 %v969, %v967
    %v1003 = vpack.c.bf16 %v994, %v992
    %1004 = vrot.lane.b32.xlu0 %v390, 120
    %v1005 = vpop.permute.xlu0 %1004
    %1006 = vrot.lane.b32.xlu0 %v390, 88
    %v1007 = vpop.permute.xlu0 %1006
    %v1009 = vsel %vm393, %v1005, 0
    %v1012 = vsel %vm393, %v1007, 0
    %1014 = vmatpush.bf16.xpose.msra.mxu0 0
    %1015 = vmatpush.bf16.xpose.msra.mxu0 0
    %1016 = vmatpush.bf16.xpose.msra.mxu0 0
    %1017 = vmatpush.bf16.xpose.msra.mxu0 0
    %1018 = vmatpush.bf16.xpose.msra.mxu0 0
    %1019 = vmatpush.bf16.xpose.msra.mxu0 0
    %1020 = vmatpush.bf16.xpose.msra.mxu0 0
    %1021 = vmatpush.bf16.xpose.msra.mxu0 %v1012
    %1022 = vmatmul.bf16.gmra.mxu0 %v1009
    %v1023 = vpop.f32.mrf.mxu0
    %v1024 = vadd.f32 0.0, %v1023
    %v1025 = vpop.f32.mrf.mxu0
    %v1026 = vadd.f32 0.0, %v1025
    %1027 = vdwg.mxu0
    %1028 = vrot.lane.b32.xlu0 %v418, 120
    %v1029 = vpop.permute.xlu0 %1028
    %1030 = vrot.lane.b32.xlu0 %v418, 88
    %v1031 = vpop.permute.xlu0 %1030
    %v1033 = vsel %vm393, %v1029, 0
    %v1036 = vsel %vm393, %v1031, 0
    %1038 = vmatpush.bf16.xpose.msra.mxu0 0
    %1039 = vmatpush.bf16.xpose.msra.mxu0 0
    %1040 = vmatpush.bf16.xpose.msra.mxu0 0
    %1041 = vmatpush.bf16.xpose.msra.mxu0 0
    %1042 = vmatpush.bf16.xpose.msra.mxu0 0
    %1043 = vmatpush.bf16.xpose.msra.mxu0 0
    %1044 = vmatpush.bf16.xpose.msra.mxu0 0
    %1045 = vmatpush.bf16.xpose.msra.mxu0 %v1036
    %1046 = vmatmul.bf16.gmra.mxu0 %v1033
    %v1047 = vpop.f32.mrf.mxu0
    %v1048 = vadd.f32 0.0, %v1047
    %v1049 = vpop.f32.mrf.mxu0
    %v1050 = vadd.f32 0.0, %v1049
    %1051 = vdwg.mxu0
    %1052 = vrot.lane.b32.xlu0 %v445, 120
    %v1053 = vpop.permute.xlu0 %1052
    %1054 = vrot.lane.b32.xlu0 %v445, 88
    %v1055 = vpop.permute.xlu0 %1054
    %v1057 = vsel %vm393, %v1053, 0
    %v1060 = vsel %vm393, %v1055, 0
    %1062 = vmatpush.bf16.xpose.msra.mxu0 0
    %1063 = vmatpush.bf16.xpose.msra.mxu0 0
    %1064 = vmatpush.bf16.xpose.msra.mxu0 0
    %1065 = vmatpush.bf16.xpose.msra.mxu0 0
    %1066 = vmatpush.bf16.xpose.msra.mxu0 0
    %1067 = vmatpush.bf16.xpose.msra.mxu0 0
    %1068 = vmatpush.bf16.xpose.msra.mxu0 0
    %1069 = vmatpush.bf16.xpose.msra.mxu0 %v1060
    %1070 = vmatmul.bf16.gmra.mxu0 %v1057
    %v1071 = vpop.f32.mrf.mxu0
    %v1072 = vadd.f32 0.0, %v1071
    %v1073 = vpop.f32.mrf.mxu0
    %v1074 = vadd.f32 0.0, %v1073
    %1075 = vdwg.mxu0
    %1076 = vrot.lane.b32.xlu0 %v472, 120
    %v1077 = vpop.permute.xlu0 %1076
    %1078 = vrot.lane.b32.xlu0 %v472, 88
    %v1079 = vpop.permute.xlu0 %1078
    %v1081 = vsel %vm393, %v1077, 0
    %v1084 = vsel %vm393, %v1079, 0
    %1086 = vmatpush.bf16.xpose.msra.mxu0 0
    %1087 = vmatpush.bf16.xpose.msra.mxu0 0
    %1088 = vmatpush.bf16.xpose.msra.mxu0 0
    %1089 = vmatpush.bf16.xpose.msra.mxu0 0
    %1090 = vmatpush.bf16.xpose.msra.mxu0 0
    %1091 = vmatpush.bf16.xpose.msra.mxu0 0
    %1092 = vmatpush.bf16.xpose.msra.mxu0 0
    %1093 = vmatpush.bf16.xpose.msra.mxu0 %v1084
    %1094 = vmatmul.bf16.gmra.mxu0 %v1081
    %v1095 = vpop.f32.mrf.mxu0
    %v1096 = vadd.f32 0.0, %v1095
    %v1097 = vpop.f32.mrf.mxu0
    %v1098 = vadd.f32 0.0, %v1097
    %1099 = vdwg.mxu0
    %1100 = vrot.lane.b32.xlu0 %v499, 120
    %v1101 = vpop.permute.xlu0 %1100
    %1102 = vrot.lane.b32.xlu0 %v499, 88
    %v1103 = vpop.permute.xlu0 %1102
    %v1105 = vsel %vm393, %v1101, 0
    %v1108 = vsel %vm393, %v1103, 0
    %1110 = vmatpush.bf16.xpose.msra.mxu0 0
    %1111 = vmatpush.bf16.xpose.msra.mxu0 0
    %1112 = vmatpush.bf16.xpose.msra.mxu0 0
    %1113 = vmatpush.bf16.xpose.msra.mxu0 0
    %1114 = vmatpush.bf16.xpose.msra.mxu0 0
    %1115 = vmatpush.bf16.xpose.msra.mxu0 0
    %1116 = vmatpush.bf16.xpose.msra.mxu0 0
    %1117 = vmatpush.bf16.xpose.msra.mxu0 %v1108
    %1118 = vmatmul.bf16.gmra.mxu0 %v1105
    %v1119 = vpop.f32.mrf.mxu0
    %v1120 = vadd.f32 0.0, %v1119
    %v1121 = vpop.f32.mrf.mxu0
    %v1122 = vadd.f32 0.0, %v1121
    %1123 = vdwg.mxu0
    %1124 = vrot.lane.b32.xlu0 %v526, 120
    %v1125 = vpop.permute.xlu0 %1124
    %1126 = vrot.lane.b32.xlu0 %v526, 88
    %v1127 = vpop.permute.xlu0 %1126
    %v1129 = vsel %vm393, %v1125, 0
    %v1132 = vsel %vm393, %v1127, 0
    %1134 = vmatpush.bf16.xpose.msra.mxu0 0
    %1135 = vmatpush.bf16.xpose.msra.mxu0 0
    %1136 = vmatpush.bf16.xpose.msra.mxu0 0
    %1137 = vmatpush.bf16.xpose.msra.mxu0 0
    %1138 = vmatpush.bf16.xpose.msra.mxu0 0
    %1139 = vmatpush.bf16.xpose.msra.mxu0 0
    %1140 = vmatpush.bf16.xpose.msra.mxu0 0
    %1141 = vmatpush.bf16.xpose.msra.mxu0 %v1132
    %1142 = vmatmul.bf16.gmra.mxu0 %v1129
    %v1143 = vpop.f32.mrf.mxu0
    %v1144 = vadd.f32 0.0, %v1143
    %v1145 = vpop.f32.mrf.mxu0
    %v1146 = vadd.f32 0.0, %v1145
    %1147 = vdwg.mxu0
    %1148 = vrot.lane.b32.xlu0 %v553, 120
    %v1149 = vpop.permute.xlu0 %1148
    %1150 = vrot.lane.b32.xlu0 %v553, 88
    %v1151 = vpop.permute.xlu0 %1150
    %v1153 = vsel %vm393, %v1149, 0
    %v1156 = vsel %vm393, %v1151, 0
    %1158 = vmatpush.bf16.xpose.msra.mxu0 0
    %1159 = vmatpush.bf16.xpose.msra.mxu0 0
    %1160 = vmatpush.bf16.xpose.msra.mxu0 0
    %1161 = vmatpush.bf16.xpose.msra.mxu0 0
    %1162 = vmatpush.bf16.xpose.msra.mxu0 0
    %1163 = vmatpush.bf16.xpose.msra.mxu0 0
    %1164 = vmatpush.bf16.xpose.msra.mxu0 0
    %1165 = vmatpush.bf16.xpose.msra.mxu0 %v1156
    %1166 = vmatmul.bf16.gmra.mxu0 %v1153
    %v1167 = vpop.f32.mrf.mxu0
    %v1168 = vadd.f32 0.0, %v1167
    %v1169 = vpop.f32.mrf.mxu0
    %v1170 = vadd.f32 0.0, %v1169
    %1171 = vdwg.mxu0
    %1172 = vrot.lane.b32.xlu0 %v580, 120
    %v1173 = vpop.permute.xlu0 %1172
    %1174 = vrot.lane.b32.xlu0 %v580, 88
    %v1175 = vpop.permute.xlu0 %1174
    %v1177 = vsel %vm393, %v1173, 0
    %v1180 = vsel %vm393, %v1175, 0
    %1182 = vmatpush.bf16.xpose.msra.mxu0 0
    %1183 = vmatpush.bf16.xpose.msra.mxu0 0
    %1184 = vmatpush.bf16.xpose.msra.mxu0 0
    %1185 = vmatpush.bf16.xpose.msra.mxu0 0
    %1186 = vmatpush.bf16.xpose.msra.mxu0 0
    %1187 = vmatpush.bf16.xpose.msra.mxu0 0
    %1188 = vmatpush.bf16.xpose.msra.mxu0 0
    %1189 = vmatpush.bf16.xpose.msra.mxu0 %v1180
    %1190 = vmatmul.bf16.gmra.mxu0 %v1177
    %v1191 = vpop.f32.mrf.mxu0
    %v1192 = vadd.f32 0.0, %v1191
    %v1193 = vpop.f32.mrf.mxu0
    %v1194 = vadd.f32 0.0, %v1193
    %1195 = vdwg.mxu0
    %v1196 = vsel %vm603, %v1024, -inf
    %1197 = vmax.xlane.f32.xlu0 %v1196
    %v1198 = vpop.xlane.xlu0 %1197
    %v1199 = vsel %vm603, %v1026, -inf
    %1200 = vmax.xlane.f32.xlu0 %v1199
    %v1201 = vpop.xlane.xlu0 %1200
    %v1202 = vsel %vm603, %v1048, -inf
    %1203 = vmax.xlane.f32.xlu0 %v1202
    %v1204 = vpop.xlane.xlu0 %1203
    %v1205 = vsel %vm603, %v1050, -inf
    %1206 = vmax.xlane.f32.xlu0 %v1205
    %v1207 = vpop.xlane.xlu0 %1206
    %v1208 = vsel %vm603, %v1072, -inf
    %1209 = vmax.xlane.f32.xlu0 %v1208
    %v1210 = vpop.xlane.xlu0 %1209
    %v1211 = vsel %vm603, %v1074, -inf
    %1212 = vmax.xlane.f32.xlu0 %v1211
    %v1213 = vpop.xlane.xlu0 %1212
    %v1214 = vsel %vm603, %v1096, -inf
    %1215 = vmax.xlane.f32.xlu0 %v1214
    %v1216 = vpop.xlane.xlu0 %1215
    %v1217 = vsel %vm603, %v1098, -inf
    %1218 = vmax.xlane.f32.xlu0 %v1217
    %v1219 = vpop.xlane.xlu0 %1218
    %v1220 = vsel %vm603, %v1120, -inf
    %1221 = vmax.xlane.f32.xlu0 %v1220
    %v1222 = vpop.xlane.xlu0 %1221
    %v1223 = vsel %vm603, %v1122, -inf
    %1224 = vmax.xlane.f32.xlu0 %v1223
    %v1225 = vpop.xlane.xlu0 %1224
    %v1226 = vsel %vm603, %v1144, -inf
    %1227 = vmax.xlane.f32.xlu0 %v1226
    %v1228 = vpop.xlane.xlu0 %1227
    %v1229 = vsel %vm603, %v1146, -inf
    %1230 = vmax.xlane.f32.xlu0 %v1229
    %v1231 = vpop.xlane.xlu0 %1230
    %v1232 = vsel %vm603, %v1168, -inf
    %1233 = vmax.xlane.f32.xlu0 %v1232
    %v1234 = vpop.xlane.xlu0 %1233
    %v1235 = vsel %vm603, %v1170, -inf
    %1236 = vmax.xlane.f32.xlu0 %v1235
    %v1237 = vpop.xlane.xlu0 %1236
    %v1238 = vsel %vm603, %v1192, -inf
    %1239 = vmax.xlane.f32.xlu0 %v1238
    %v1240 = vpop.xlane.xlu0 %1239
    %v1241 = vsel %vm603, %v1194, -inf
    %1242 = vmax.xlane.f32.xlu0 %v1241
    %v1243 = vpop.xlane.xlu0 %1242
    %v1244 = vsub.f32 %v1024, %v1198
    %v1245 = vsub.f32 %v1026, %v1201
    %v1246 = vsub.f32 %v1048, %v1204
    %v1247 = vsub.f32 %v1050, %v1207
    %v1248 = vsub.f32 %v1072, %v1210
    %v1249 = vsub.f32 %v1074, %v1213
    %v1250 = vsub.f32 %v1096, %v1216
    %v1251 = vsub.f32 %v1098, %v1219
    %v1252 = vsub.f32 %v1120, %v1222
    %v1253 = vsub.f32 %v1122, %v1225
    %v1254 = vsub.f32 %v1144, %v1228
    %v1255 = vsub.f32 %v1146, %v1231
    %v1256 = vsub.f32 %v1168, %v1234
    %v1257 = vsub.f32 %v1170, %v1237
    %v1258 = vsub.f32 %v1192, %v1240
    %v1259 = vsub.f32 %v1194, %v1243
    %v1260 = vmul.f32 %v1244, 1.442695
    %v1261 = vpow.pop %v1260
    %v1262 = vmul.f32 %v1245, 1.442695
    %v1263 = vpow.pop %v1262
    %v1264 = vmul.f32 %v1246, 1.442695
    %v1265 = vpow.pop %v1264
    %v1266 = vmul.f32 %v1247, 1.442695
    %v1267 = vpow.pop %v1266
    %v1268 = vmul.f32 %v1248, 1.442695
    %v1269 = vpow.pop %v1268
    %v1270 = vmul.f32 %v1249, 1.442695
    %v1271 = vpow.pop %v1270
    %v1272 = vmul.f32 %v1250, 1.442695
    %v1273 = vpow.pop %v1272
    %v1274 = vmul.f32 %v1251, 1.442695
    %v1275 = vpow.pop %v1274
    %v1276 = vmul.f32 %v1252, 1.442695
    %v1277 = vpow.pop %v1276
    %v1278 = vmul.f32 %v1253, 1.442695
    %v1279 = vpow.pop %v1278
    %v1280 = vmul.f32 %v1254, 1.442695
    %v1281 = vpow.pop %v1280
    %v1282 = vmul.f32 %v1255, 1.442695
    %v1283 = vpow.pop %v1282
    %v1284 = vmul.f32 %v1256, 1.442695
    %v1285 = vpow.pop %v1284
    %v1286 = vmul.f32 %v1257, 1.442695
    %v1287 = vpow.pop %v1286
    %v1288 = vmul.f32 %v1258, 1.442695
    %v1289 = vpow.pop %v1288
    %v1290 = vmul.f32 %v1259, 1.442695
    %v1291 = vpow.pop %v1290
    %v1292 = vsel %vm603, %v1261, 0.0
    %1293 = vadd.xlane.f32.xlu0 %v1292
    %v1294 = vpop.xlane.xlu0 %1293
    %v1295 = vsel %vm603, %v1263, 0.0
    %1296 = vadd.xlane.f32.xlu0 %v1295
    %v1297 = vpop.xlane.xlu0 %1296
    %v1298 = vsel %vm603, %v1265, 0.0
    %1299 = vadd.xlane.f32.xlu0 %v1298
    %v1300 = vpop.xlane.xlu0 %1299
    %v1301 = vsel %vm603, %v1267, 0.0
    %1302 = vadd.xlane.f32.xlu0 %v1301
    %v1303 = vpop.xlane.xlu0 %1302
    %v1304 = vsel %vm603, %v1269, 0.0
    %1305 = vadd.xlane.f32.xlu0 %v1304
    %v1306 = vpop.xlane.xlu0 %1305
    %v1307 = vsel %vm603, %v1271, 0.0
    %1308 = vadd.xlane.f32.xlu0 %v1307
    %v1309 = vpop.xlane.xlu0 %1308
    %v1310 = vsel %vm603, %v1273, 0.0
    %1311 = vadd.xlane.f32.xlu0 %v1310
    %v1312 = vpop.xlane.xlu0 %1311
    %v1313 = vsel %vm603, %v1275, 0.0
    %1314 = vadd.xlane.f32.xlu0 %v1313
    %v1315 = vpop.xlane.xlu0 %1314
    %v1316 = vsel %vm603, %v1277, 0.0
    %1317 = vadd.xlane.f32.xlu0 %v1316
    %v1318 = vpop.xlane.xlu0 %1317
    %v1319 = vsel %vm603, %v1279, 0.0
    %1320 = vadd.xlane.f32.xlu0 %v1319
    %v1321 = vpop.xlane.xlu0 %1320
    %v1322 = vsel %vm603, %v1281, 0.0
    %1323 = vadd.xlane.f32.xlu0 %v1322
    %v1324 = vpop.xlane.xlu0 %1323
    %v1325 = vsel %vm603, %v1283, 0.0
    %1326 = vadd.xlane.f32.xlu0 %v1325
    %v1327 = vpop.xlane.xlu0 %1326
    %v1328 = vsel %vm603, %v1285, 0.0
    %1329 = vadd.xlane.f32.xlu0 %v1328
    %v1330 = vpop.xlane.xlu0 %1329
    %v1331 = vsel %vm603, %v1287, 0.0
    %1332 = vadd.xlane.f32.xlu0 %v1331
    %v1333 = vpop.xlane.xlu0 %1332
    %v1334 = vsel %vm603, %v1289, 0.0
    %1335 = vadd.xlane.f32.xlu0 %v1334
    %v1336 = vpop.xlane.xlu0 %1335
    %v1337 = vsel %vm603, %v1291, 0.0
    %1338 = vadd.xlane.f32.xlu0 %v1337
    %v1339 = vpop.xlane.xlu0 %1338
    %v1340 = vrcp.pop %v1294
    %v1341 = vrcp.pop %v1297
    %v1342 = vrcp.pop %v1300
    %v1343 = vrcp.pop %v1303
    %v1344 = vrcp.pop %v1306
    %v1345 = vrcp.pop %v1309
    %v1346 = vrcp.pop %v1312
    %v1347 = vrcp.pop %v1315
    %v1348 = vrcp.pop %v1318
    %v1349 = vrcp.pop %v1321
    %v1350 = vrcp.pop %v1324
    %v1351 = vrcp.pop %v1327
    %v1352 = vrcp.pop %v1330
    %v1353 = vrcp.pop %v1333
    %v1354 = vrcp.pop %v1336
    %v1355 = vrcp.pop %v1339
    %v1356 = vmul.f32 %v1261, %v1340
    %v1357 = vmul.f32 %v1263, %v1341
    %v1358 = vmul.f32 %v1265, %v1342
    %v1359 = vmul.f32 %v1267, %v1343
    %v1360 = vmul.f32 %v1269, %v1344
    %v1361 = vmul.f32 %v1271, %v1345
    %v1362 = vmul.f32 %v1273, %v1346
    %v1363 = vmul.f32 %v1275, %v1347
    %v1364 = vmul.f32 %v1277, %v1348
    %v1365 = vmul.f32 %v1279, %v1349
    %v1366 = vmul.f32 %v1281, %v1350
    %v1367 = vmul.f32 %v1283, %v1351
    %v1368 = vmul.f32 %v1285, %v1352
    %v1369 = vmul.f32 %v1287, %v1353
    %v1370 = vmul.f32 %v1289, %v1354
    %v1371 = vmul.f32 %v1291, %v1355
    %v1372 = vpack.c.bf16 %v1356, %v1356
    %v1373 = vpack.c.bf16 %v1357, %v1357
    %v1374 = vpack.c.bf16 %v1358, %v1358
    %v1375 = vpack.c.bf16 %v1359, %v1359
    %v1376 = vpack.c.bf16 %v1360, %v1360
    %v1377 = vpack.c.bf16 %v1361, %v1361
    %v1378 = vpack.c.bf16 %v1362, %v1362
    %v1379 = vpack.c.bf16 %v1363, %v1363
    %v1380 = vpack.c.bf16 %v1364, %v1364
    %v1381 = vpack.c.bf16 %v1365, %v1365
    %v1382 = vpack.c.bf16 %v1366, %v1366
    %v1383 = vpack.c.bf16 %v1367, %v1367
    %v1384 = vpack.c.bf16 %v1368, %v1368
    %v1385 = vpack.c.bf16 %v1369, %v1369
    %v1386 = vpack.c.bf16 %v1370, %v1370
    %v1387 = vpack.c.bf16 %v1371, %v1371
    %v1390 = vunpack.c.l.b16 %v1372
    %v1391 = vunpack.c.l.b16 %v1373
    %v1392 = vpack.c.b16 %v1391, %v1390
    %1393 = vrot.lane.b32.xlu0 %v390, 56
    %v1394 = vpop.permute.xlu0 %1393
    %v1397 = vsel %vm603, %v1392, 0
    %1399 = vmatpush.bf16.msra.mxu0 0
    %1400 = vmatpush.bf16.msra.mxu0 0
    %1401 = vmatpush.bf16.msra.mxu0 0
    %1402 = vmatpush.bf16.msra.mxu0 0
    %1403 = vmatpush.bf16.msra.mxu0 0
    %1404 = vmatpush.bf16.msra.mxu0 0
    %1405 = vmatpush.bf16.msra.mxu0 0
    %1406 = vmatpush.bf16.msra.mxu0 %v1394
    %1407 = vmatmul.bf16.gmra.mxu0 %v1397
    %v1408 = vpop.f32.mrf.mxu0
    %v1409 = vadd.f32 0.0, %v1408
    %v1410 = vpop.f32.mrf.mxu0
    %v1411 = vadd.f32 0.0, %v1410
    %1412 = vdwg.mxu0
    %v1415 = vunpack.c.l.b16 %v1374
    %v1416 = vunpack.c.l.b16 %v1375
    %v1417 = vpack.c.b16 %v1416, %v1415
    %1418 = vrot.lane.b32.xlu0 %v418, 56
    %v1419 = vpop.permute.xlu0 %1418
    %v1422 = vsel %vm603, %v1417, 0
    %1424 = vmatpush.bf16.msra.mxu0 0
    %1425 = vmatpush.bf16.msra.mxu0 0
    %1426 = vmatpush.bf16.msra.mxu0 0
    %1427 = vmatpush.bf16.msra.mxu0 0
    %1428 = vmatpush.bf16.msra.mxu0 0
    %1429 = vmatpush.bf16.msra.mxu0 0
    %1430 = vmatpush.bf16.msra.mxu0 0
    %1431 = vmatpush.bf16.msra.mxu0 %v1419
    %1432 = vmatmul.bf16.gmra.mxu0 %v1422
    %v1433 = vpop.f32.mrf.mxu0
    %v1434 = vadd.f32 0.0, %v1433
    %v1435 = vpop.f32.mrf.mxu0
    %v1436 = vadd.f32 0.0, %v1435
    %1437 = vdwg.mxu0
    %v1440 = vunpack.c.l.b16 %v1376
    %v1441 = vunpack.c.l.b16 %v1377
    %v1442 = vpack.c.b16 %v1441, %v1440
    %1443 = vrot.lane.b32.xlu0 %v445, 56
    %v1444 = vpop.permute.xlu0 %1443
    %v1447 = vsel %vm603, %v1442, 0
    %1449 = vmatpush.bf16.msra.mxu0 0
    %1450 = vmatpush.bf16.msra.mxu0 0
    %1451 = vmatpush.bf16.msra.mxu0 0
    %1452 = vmatpush.bf16.msra.mxu0 0
    %1453 = vmatpush.bf16.msra.mxu0 0
    %1454 = vmatpush.bf16.msra.mxu0 0
    %1455 = vmatpush.bf16.msra.mxu0 0
    %1456 = vmatpush.bf16.msra.mxu0 %v1444
    %1457 = vmatmul.bf16.gmra.mxu0 %v1447
    %v1458 = vpop.f32.mrf.mxu0
    %v1459 = vadd.f32 0.0, %v1458
    %v1460 = vpop.f32.mrf.mxu0
    %v1461 = vadd.f32 0.0, %v1460
    %1462 = vdwg.mxu0
    %v1465 = vunpack.c.l.b16 %v1378
    %v1466 = vunpack.c.l.b16 %v1379
    %v1467 = vpack.c.b16 %v1466, %v1465
    %1468 = vrot.lane.b32.xlu0 %v472, 56
    %v1469 = vpop.permute.xlu0 %1468
    %v1472 = vsel %vm603, %v1467, 0
    %1474 = vmatpush.bf16.msra.mxu0 0
    %1475 = vmatpush.bf16.msra.mxu0 0
    %1476 = vmatpush.bf16.msra.mxu0 0
    %1477 = vmatpush.bf16.msra.mxu0 0
    %1478 = vmatpush.bf16.msra.mxu0 0
    %1479 = vmatpush.bf16.msra.mxu0 0
    %1480 = vmatpush.bf16.msra.mxu0 0
    %1481 = vmatpush.bf16.msra.mxu0 %v1469
    %1482 = vmatmul.bf16.gmra.mxu0 %v1472
    %v1483 = vpop.f32.mrf.mxu0
    %v1484 = vadd.f32 0.0, %v1483
    %v1485 = vpop.f32.mrf.mxu0
    %v1486 = vadd.f32 0.0, %v1485
    %1487 = vdwg.mxu0
    %v1490 = vunpack.c.l.b16 %v1380
    %v1491 = vunpack.c.l.b16 %v1381
    %v1492 = vpack.c.b16 %v1491, %v1490
    %1493 = vrot.lane.b32.xlu0 %v499, 56
    %v1494 = vpop.permute.xlu0 %1493
    %v1497 = vsel %vm603, %v1492, 0
    %1499 = vmatpush.bf16.msra.mxu0 0
    %1500 = vmatpush.bf16.msra.mxu0 0
    %1501 = vmatpush.bf16.msra.mxu0 0
    %1502 = vmatpush.bf16.msra.mxu0 0
    %1503 = vmatpush.bf16.msra.mxu0 0
    %1504 = vmatpush.bf16.msra.mxu0 0
    %1505 = vmatpush.bf16.msra.mxu0 0
    %1506 = vmatpush.bf16.msra.mxu0 %v1494
    %1507 = vmatmul.bf16.gmra.mxu0 %v1497
    %v1508 = vpop.f32.mrf.mxu0
    %v1509 = vadd.f32 0.0, %v1508
    %v1510 = vpop.f32.mrf.mxu0
    %v1511 = vadd.f32 0.0, %v1510
    %1512 = vdwg.mxu0
    %v1515 = vunpack.c.l.b16 %v1382
    %v1516 = vunpack.c.l.b16 %v1383
    %v1517 = vpack.c.b16 %v1516, %v1515
    %1518 = vrot.lane.b32.xlu0 %v526, 56
    %v1519 = vpop.permute.xlu0 %1518
    %v1522 = vsel %vm603, %v1517, 0
    %1524 = vmatpush.bf16.msra.mxu0 0
    %1525 = vmatpush.bf16.msra.mxu0 0
    %1526 = vmatpush.bf16.msra.mxu0 0
    %1527 = vmatpush.bf16.msra.mxu0 0
    %1528 = vmatpush.bf16.msra.mxu0 0
    %1529 = vmatpush.bf16.msra.mxu0 0
    %1530 = vmatpush.bf16.msra.mxu0 0
    %1531 = vmatpush.bf16.msra.mxu0 %v1519
    %1532 = vmatmul.bf16.gmra.mxu0 %v1522
    %v1533 = vpop.f32.mrf.mxu0
    %v1534 = vadd.f32 0.0, %v1533
    %v1535 = vpop.f32.mrf.mxu0
    %v1536 = vadd.f32 0.0, %v1535
    %1537 = vdwg.mxu0
    %v1540 = vunpack.c.l.b16 %v1384
    %v1541 = vunpack.c.l.b16 %v1385
    %v1542 = vpack.c.b16 %v1541, %v1540
    %1543 = vrot.lane.b32.xlu0 %v553, 56
    %v1544 = vpop.permute.xlu0 %1543
    %v1547 = vsel %vm603, %v1542, 0
    %1549 = vmatpush.bf16.msra.mxu0 0
    %1550 = vmatpush.bf16.msra.mxu0 0
    %1551 = vmatpush.bf16.msra.mxu0 0
    %1552 = vmatpush.bf16.msra.mxu0 0
    %1553 = vmatpush.bf16.msra.mxu0 0
    %1554 = vmatpush.bf16.msra.mxu0 0
    %1555 = vmatpush.bf16.msra.mxu0 0
    %1556 = vmatpush.bf16.msra.mxu0 %v1544
    %1557 = vmatmul.bf16.gmra.mxu0 %v1547
    %v1558 = vpop.f32.mrf.mxu0
    %v1559 = vadd.f32 0.0, %v1558
    %v1560 = vpop.f32.mrf.mxu0
    %v1561 = vadd.f32 0.0, %v1560
    %1562 = vdwg.mxu0
    %v1565 = vunpack.c.l.b16 %v1386
    %v1566 = vunpack.c.l.b16 %v1387
    %v1567 = vpack.c.b16 %v1566, %v1565
    %1568 = vrot.lane.b32.xlu0 %v580, 56
    %v1569 = vpop.permute.xlu0 %1568
    %v1572 = vsel %vm603, %v1567, 0
    %1574 = vmatpush.bf16.msra.mxu0 0
    %1575 = vmatpush.bf16.msra.mxu0 0
    %1576 = vmatpush.bf16.msra.mxu0 0
    %1577 = vmatpush.bf16.msra.mxu0 0
    %1578 = vmatpush.bf16.msra.mxu0 0
    %1579 = vmatpush.bf16.msra.mxu0 0
    %1580 = vmatpush.bf16.msra.mxu0 0
    %1581 = vmatpush.bf16.msra.mxu0 %v1569
    %1582 = vmatmul.bf16.gmra.mxu0 %v1572
    %v1583 = vpop.f32.mrf.mxu0
    %v1584 = vadd.f32 0.0, %v1583
    %v1585 = vpop.f32.mrf.mxu0
    %v1586 = vadd.f32 0.0, %v1585
    %1587 = vdwg.mxu0
    %v1588 = vpack.c.bf16 %v1411, %v1409
    %v1589 = vpack.c.bf16 %v1436, %v1434
    %v1590 = vpack.c.bf16 %v1461, %v1459
    %v1591 = vpack.c.bf16 %v1486, %v1484
    %v1592 = vpack.c.bf16 %v1511, %v1509
    %v1593 = vpack.c.bf16 %v1536, %v1534
    %v1594 = vpack.c.bf16 %v1561, %v1559
    %v1595 = vpack.c.bf16 %v1586, %v1584
    %v1597 = vsel %vm393, %v1588, 0
    %v1600 = vsel %vm393, %v1589, 0
    %v1603 = vsel %vm393, %v1590, 0
    %v1606 = vsel %vm393, %v1591, 0
    %v1609 = vsel %vm393, %v1592, 0
    %v1612 = vsel %vm393, %v1593, 0
    %v1615 = vsel %vm393, %v1594, 0
    %v1618 = vsel %vm393, %v1595, 0
    %vm1620 = vcmask 1043456
    %v1622 = vsel %vm1620, %v383, 0
    %1624 = vmatpush.bf16.msra.mxu0 0
    %1625 = vmatpush.bf16.msra.mxu0 0
    %1626 = vmatpush.bf16.msra.mxu0 0
    %1627 = vmatpush.bf16.msra.mxu0 0
    %1628 = vmatpush.bf16.msra.mxu0 0
    %1629 = vmatpush.bf16.msra.mxu0 0
    %1630 = vmatpush.bf16.msra.mxu0 0
    %1631 = vmatpush.bf16.msra.mxu0 %v1622
    %1632 = vmatmul.bf16.gmra.mxu0 %v1597
    %v1633 = vpop.f32.mrf.mxu0
    %v1634 = vadd.f32 0.0, %v1633
    %v1635 = vpop.f32.mrf.mxu0
    %v1636 = vadd.f32 0.0, %v1635
    %1637 = vmatmul.bf16.gmra.mxu0 %v1600
    %v1638 = vpop.f32.mrf.mxu0
    %v1639 = vadd.f32 0.0, %v1638
    %v1640 = vpop.f32.mrf.mxu0
    %v1641 = vadd.f32 0.0, %v1640
    %1642 = vmatmul.bf16.gmra.mxu0 %v1603
    %v1643 = vpop.f32.mrf.mxu0
    %v1644 = vadd.f32 0.0, %v1643
    %v1645 = vpop.f32.mrf.mxu0
    %v1646 = vadd.f32 0.0, %v1645
    %1647 = vmatmul.bf16.gmra.mxu0 %v1606
    %v1648 = vpop.f32.mrf.mxu0
    %v1649 = vadd.f32 0.0, %v1648
    %v1650 = vpop.f32.mrf.mxu0
    %v1651 = vadd.f32 0.0, %v1650
    %1652 = vmatmul.bf16.gmra.mxu0 %v1609
    %v1653 = vpop.f32.mrf.mxu0
    %v1654 = vadd.f32 0.0, %v1653
    %v1655 = vpop.f32.mrf.mxu0
    %v1656 = vadd.f32 0.0, %v1655
    %1657 = vmatmul.bf16.gmra.mxu0 %v1612
    %v1658 = vpop.f32.mrf.mxu0
    %v1659 = vadd.f32 0.0, %v1658
    %v1660 = vpop.f32.mrf.mxu0
    %v1661 = vadd.f32 0.0, %v1660
    %1662 = vmatmul.bf16.gmra.mxu0 %v1615
    %v1663 = vpop.f32.mrf.mxu0
    %v1664 = vadd.f32 0.0, %v1663
    %v1665 = vpop.f32.mrf.mxu0
    %v1666 = vadd.f32 0.0, %v1665
    %1667 = vmatmul.bf16.gmra.mxu0 %v1618
    %v1668 = vpop.f32.mrf.mxu0
    %v1669 = vadd.f32 0.0, %v1668
    %v1670 = vpop.f32.mrf.mxu0
    %v1671 = vadd.f32 0.0, %v1670
    %1672 = vdwg.mxu0
    %v1674 = vsel %vm393, %v996, 0
    %v1677 = vsel %vm393, %v997, 0
    %v1680 = vsel %vm393, %v998, 0
    %v1683 = vsel %vm393, %v999, 0
    %v1686 = vsel %vm393, %v1000, 0
    %v1689 = vsel %vm393, %v1001, 0
    %v1692 = vsel %vm393, %v1002, 0
    %v1695 = vsel %vm393, %v1003, 0
    %v1698 = vsel %vm1620, %v382, 0
    %1700 = vmatpush.bf16.msra.mxu0 0
    %1701 = vmatpush.bf16.msra.mxu0 0
    %1702 = vmatpush.bf16.msra.mxu0 0
    %1703 = vmatpush.bf16.msra.mxu0 0
    %1704 = vmatpush.bf16.msra.mxu0 0
    %1705 = vmatpush.bf16.msra.mxu0 0
    %1706 = vmatpush.bf16.msra.mxu0 0
    %1707 = vmatpush.bf16.msra.mxu0 %v1698
    %1708 = vmatmul.bf16.gmra.mxu0 %v1674
    %v1709 = vpop.f32.mrf.mxu0
    %v1710 = vadd.f32 %v1634, %v1709
    %v1711 = vpop.f32.mrf.mxu0
    %v1712 = vadd.f32 %v1636, %v1711
    %1713 = vmatmul.bf16.gmra.mxu0 %v1677
    %v1714 = vpop.f32.mrf.mxu0
    %v1715 = vadd.f32 %v1639, %v1714
    %v1716 = vpop.f32.mrf.mxu0
    %v1717 = vadd.f32 %v1641, %v1716
    %1718 = vmatmul.bf16.gmra.mxu0 %v1680
    %v1719 = vpop.f32.mrf.mxu0
    %v1720 = vadd.f32 %v1644, %v1719
    %v1721 = vpop.f32.mrf.mxu0
    %v1722 = vadd.f32 %v1646, %v1721
    %1723 = vmatmul.bf16.gmra.mxu0 %v1683
    %v1724 = vpop.f32.mrf.mxu0
    %v1725 = vadd.f32 %v1649, %v1724
    %v1726 = vpop.f32.mrf.mxu0
    %v1727 = vadd.f32 %v1651, %v1726
    %1728 = vmatmul.bf16.gmra.mxu0 %v1686
    %v1729 = vpop.f32.mrf.mxu0
    %v1730 = vadd.f32 %v1654, %v1729
    %v1731 = vpop.f32.mrf.mxu0
    %v1732 = vadd.f32 %v1656, %v1731
    %1733 = vmatmul.bf16.gmra.mxu0 %v1689
    %v1734 = vpop.f32.mrf.mxu0
    %v1735 = vadd.f32 %v1659, %v1734
    %v1736 = vpop.f32.mrf.mxu0
    %v1737 = vadd.f32 %v1661, %v1736
    %1738 = vmatmul.bf16.gmra.mxu0 %v1692
    %v1739 = vpop.f32.mrf.mxu0
    %v1740 = vadd.f32 %v1664, %v1739
    %v1741 = vpop.f32.mrf.mxu0
    %v1742 = vadd.f32 %v1666, %v1741
    %1743 = vmatmul.bf16.gmra.mxu0 %v1695
    %v1744 = vpop.f32.mrf.mxu0
    %v1745 = vadd.f32 %v1669, %v1744
    %v1746 = vpop.f32.mrf.mxu0
    %v1747 = vadd.f32 %v1671, %v1746
    %1748 = vdwg.mxu0
    %1749 = vrot.lane.b32.xlu0 %v390, 112
    %v1750 = vpop.permute.xlu0 %1749
    %1751 = vrot.lane.b32.xlu0 %v390, 80
    %v1752 = vpop.permute.xlu0 %1751
    %v1754 = vsel %vm393, %v1750, 0
    %v1757 = vsel %vm393, %v1752, 0
    %1759 = vmatpush.bf16.xpose.msra.mxu0 0
    %1760 = vmatpush.bf16.xpose.msra.mxu0 0
    %1761 = vmatpush.bf16.xpose.msra.mxu0 0
    %1762 = vmatpush.bf16.xpose.msra.mxu0 0
    %1763 = vmatpush.bf16.xpose.msra.mxu0 0
    %1764 = vmatpush.bf16.xpose.msra.mxu0 0
    %1765 = vmatpush.bf16.xpose.msra.mxu0 0
    %1766 = vmatpush.bf16.xpose.msra.mxu0 %v1757
    %1767 = vmatmul.bf16.gmra.mxu0 %v1754
    %v1768 = vpop.f32.mrf.mxu0
    %v1769 = vadd.f32 0.0, %v1768
    %v1770 = vpop.f32.mrf.mxu0
    %v1771 = vadd.f32 0.0, %v1770
    %1772 = vdwg.mxu0
    %1773 = vrot.lane.b32.xlu0 %v418, 112
    %v1774 = vpop.permute.xlu0 %1773
    %1775 = vrot.lane.b32.xlu0 %v418, 80
    %v1776 = vpop.permute.xlu0 %1775
    %v1778 = vsel %vm393, %v1774, 0
    %v1781 = vsel %vm393, %v1776, 0
    %1783 = vmatpush.bf16.xpose.msra.mxu0 0
    %1784 = vmatpush.bf16.xpose.msra.mxu0 0
    %1785 = vmatpush.bf16.xpose.msra.mxu0 0
    %1786 = vmatpush.bf16.xpose.msra.mxu0 0
    %1787 = vmatpush.bf16.xpose.msra.mxu0 0
    %1788 = vmatpush.bf16.xpose.msra.mxu0 0
    %1789 = vmatpush.bf16.xpose.msra.mxu0 0
    %1790 = vmatpush.bf16.xpose.msra.mxu0 %v1781
    %1791 = vmatmul.bf16.gmra.mxu0 %v1778
    %v1792 = vpop.f32.mrf.mxu0
    %v1793 = vadd.f32 0.0, %v1792
    %v1794 = vpop.f32.mrf.mxu0
    %v1795 = vadd.f32 0.0, %v1794
    %1796 = vdwg.mxu0
    %1797 = vrot.lane.b32.xlu0 %v445, 112
    %v1798 = vpop.permute.xlu0 %1797
    %1799 = vrot.lane.b32.xlu0 %v445, 80
    %v1800 = vpop.permute.xlu0 %1799
    %v1802 = vsel %vm393, %v1798, 0
    %v1805 = vsel %vm393, %v1800, 0
    %1807 = vmatpush.bf16.xpose.msra.mxu0 0
    %1808 = vmatpush.bf16.xpose.msra.mxu0 0
    %1809 = vmatpush.bf16.xpose.msra.mxu0 0
    %1810 = vmatpush.bf16.xpose.msra.mxu0 0
    %1811 = vmatpush.bf16.xpose.msra.mxu0 0
    %1812 = vmatpush.bf16.xpose.msra.mxu0 0
    %1813 = vmatpush.bf16.xpose.msra.mxu0 0
    %1814 = vmatpush.bf16.xpose.msra.mxu0 %v1805
    %1815 = vmatmul.bf16.gmra.mxu0 %v1802
    %v1816 = vpop.f32.mrf.mxu0
    %v1817 = vadd.f32 0.0, %v1816
    %v1818 = vpop.f32.mrf.mxu0
    %v1819 = vadd.f32 0.0, %v1818
    %1820 = vdwg.mxu0
    %1821 = vrot.lane.b32.xlu0 %v472, 112
    %v1822 = vpop.permute.xlu0 %1821
    %1823 = vrot.lane.b32.xlu0 %v472, 80
    %v1824 = vpop.permute.xlu0 %1823
    %v1826 = vsel %vm393, %v1822, 0
    %v1829 = vsel %vm393, %v1824, 0
    %1831 = vmatpush.bf16.xpose.msra.mxu0 0
    %1832 = vmatpush.bf16.xpose.msra.mxu0 0
    %1833 = vmatpush.bf16.xpose.msra.mxu0 0
    %1834 = vmatpush.bf16.xpose.msra.mxu0 0
    %1835 = vmatpush.bf16.xpose.msra.mxu0 0
    %1836 = vmatpush.bf16.xpose.msra.mxu0 0
    %1837 = vmatpush.bf16.xpose.msra.mxu0 0
    %1838 = vmatpush.bf16.xpose.msra.mxu0 %v1829
    %1839 = vmatmul.bf16.gmra.mxu0 %v1826
    %v1840 = vpop.f32.mrf.mxu0
    %v1841 = vadd.f32 0.0, %v1840
    %v1842 = vpop.f32.mrf.mxu0
    %v1843 = vadd.f32 0.0, %v1842
    %1844 = vdwg.mxu0
    %1845 = vrot.lane.b32.xlu0 %v499, 112
    %v1846 = vpop.permute.xlu0 %1845
    %1847 = vrot.lane.b32.xlu0 %v499, 80
    %v1848 = vpop.permute.xlu0 %1847
    %v1850 = vsel %vm393, %v1846, 0
    %v1853 = vsel %vm393, %v1848, 0
    %1855 = vmatpush.bf16.xpose.msra.mxu0 0
    %1856 = vmatpush.bf16.xpose.msra.mxu0 0
    %1857 = vmatpush.bf16.xpose.msra.mxu0 0
    %1858 = vmatpush.bf16.xpose.msra.mxu0 0
    %1859 = vmatpush.bf16.xpose.msra.mxu0 0
    %1860 = vmatpush.bf16.xpose.msra.mxu0 0
    %1861 = vmatpush.bf16.xpose.msra.mxu0 0
    %1862 = vmatpush.bf16.xpose.msra.mxu0 %v1853
    %1863 = vmatmul.bf16.gmra.mxu0 %v1850
    %v1864 = vpop.f32.mrf.mxu0
    %v1865 = vadd.f32 0.0, %v1864
    %v1866 = vpop.f32.mrf.mxu0
    %v1867 = vadd.f32 0.0, %v1866
    %1868 = vdwg.mxu0
    %1869 = vrot.lane.b32.xlu0 %v526, 112
    %v1870 = vpop.permute.xlu0 %1869
    %1871 = vrot.lane.b32.xlu0 %v526, 80
    %v1872 = vpop.permute.xlu0 %1871
    %v1874 = vsel %vm393, %v1870, 0
    %v1877 = vsel %vm393, %v1872, 0
    %1879 = vmatpush.bf16.xpose.msra.mxu0 0
    %1880 = vmatpush.bf16.xpose.msra.mxu0 0
    %1881 = vmatpush.bf16.xpose.msra.mxu0 0
    %1882 = vmatpush.bf16.xpose.msra.mxu0 0
    %1883 = vmatpush.bf16.xpose.msra.mxu0 0
    %1884 = vmatpush.bf16.xpose.msra.mxu0 0
    %1885 = vmatpush.bf16.xpose.msra.mxu0 0
    %1886 = vmatpush.bf16.xpose.msra.mxu0 %v1877
    %1887 = vmatmul.bf16.gmra.mxu0 %v1874
    %v1888 = vpop.f32.mrf.mxu0
    %v1889 = vadd.f32 0.0, %v1888
    %v1890 = vpop.f32.mrf.mxu0
    %v1891 = vadd.f32 0.0, %v1890
    %1892 = vdwg.mxu0
    %1893 = vrot.lane.b32.xlu0 %v553, 112
    %v1894 = vpop.permute.xlu0 %1893
    %1895 = vrot.lane.b32.xlu0 %v553, 80
    %v1896 = vpop.permute.xlu0 %1895
    %v1898 = vsel %vm393, %v1894, 0
    %v1901 = vsel %vm393, %v1896, 0
    %1903 = vmatpush.bf16.xpose.msra.mxu0 0
    %1904 = vmatpush.bf16.xpose.msra.mxu0 0
    %1905 = vmatpush.bf16.xpose.msra.mxu0 0
    %1906 = vmatpush.bf16.xpose.msra.mxu0 0
    %1907 = vmatpush.bf16.xpose.msra.mxu0 0
    %1908 = vmatpush.bf16.xpose.msra.mxu0 0
    %1909 = vmatpush.bf16.xpose.msra.mxu0 0
    %1910 = vmatpush.bf16.xpose.msra.mxu0 %v1901
    %1911 = vmatmul.bf16.gmra.mxu0 %v1898
    %v1912 = vpop.f32.mrf.mxu0
    %v1913 = vadd.f32 0.0, %v1912
    %v1914 = vpop.f32.mrf.mxu0
    %v1915 = vadd.f32 0.0, %v1914
    %1916 = vdwg.mxu0
    %1917 = vrot.lane.b32.xlu0 %v580, 112
    %v1918 = vpop.permute.xlu0 %1917
    %1919 = vrot.lane.b32.xlu0 %v580, 80
    %v1920 = vpop.permute.xlu0 %1919
    %v1922 = vsel %vm393, %v1918, 0
    %v1925 = vsel %vm393, %v1920, 0
    %1927 = vmatpush.bf16.xpose.msra.mxu0 0
    %1928 = vmatpush.bf16.xpose.msra.mxu0 0
    %1929 = vmatpush.bf16.xpose.msra.mxu0 0
    %1930 = vmatpush.bf16.xpose.msra.mxu0 0
    %1931 = vmatpush.bf16.xpose.msra.mxu0 0
    %1932 = vmatpush.bf16.xpose.msra.mxu0 0
    %1933 = vmatpush.bf16.xpose.msra.mxu0 0
    %1934 = vmatpush.bf16.xpose.msra.mxu0 %v1925
    %1935 = vmatmul.bf16.gmra.mxu0 %v1922
    %v1936 = vpop.f32.mrf.mxu0
    %v1937 = vadd.f32 0.0, %v1936
    %v1938 = vpop.f32.mrf.mxu0
    %v1939 = vadd.f32 0.0, %v1938
    %1940 = vdwg.mxu0
    %v1941 = vsel %vm603, %v1769, -inf
    %1942 = vmax.xlane.f32.xlu0 %v1941
    %v1943 = vpop.xlane.xlu0 %1942
    %v1944 = vsel %vm603, %v1771, -inf
    %1945 = vmax.xlane.f32.xlu0 %v1944
    %v1946 = vpop.xlane.xlu0 %1945
    %v1947 = vsel %vm603, %v1793, -inf
    %1948 = vmax.xlane.f32.xlu0 %v1947
    %v1949 = vpop.xlane.xlu0 %1948
    %v1950 = vsel %vm603, %v1795, -inf
    %1951 = vmax.xlane.f32.xlu0 %v1950
    %v1952 = vpop.xlane.xlu0 %1951
    %v1953 = vsel %vm603, %v1817, -inf
    %1954 = vmax.xlane.f32.xlu0 %v1953
    %v1955 = vpop.xlane.xlu0 %1954
    %v1956 = vsel %vm603, %v1819, -inf
    %1957 = vmax.xlane.f32.xlu0 %v1956
    %v1958 = vpop.xlane.xlu0 %1957
    %v1959 = vsel %vm603, %v1841, -inf
    %1960 = vmax.xlane.f32.xlu0 %v1959
    %v1961 = vpop.xlane.xlu0 %1960
    %v1962 = vsel %vm603, %v1843, -inf
    %1963 = vmax.xlane.f32.xlu0 %v1962
    %v1964 = vpop.xlane.xlu0 %1963
    %v1965 = vsel %vm603, %v1865, -inf
    %1966 = vmax.xlane.f32.xlu0 %v1965
    %v1967 = vpop.xlane.xlu0 %1966
    %v1968 = vsel %vm603, %v1867, -inf
    %1969 = vmax.xlane.f32.xlu0 %v1968
    %v1970 = vpop.xlane.xlu0 %1969
    %v1971 = vsel %vm603, %v1889, -inf
    %1972 = vmax.xlane.f32.xlu0 %v1971
    %v1973 = vpop.xlane.xlu0 %1972
    %v1974 = vsel %vm603, %v1891, -inf
    %1975 = vmax.xlane.f32.xlu0 %v1974
    %v1976 = vpop.xlane.xlu0 %1975
    %v1977 = vsel %vm603, %v1913, -inf
    %1978 = vmax.xlane.f32.xlu0 %v1977
    %v1979 = vpop.xlane.xlu0 %1978
    %v1980 = vsel %vm603, %v1915, -inf
    %1981 = vmax.xlane.f32.xlu0 %v1980
    %v1982 = vpop.xlane.xlu0 %1981
    %v1983 = vsel %vm603, %v1937, -inf
    %1984 = vmax.xlane.f32.xlu0 %v1983
    %v1985 = vpop.xlane.xlu0 %1984
    %v1986 = vsel %vm603, %v1939, -inf
    %1987 = vmax.xlane.f32.xlu0 %v1986
    %v1988 = vpop.xlane.xlu0 %1987
    %v1989 = vsub.f32 %v1769, %v1943
    %v1990 = vsub.f32 %v1771, %v1946
    %v1991 = vsub.f32 %v1793, %v1949
    %v1992 = vsub.f32 %v1795, %v1952
    %v1993 = vsub.f32 %v1817, %v1955
    %v1994 = vsub.f32 %v1819, %v1958
    %v1995 = vsub.f32 %v1841, %v1961
    %v1996 = vsub.f32 %v1843, %v1964
    %v1997 = vsub.f32 %v1865, %v1967
    %v1998 = vsub.f32 %v1867, %v1970
    %v1999 = vsub.f32 %v1889, %v1973
    %v2000 = vsub.f32 %v1891, %v1976
    %v2001 = vsub.f32 %v1913, %v1979
    %v2002 = vsub.f32 %v1915, %v1982
    %v2003 = vsub.f32 %v1937, %v1985
    %v2004 = vsub.f32 %v1939, %v1988
    %v2005 = vmul.f32 %v1989, 1.442695
    %v2006 = vpow.pop %v2005
    %v2007 = vmul.f32 %v1990, 1.442695
    %v2008 = vpow.pop %v2007
    %v2009 = vmul.f32 %v1991, 1.442695
    %v2010 = vpow.pop %v2009
    %v2011 = vmul.f32 %v1992, 1.442695
    %v2012 = vpow.pop %v2011
    %v2013 = vmul.f32 %v1993, 1.442695
    %v2014 = vpow.pop %v2013
    %v2015 = vmul.f32 %v1994, 1.442695
    %v2016 = vpow.pop %v2015
    %v2017 = vmul.f32 %v1995, 1.442695
    %v2018 = vpow.pop %v2017
    %v2019 = vmul.f32 %v1996, 1.442695
    %v2020 = vpow.pop %v2019
    %v2021 = vmul.f32 %v1997, 1.442695
    %v2022 = vpow.pop %v2021
    %v2023 = vmul.f32 %v1998, 1.442695
    %v2024 = vpow.pop %v2023
    %v2025 = vmul.f32 %v1999, 1.442695
    %v2026 = vpow.pop %v2025
    %v2027 = vmul.f32 %v2000, 1.442695
    %v2028 = vpow.pop %v2027
    %v2029 = vmul.f32 %v2001, 1.442695
    %v2030 = vpow.pop %v2029
    %v2031 = vmul.f32 %v2002, 1.442695
    %v2032 = vpow.pop %v2031
    %v2033 = vmul.f32 %v2003, 1.442695
    %v2034 = vpow.pop %v2033
    %v2035 = vmul.f32 %v2004, 1.442695
    %v2036 = vpow.pop %v2035
    %v2037 = vsel %vm603, %v2006, 0.0
    %2038 = vadd.xlane.f32.xlu0 %v2037
    %v2039 = vpop.xlane.xlu0 %2038
    %v2040 = vsel %vm603, %v2008, 0.0
    %2041 = vadd.xlane.f32.xlu0 %v2040
    %v2042 = vpop.xlane.xlu0 %2041
    %v2043 = vsel %vm603, %v2010, 0.0
    %2044 = vadd.xlane.f32.xlu0 %v2043
    %v2045 = vpop.xlane.xlu0 %2044
    %v2046 = vsel %vm603, %v2012, 0.0
    %2047 = vadd.xlane.f32.xlu0 %v2046
    %v2048 = vpop.xlane.xlu0 %2047
    %v2049 = vsel %vm603, %v2014, 0.0
    %2050 = vadd.xlane.f32.xlu0 %v2049
    %v2051 = vpop.xlane.xlu0 %2050
    %v2052 = vsel %vm603, %v2016, 0.0
    %2053 = vadd.xlane.f32.xlu0 %v2052
    %v2054 = vpop.xlane.xlu0 %2053
    %v2055 = vsel %vm603, %v2018, 0.0
    %2056 = vadd.xlane.f32.xlu0 %v2055
    %v2057 = vpop.xlane.xlu0 %2056
    %v2058 = vsel %vm603, %v2020, 0.0
    %2059 = vadd.xlane.f32.xlu0 %v2058
    %v2060 = vpop.xlane.xlu0 %2059
    %v2061 = vsel %vm603, %v2022, 0.0
    %2062 = vadd.xlane.f32.xlu0 %v2061
    %v2063 = vpop.xlane.xlu0 %2062
    %v2064 = vsel %vm603, %v2024, 0.0
    %2065 = vadd.xlane.f32.xlu0 %v2064
    %v2066 = vpop.xlane.xlu0 %2065
    %v2067 = vsel %vm603, %v2026, 0.0
    %2068 = vadd.xlane.f32.xlu0 %v2067
    %v2069 = vpop.xlane.xlu0 %2068
    %v2070 = vsel %vm603, %v2028, 0.0
    %2071 = vadd.xlane.f32.xlu0 %v2070
    %v2072 = vpop.xlane.xlu0 %2071
    %v2073 = vsel %vm603, %v2030, 0.0
    %2074 = vadd.xlane.f32.xlu0 %v2073
    %v2075 = vpop.xlane.xlu0 %2074
    %v2076 = vsel %vm603, %v2032, 0.0
    %2077 = vadd.xlane.f32.xlu0 %v2076
    %v2078 = vpop.xlane.xlu0 %2077
    %v2079 = vsel %vm603, %v2034, 0.0
    %2080 = vadd.xlane.f32.xlu0 %v2079
    %v2081 = vpop.xlane.xlu0 %2080
    %v2082 = vsel %vm603, %v2036, 0.0
    %2083 = vadd.xlane.f32.xlu0 %v2082
    %v2084 = vpop.xlane.xlu0 %2083
    %v2085 = vrcp.pop %v2039
    %v2086 = vrcp.pop %v2042
    %v2087 = vrcp.pop %v2045
    %v2088 = vrcp.pop %v2048
    %v2089 = vrcp.pop %v2051
    %v2090 = vrcp.pop %v2054
    %v2091 = vrcp.pop %v2057
    %v2092 = vrcp.pop %v2060
    %v2093 = vrcp.pop %v2063
    %v2094 = vrcp.pop %v2066
    %v2095 = vrcp.pop %v2069
    %v2096 = vrcp.pop %v2072
    %v2097 = vrcp.pop %v2075
    %v2098 = vrcp.pop %v2078
    %v2099 = vrcp.pop %v2081
    %v2100 = vrcp.pop %v2084
    %v2101 = vmul.f32 %v2006, %v2085
    %v2102 = vmul.f32 %v2008, %v2086
    %v2103 = vmul.f32 %v2010, %v2087
    %v2104 = vmul.f32 %v2012, %v2088
    %v2105 = vmul.f32 %v2014, %v2089
    %v2106 = vmul.f32 %v2016, %v2090
    %v2107 = vmul.f32 %v2018, %v2091
    %v2108 = vmul.f32 %v2020, %v2092
    %v2109 = vmul.f32 %v2022, %v2093
    %v2110 = vmul.f32 %v2024, %v2094
    %v2111 = vmul.f32 %v2026, %v2095
    %v2112 = vmul.f32 %v2028, %v2096
    %v2113 = vmul.f32 %v2030, %v2097
    %v2114 = vmul.f32 %v2032, %v2098
    %v2115 = vmul.f32 %v2034, %v2099
    %v2116 = vmul.f32 %v2036, %v2100
    %v2117 = vpack.c.bf16 %v2101, %v2101
    %v2118 = vpack.c.bf16 %v2102, %v2102
    %v2119 = vpack.c.bf16 %v2103, %v2103
    %v2120 = vpack.c.bf16 %v2104, %v2104
    %v2121 = vpack.c.bf16 %v2105, %v2105
    %v2122 = vpack.c.bf16 %v2106, %v2106
    %v2123 = vpack.c.bf16 %v2107, %v2107
    %v2124 = vpack.c.bf16 %v2108, %v2108
    %v2125 = vpack.c.bf16 %v2109, %v2109
    %v2126 = vpack.c.bf16 %v2110, %v2110
    %v2127 = vpack.c.bf16 %v2111, %v2111
    %v2128 = vpack.c.bf16 %v2112, %v2112
    %v2129 = vpack.c.bf16 %v2113, %v2113
    %v2130 = vpack.c.bf16 %v2114, %v2114
    %v2131 = vpack.c.bf16 %v2115, %v2115
    %v2132 = vpack.c.bf16 %v2116, %v2116
    %v2135 = vunpack.c.l.b16 %v2117
    %v2136 = vunpack.c.l.b16 %v2118
    %v2137 = vpack.c.b16 %v2136, %v2135
    %2138 = vrot.lane.b32.xlu0 %v390, 48
    %v2139 = vpop.permute.xlu0 %2138
    %v2142 = vsel %vm603, %v2137, 0
    %2144 = vmatpush.bf16.msra.mxu0 0
    %2145 = vmatpush.bf16.msra.mxu0 0
    %2146 = vmatpush.bf16.msra.mxu0 0
    %2147 = vmatpush.bf16.msra.mxu0 0
    %2148 = vmatpush.bf16.msra.mxu0 0
    %2149 = vmatpush.bf16.msra.mxu0 0
    %2150 = vmatpush.bf16.msra.mxu0 0
    %2151 = vmatpush.bf16.msra.mxu0 %v2139
    %2152 = vmatmul.bf16.gmra.mxu0 %v2142
    %v2153 = vpop.f32.mrf.mxu0
    %v2154 = vadd.f32 0.0, %v2153
    %v2155 = vpop.f32.mrf.mxu0
    %v2156 = vadd.f32 0.0, %v2155
    %2157 = vdwg.mxu0
    %v2160 = vunpack.c.l.b16 %v2119
    %v2161 = vunpack.c.l.b16 %v2120
    %v2162 = vpack.c.b16 %v2161, %v2160
    %2163 = vrot.lane.b32.xlu0 %v418, 48
    %v2164 = vpop.permute.xlu0 %2163
    %v2167 = vsel %vm603, %v2162, 0
    %2169 = vmatpush.bf16.msra.mxu0 0
    %2170 = vmatpush.bf16.msra.mxu0 0
    %2171 = vmatpush.bf16.msra.mxu0 0
    %2172 = vmatpush.bf16.msra.mxu0 0
    %2173 = vmatpush.bf16.msra.mxu0 0
    %2174 = vmatpush.bf16.msra.mxu0 0
    %2175 = vmatpush.bf16.msra.mxu0 0
    %2176 = vmatpush.bf16.msra.mxu0 %v2164
    %2177 = vmatmul.bf16.gmra.mxu0 %v2167
    %v2178 = vpop.f32.mrf.mxu0
    %v2179 = vadd.f32 0.0, %v2178
    %v2180 = vpop.f32.mrf.mxu0
    %v2181 = vadd.f32 0.0, %v2180
    %2182 = vdwg.mxu0
    %v2185 = vunpack.c.l.b16 %v2121
    %v2186 = vunpack.c.l.b16 %v2122
    %v2187 = vpack.c.b16 %v2186, %v2185
    %2188 = vrot.lane.b32.xlu0 %v445, 48
    %v2189 = vpop.permute.xlu0 %2188
    %v2192 = vsel %vm603, %v2187, 0
    %2194 = vmatpush.bf16.msra.mxu0 0
    %2195 = vmatpush.bf16.msra.mxu0 0
    %2196 = vmatpush.bf16.msra.mxu0 0
    %2197 = vmatpush.bf16.msra.mxu0 0
    %2198 = vmatpush.bf16.msra.mxu0 0
    %2199 = vmatpush.bf16.msra.mxu0 0
    %2200 = vmatpush.bf16.msra.mxu0 0
    %2201 = vmatpush.bf16.msra.mxu0 %v2189
    %2202 = vmatmul.bf16.gmra.mxu0 %v2192
    %v2203 = vpop.f32.mrf.mxu0
    %v2204 = vadd.f32 0.0, %v2203
    %v2205 = vpop.f32.mrf.mxu0
    %v2206 = vadd.f32 0.0, %v2205
    %2207 = vdwg.mxu0
    %v2210 = vunpack.c.l.b16 %v2123
    %v2211 = vunpack.c.l.b16 %v2124
    %v2212 = vpack.c.b16 %v2211, %v2210
    %2213 = vrot.lane.b32.xlu0 %v472, 48
    %v2214 = vpop.permute.xlu0 %2213
    %v2217 = vsel %vm603, %v2212, 0
    %2219 = vmatpush.bf16.msra.mxu0 0
    %2220 = vmatpush.bf16.msra.mxu0 0
    %2221 = vmatpush.bf16.msra.mxu0 0
    %2222 = vmatpush.bf16.msra.mxu0 0
    %2223 = vmatpush.bf16.msra.mxu0 0
    %2224 = vmatpush.bf16.msra.mxu0 0
    %2225 = vmatpush.bf16.msra.mxu0 0
    %2226 = vmatpush.bf16.msra.mxu0 %v2214
    %2227 = vmatmul.bf16.gmra.mxu0 %v2217
    %v2228 = vpop.f32.mrf.mxu0
    %v2229 = vadd.f32 0.0, %v2228
    %v2230 = vpop.f32.mrf.mxu0
    %v2231 = vadd.f32 0.0, %v2230
    %2232 = vdwg.mxu0
    %v2235 = vunpack.c.l.b16 %v2125
    %v2236 = vunpack.c.l.b16 %v2126
    %v2237 = vpack.c.b16 %v2236, %v2235
    %2238 = vrot.lane.b32.xlu0 %v499, 48
    %v2239 = vpop.permute.xlu0 %2238
    %v2242 = vsel %vm603, %v2237, 0
    %2244 = vmatpush.bf16.msra.mxu0 0
    %2245 = vmatpush.bf16.msra.mxu0 0
    %2246 = vmatpush.bf16.msra.mxu0 0
    %2247 = vmatpush.bf16.msra.mxu0 0
    %2248 = vmatpush.bf16.msra.mxu0 0
    %2249 = vmatpush.bf16.msra.mxu0 0
    %2250 = vmatpush.bf16.msra.mxu0 0
    %2251 = vmatpush.bf16.msra.mxu0 %v2239
    %2252 = vmatmul.bf16.gmra.mxu0 %v2242
    %v2253 = vpop.f32.mrf.mxu0
    %v2254 = vadd.f32 0.0, %v2253
    %v2255 = vpop.f32.mrf.mxu0
    %v2256 = vadd.f32 0.0, %v2255
    %2257 = vdwg.mxu0
    %v2260 = vunpack.c.l.b16 %v2127
    %v2261 = vunpack.c.l.b16 %v2128
    %v2262 = vpack.c.b16 %v2261, %v2260
    %2263 = vrot.lane.b32.xlu0 %v526, 48
    %v2264 = vpop.permute.xlu0 %2263
    %v2267 = vsel %vm603, %v2262, 0
    %2269 = vmatpush.bf16.msra.mxu0 0
    %2270 = vmatpush.bf16.msra.mxu0 0
    %2271 = vmatpush.bf16.msra.mxu0 0
    %2272 = vmatpush.bf16.msra.mxu0 0
    %2273 = vmatpush.bf16.msra.mxu0 0
    %2274 = vmatpush.bf16.msra.mxu0 0
    %2275 = vmatpush.bf16.msra.mxu0 0
    %2276 = vmatpush.bf16.msra.mxu0 %v2264
    %2277 = vmatmul.bf16.gmra.mxu0 %v2267
    %v2278 = vpop.f32.mrf.mxu0
    %v2279 = vadd.f32 0.0, %v2278
    %v2280 = vpop.f32.mrf.mxu0
    %v2281 = vadd.f32 0.0, %v2280
    %2282 = vdwg.mxu0
    %v2285 = vunpack.c.l.b16 %v2129
    %v2286 = vunpack.c.l.b16 %v2130
    %v2287 = vpack.c.b16 %v2286, %v2285
    %2288 = vrot.lane.b32.xlu0 %v553, 48
    %v2289 = vpop.permute.xlu0 %2288
    %v2292 = vsel %vm603, %v2287, 0
    %2294 = vmatpush.bf16.msra.mxu0 0
    %2295 = vmatpush.bf16.msra.mxu0 0
    %2296 = vmatpush.bf16.msra.mxu0 0
    %2297 = vmatpush.bf16.msra.mxu0 0
    %2298 = vmatpush.bf16.msra.mxu0 0
    %2299 = vmatpush.bf16.msra.mxu0 0
    %2300 = vmatpush.bf16.msra.mxu0 0
    %2301 = vmatpush.bf16.msra.mxu0 %v2289
    %2302 = vmatmul.bf16.gmra.mxu0 %v2292
    %v2303 = vpop.f32.mrf.mxu0
    %v2304 = vadd.f32 0.0, %v2303
    %v2305 = vpop.f32.mrf.mxu0
    %v2306 = vadd.f32 0.0, %v2305
    %2307 = vdwg.mxu0
    %v2310 = vunpack.c.l.b16 %v2131
    %v2311 = vunpack.c.l.b16 %v2132
    %v2312 = vpack.c.b16 %v2311, %v2310
    %2313 = vrot.lane.b32.xlu0 %v580, 48
    %v2314 = vpop.permute.xlu0 %2313
    %v2317 = vsel %vm603, %v2312, 0
    %2319 = vmatpush.bf16.msra.mxu0 0
    %2320 = vmatpush.bf16.msra.mxu0 0
    %2321 = vmatpush.bf16.msra.mxu0 0
    %2322 = vmatpush.bf16.msra.mxu0 0
    %2323 = vmatpush.bf16.msra.mxu0 0
    %2324 = vmatpush.bf16.msra.mxu0 0
    %2325 = vmatpush.bf16.msra.mxu0 0
    %2326 = vmatpush.bf16.msra.mxu0 %v2314
    %2327 = vmatmul.bf16.gmra.mxu0 %v2317
    %v2328 = vpop.f32.mrf.mxu0
    %v2329 = vadd.f32 0.0, %v2328
    %v2330 = vpop.f32.mrf.mxu0
    %v2331 = vadd.f32 0.0, %v2330
    %2332 = vdwg.mxu0
    %v2333 = vpack.c.bf16 %v2156, %v2154
    %v2334 = vpack.c.bf16 %v2181, %v2179
    %v2335 = vpack.c.bf16 %v2206, %v2204
    %v2336 = vpack.c.bf16 %v2231, %v2229
    %v2337 = vpack.c.bf16 %v2256, %v2254
    %v2338 = vpack.c.bf16 %v2281, %v2279
    %v2339 = vpack.c.bf16 %v2306, %v2304
    %v2340 = vpack.c.bf16 %v2331, %v2329
    %v2342 = vsel %vm393, %v2333, 0
    %v2345 = vsel %vm393, %v2334, 0
    %v2348 = vsel %vm393, %v2335, 0
    %v2351 = vsel %vm393, %v2336, 0
    %v2354 = vsel %vm393, %v2337, 0
    %v2357 = vsel %vm393, %v2338, 0
    %v2360 = vsel %vm393, %v2339, 0
    %v2363 = vsel %vm393, %v2340, 0
    %v2366 = vsel %vm1620, %v384, 0
    %2368 = vmatpush.bf16.msra.mxu0 0
    %2369 = vmatpush.bf16.msra.mxu0 0
    %2370 = vmatpush.bf16.msra.mxu0 0
    %2371 = vmatpush.bf16.msra.mxu0 0
    %2372 = vmatpush.bf16.msra.mxu0 0
    %2373 = vmatpush.bf16.msra.mxu0 0
    %2374 = vmatpush.bf16.msra.mxu0 0
    %2375 = vmatpush.bf16.msra.mxu0 %v2366
    %2376 = vmatmul.bf16.gmra.mxu0 %v2342
    %v2377 = vpop.f32.mrf.mxu0
    %v2378 = vadd.f32 0.0, %v2377
    %v2379 = vpop.f32.mrf.mxu0
    %v2380 = vadd.f32 0.0, %v2379
    %2381 = vmatmul.bf16.gmra.mxu0 %v2345
    %v2382 = vpop.f32.mrf.mxu0
    %v2383 = vadd.f32 0.0, %v2382
    %v2384 = vpop.f32.mrf.mxu0
    %v2385 = vadd.f32 0.0, %v2384
    %2386 = vmatmul.bf16.gmra.mxu0 %v2348
    %v2387 = vpop.f32.mrf.mxu0
    %v2388 = vadd.f32 0.0, %v2387
    %v2389 = vpop.f32.mrf.mxu0
    %v2390 = vadd.f32 0.0, %v2389
    %2391 = vmatmul.bf16.gmra.mxu0 %v2351
    %v2392 = vpop.f32.mrf.mxu0
    %v2393 = vadd.f32 0.0, %v2392
    %v2394 = vpop.f32.mrf.mxu0
    %v2395 = vadd.f32 0.0, %v2394
    %2396 = vmatmul.bf16.gmra.mxu0 %v2354
    %v2397 = vpop.f32.mrf.mxu0
    %v2398 = vadd.f32 0.0, %v2397
    %v2399 = vpop.f32.mrf.mxu0
    %v2400 = vadd.f32 0.0, %v2399
    %2401 = vmatmul.bf16.gmra.mxu0 %v2357
    %v2402 = vpop.f32.mrf.mxu0
    %v2403 = vadd.f32 0.0, %v2402
    %v2404 = vpop.f32.mrf.mxu0
    %v2405 = vadd.f32 0.0, %v2404
    %2406 = vmatmul.bf16.gmra.mxu0 %v2360
    %v2407 = vpop.f32.mrf.mxu0
    %v2408 = vadd.f32 0.0, %v2407
    %v2409 = vpop.f32.mrf.mxu0
    %v2410 = vadd.f32 0.0, %v2409
    %2411 = vmatmul.bf16.gmra.mxu0 %v2363
    %v2412 = vpop.f32.mrf.mxu0
    %v2413 = vadd.f32 0.0, %v2412
    %v2414 = vpop.f32.mrf.mxu0
    %v2415 = vadd.f32 0.0, %v2414
    %2416 = vdwg.mxu0
    %v2417 = vadd.f32 %v1710, %v2378
    %v2418 = vadd.f32 %v1712, %v2380
    %v2419 = vadd.f32 %v1715, %v2383
    %v2420 = vadd.f32 %v1717, %v2385
    %v2421 = vadd.f32 %v1720, %v2388
    %v2422 = vadd.f32 %v1722, %v2390
    %v2423 = vadd.f32 %v1725, %v2393
    %v2424 = vadd.f32 %v1727, %v2395
    %v2425 = vadd.f32 %v1730, %v2398
    %v2426 = vadd.f32 %v1732, %v2400
    %v2427 = vadd.f32 %v1735, %v2403
    %v2428 = vadd.f32 %v1737, %v2405
    %v2429 = vadd.f32 %v1740, %v2408
    %v2430 = vadd.f32 %v1742, %v2410
    %v2431 = vadd.f32 %v1745, %v2413
    %v2432 = vadd.f32 %v1747, %v2415
    %2433 = vrot.lane.b32.xlu0 %v390, 104
    %v2434 = vpop.permute.xlu0 %2433
    %2435 = vrot.lane.b32.xlu0 %v390, 72
    %v2436 = vpop.permute.xlu0 %2435
    %v2438 = vsel %vm393, %v2434, 0
    %v2441 = vsel %vm393, %v2436, 0
    %2443 = vmatpush.bf16.xpose.msra.mxu0 0
    %2444 = vmatpush.bf16.xpose.msra.mxu0 0
    %2445 = vmatpush.bf16.xpose.msra.mxu0 0
    %2446 = vmatpush.bf16.xpose.msra.mxu0 0
    %2447 = vmatpush.bf16.xpose.msra.mxu0 0
    %2448 = vmatpush.bf16.xpose.msra.mxu0 0
    %2449 = vmatpush.bf16.xpose.msra.mxu0 0
    %2450 = vmatpush.bf16.xpose.msra.mxu0 %v2441
    %2451 = vmatmul.bf16.gmra.mxu0 %v2438
    %v2452 = vpop.f32.mrf.mxu0
    %v2453 = vadd.f32 0.0, %v2452
    %v2454 = vpop.f32.mrf.mxu0
    %v2455 = vadd.f32 0.0, %v2454
    %2456 = vdwg.mxu0
    %2457 = vrot.lane.b32.xlu0 %v418, 104
    %v2458 = vpop.permute.xlu0 %2457
    %2459 = vrot.lane.b32.xlu0 %v418, 72
    %v2460 = vpop.permute.xlu0 %2459
    %v2462 = vsel %vm393, %v2458, 0
    %v2465 = vsel %vm393, %v2460, 0
    %2467 = vmatpush.bf16.xpose.msra.mxu0 0
    %2468 = vmatpush.bf16.xpose.msra.mxu0 0
    %2469 = vmatpush.bf16.xpose.msra.mxu0 0
    %2470 = vmatpush.bf16.xpose.msra.mxu0 0
    %2471 = vmatpush.bf16.xpose.msra.mxu0 0
    %2472 = vmatpush.bf16.xpose.msra.mxu0 0
    %2473 = vmatpush.bf16.xpose.msra.mxu0 0
    %2474 = vmatpush.bf16.xpose.msra.mxu0 %v2465
    %2475 = vmatmul.bf16.gmra.mxu0 %v2462
    %v2476 = vpop.f32.mrf.mxu0
    %v2477 = vadd.f32 0.0, %v2476
    %v2478 = vpop.f32.mrf.mxu0
    %v2479 = vadd.f32 0.0, %v2478
    %2480 = vdwg.mxu0
    %2481 = vrot.lane.b32.xlu0 %v445, 104
    %v2482 = vpop.permute.xlu0 %2481
    %2483 = vrot.lane.b32.xlu0 %v445, 72
    %v2484 = vpop.permute.xlu0 %2483
    %v2486 = vsel %vm393, %v2482, 0
    %v2489 = vsel %vm393, %v2484, 0
    %2491 = vmatpush.bf16.xpose.msra.mxu0 0
    %2492 = vmatpush.bf16.xpose.msra.mxu0 0
    %2493 = vmatpush.bf16.xpose.msra.mxu0 0
    %2494 = vmatpush.bf16.xpose.msra.mxu0 0
    %2495 = vmatpush.bf16.xpose.msra.mxu0 0
    %2496 = vmatpush.bf16.xpose.msra.mxu0 0
    %2497 = vmatpush.bf16.xpose.msra.mxu0 0
    %2498 = vmatpush.bf16.xpose.msra.mxu0 %v2489
    %2499 = vmatmul.bf16.gmra.mxu0 %v2486
    %v2500 = vpop.f32.mrf.mxu0
    %v2501 = vadd.f32 0.0, %v2500
    %v2502 = vpop.f32.mrf.mxu0
    %v2503 = vadd.f32 0.0, %v2502
    %2504 = vdwg.mxu0
    %2505 = vrot.lane.b32.xlu0 %v472, 104
    %v2506 = vpop.permute.xlu0 %2505
    %2507 = vrot.lane.b32.xlu0 %v472, 72
    %v2508 = vpop.permute.xlu0 %2507
    %v2510 = vsel %vm393, %v2506, 0
    %v2513 = vsel %vm393, %v2508, 0
    %2515 = vmatpush.bf16.xpose.msra.mxu0 0
    %2516 = vmatpush.bf16.xpose.msra.mxu0 0
    %2517 = vmatpush.bf16.xpose.msra.mxu0 0
    %2518 = vmatpush.bf16.xpose.msra.mxu0 0
    %2519 = vmatpush.bf16.xpose.msra.mxu0 0
    %2520 = vmatpush.bf16.xpose.msra.mxu0 0
    %2521 = vmatpush.bf16.xpose.msra.mxu0 0
    %2522 = vmatpush.bf16.xpose.msra.mxu0 %v2513
    %2523 = vmatmul.bf16.gmra.mxu0 %v2510
    %v2524 = vpop.f32.mrf.mxu0
    %v2525 = vadd.f32 0.0, %v2524
    %v2526 = vpop.f32.mrf.mxu0
    %v2527 = vadd.f32 0.0, %v2526
    %2528 = vdwg.mxu0
    %2529 = vrot.lane.b32.xlu0 %v499, 104
    %v2530 = vpop.permute.xlu0 %2529
    %2531 = vrot.lane.b32.xlu0 %v499, 72
    %v2532 = vpop.permute.xlu0 %2531
    %v2534 = vsel %vm393, %v2530, 0
    %v2537 = vsel %vm393, %v2532, 0
    %2539 = vmatpush.bf16.xpose.msra.mxu0 0
    %2540 = vmatpush.bf16.xpose.msra.mxu0 0
    %2541 = vmatpush.bf16.xpose.msra.mxu0 0
    %2542 = vmatpush.bf16.xpose.msra.mxu0 0
    %2543 = vmatpush.bf16.xpose.msra.mxu0 0
    %2544 = vmatpush.bf16.xpose.msra.mxu0 0
    %2545 = vmatpush.bf16.xpose.msra.mxu0 0
    %2546 = vmatpush.bf16.xpose.msra.mxu0 %v2537
    %2547 = vmatmul.bf16.gmra.mxu0 %v2534
    %v2548 = vpop.f32.mrf.mxu0
    %v2549 = vadd.f32 0.0, %v2548
    %v2550 = vpop.f32.mrf.mxu0
    %v2551 = vadd.f32 0.0, %v2550
    %2552 = vdwg.mxu0
    %2553 = vrot.lane.b32.xlu0 %v526, 104
    %v2554 = vpop.permute.xlu0 %2553
    %2555 = vrot.lane.b32.xlu0 %v526, 72
    %v2556 = vpop.permute.xlu0 %2555
    %v2558 = vsel %vm393, %v2554, 0
    %v2561 = vsel %vm393, %v2556, 0
    %2563 = vmatpush.bf16.xpose.msra.mxu0 0
    %2564 = vmatpush.bf16.xpose.msra.mxu0 0
    %2565 = vmatpush.bf16.xpose.msra.mxu0 0
    %2566 = vmatpush.bf16.xpose.msra.mxu0 0
    %2567 = vmatpush.bf16.xpose.msra.mxu0 0
    %2568 = vmatpush.bf16.xpose.msra.mxu0 0
    %2569 = vmatpush.bf16.xpose.msra.mxu0 0
    %2570 = vmatpush.bf16.xpose.msra.mxu0 %v2561
    %2571 = vmatmul.bf16.gmra.mxu0 %v2558
    %v2572 = vpop.f32.mrf.mxu0
    %v2573 = vadd.f32 0.0, %v2572
    %v2574 = vpop.f32.mrf.mxu0
    %v2575 = vadd.f32 0.0, %v2574
    %2576 = vdwg.mxu0
    %2577 = vrot.lane.b32.xlu0 %v553, 104
    %v2578 = vpop.permute.xlu0 %2577
    %2579 = vrot.lane.b32.xlu0 %v553, 72
    %v2580 = vpop.permute.xlu0 %2579
    %v2582 = vsel %vm393, %v2578, 0
    %v2585 = vsel %vm393, %v2580, 0
    %2587 = vmatpush.bf16.xpose.msra.mxu0 0
    %2588 = vmatpush.bf16.xpose.msra.mxu0 0
    %2589 = vmatpush.bf16.xpose.msra.mxu0 0
    %2590 = vmatpush.bf16.xpose.msra.mxu0 0
    %2591 = vmatpush.bf16.xpose.msra.mxu0 0
    %2592 = vmatpush.bf16.xpose.msra.mxu0 0
    %2593 = vmatpush.bf16.xpose.msra.mxu0 0
    %2594 = vmatpush.bf16.xpose.msra.mxu0 %v2585
    %2595 = vmatmul.bf16.gmra.mxu0 %v2582
    %v2596 = vpop.f32.mrf.mxu0
    %v2597 = vadd.f32 0.0, %v2596
    %v2598 = vpop.f32.mrf.mxu0
    %v2599 = vadd.f32 0.0, %v2598
    %2600 = vdwg.mxu0
    %2601 = vrot.lane.b32.xlu0 %v580, 104
    %v2602 = vpop.permute.xlu0 %2601
    %2603 = vrot.lane.b32.xlu0 %v580, 72
    %v2604 = vpop.permute.xlu0 %2603
    %v2606 = vsel %vm393, %v2602, 0
    %v2609 = vsel %vm393, %v2604, 0
    %2611 = vmatpush.bf16.xpose.msra.mxu0 0
    %2612 = vmatpush.bf16.xpose.msra.mxu0 0
    %2613 = vmatpush.bf16.xpose.msra.mxu0 0
    %2614 = vmatpush.bf16.xpose.msra.mxu0 0
    %2615 = vmatpush.bf16.xpose.msra.mxu0 0
    %2616 = vmatpush.bf16.xpose.msra.mxu0 0
    %2617 = vmatpush.bf16.xpose.msra.mxu0 0
    %2618 = vmatpush.bf16.xpose.msra.mxu0 %v2609
    %2619 = vmatmul.bf16.gmra.mxu0 %v2606
    %v2620 = vpop.f32.mrf.mxu0
    %v2621 = vadd.f32 0.0, %v2620
    %v2622 = vpop.f32.mrf.mxu0
    %v2623 = vadd.f32 0.0, %v2622
    %2624 = vdwg.mxu0
    %v2625 = vsel %vm603, %v2453, -inf
    %2626 = vmax.xlane.f32.xlu0 %v2625
    %v2627 = vpop.xlane.xlu0 %2626
    %v2628 = vsel %vm603, %v2455, -inf
    %2629 = vmax.xlane.f32.xlu0 %v2628
    %v2630 = vpop.xlane.xlu0 %2629
    %v2631 = vsel %vm603, %v2477, -inf
    %2632 = vmax.xlane.f32.xlu0 %v2631
    %v2633 = vpop.xlane.xlu0 %2632
    %v2634 = vsel %vm603, %v2479, -inf
    %2635 = vmax.xlane.f32.xlu0 %v2634
    %v2636 = vpop.xlane.xlu0 %2635
    %v2637 = vsel %vm603, %v2501, -inf
    %2638 = vmax.xlane.f32.xlu0 %v2637
    %v2639 = vpop.xlane.xlu0 %2638
    %v2640 = vsel %vm603, %v2503, -inf
    %2641 = vmax.xlane.f32.xlu0 %v2640
    %v2642 = vpop.xlane.xlu0 %2641
    %v2643 = vsel %vm603, %v2525, -inf
    %2644 = vmax.xlane.f32.xlu0 %v2643
    %v2645 = vpop.xlane.xlu0 %2644
    %v2646 = vsel %vm603, %v2527, -inf
    %2647 = vmax.xlane.f32.xlu0 %v2646
    %v2648 = vpop.xlane.xlu0 %2647
    %v2649 = vsel %vm603, %v2549, -inf
    %2650 = vmax.xlane.f32.xlu0 %v2649
    %v2651 = vpop.xlane.xlu0 %2650
    %v2652 = vsel %vm603, %v2551, -inf
    %2653 = vmax.xlane.f32.xlu0 %v2652
    %v2654 = vpop.xlane.xlu0 %2653
    %v2655 = vsel %vm603, %v2573, -inf
    %2656 = vmax.xlane.f32.xlu0 %v2655
    %v2657 = vpop.xlane.xlu0 %2656
    %v2658 = vsel %vm603, %v2575, -inf
    %2659 = vmax.xlane.f32.xlu0 %v2658
    %v2660 = vpop.xlane.xlu0 %2659
    %v2661 = vsel %vm603, %v2597, -inf
    %2662 = vmax.xlane.f32.xlu0 %v2661
    %v2663 = vpop.xlane.xlu0 %2662
    %v2664 = vsel %vm603, %v2599, -inf
    %2665 = vmax.xlane.f32.xlu0 %v2664
    %v2666 = vpop.xlane.xlu0 %2665
    %v2667 = vsel %vm603, %v2621, -inf
    %2668 = vmax.xlane.f32.xlu0 %v2667
    %v2669 = vpop.xlane.xlu0 %2668
    %v2670 = vsel %vm603, %v2623, -inf
    %2671 = vmax.xlane.f32.xlu0 %v2670
    %v2672 = vpop.xlane.xlu0 %2671
    %v2673 = vsub.f32 %v2453, %v2627
    %v2674 = vsub.f32 %v2455, %v2630
    %v2675 = vsub.f32 %v2477, %v2633
    %v2676 = vsub.f32 %v2479, %v2636
    %v2677 = vsub.f32 %v2501, %v2639
    %v2678 = vsub.f32 %v2503, %v2642
    %v2679 = vsub.f32 %v2525, %v2645
    %v2680 = vsub.f32 %v2527, %v2648
    %v2681 = vsub.f32 %v2549, %v2651
    %v2682 = vsub.f32 %v2551, %v2654
    %v2683 = vsub.f32 %v2573, %v2657
    %v2684 = vsub.f32 %v2575, %v2660
    %v2685 = vsub.f32 %v2597, %v2663
    %v2686 = vsub.f32 %v2599, %v2666
    %v2687 = vsub.f32 %v2621, %v2669
    %v2688 = vsub.f32 %v2623, %v2672
    %v2689 = vmul.f32 %v2673, 1.442695
    %v2690 = vpow.pop %v2689
    %v2691 = vmul.f32 %v2674, 1.442695
    %v2692 = vpow.pop %v2691
    %v2693 = vmul.f32 %v2675, 1.442695
    %v2694 = vpow.pop %v2693
    %v2695 = vmul.f32 %v2676, 1.442695
    %v2696 = vpow.pop %v2695
    %v2697 = vmul.f32 %v2677, 1.442695
    %v2698 = vpow.pop %v2697
    %v2699 = vmul.f32 %v2678, 1.442695
    %v2700 = vpow.pop %v2699
    %v2701 = vmul.f32 %v2679, 1.442695
    %v2702 = vpow.pop %v2701
    %v2703 = vmul.f32 %v2680, 1.442695
    %v2704 = vpow.pop %v2703
    %v2705 = vmul.f32 %v2681, 1.442695
    %v2706 = vpow.pop %v2705
    %v2707 = vmul.f32 %v2682, 1.442695
    %v2708 = vpow.pop %v2707
    %v2709 = vmul.f32 %v2683, 1.442695
    %v2710 = vpow.pop %v2709
    %v2711 = vmul.f32 %v2684, 1.442695
    %v2712 = vpow.pop %v2711
    %v2713 = vmul.f32 %v2685, 1.442695
    %v2714 = vpow.pop %v2713
    %v2715 = vmul.f32 %v2686, 1.442695
    %v2716 = vpow.pop %v2715
    %v2717 = vmul.f32 %v2687, 1.442695
    %v2718 = vpow.pop %v2717
    %v2719 = vmul.f32 %v2688, 1.442695
    %v2720 = vpow.pop %v2719
    %v2721 = vsel %vm603, %v2690, 0.0
    %2722 = vadd.xlane.f32.xlu0 %v2721
    %v2723 = vpop.xlane.xlu0 %2722
    %v2724 = vsel %vm603, %v2692, 0.0
    %2725 = vadd.xlane.f32.xlu0 %v2724
    %v2726 = vpop.xlane.xlu0 %2725
    %v2727 = vsel %vm603, %v2694, 0.0
    %2728 = vadd.xlane.f32.xlu0 %v2727
    %v2729 = vpop.xlane.xlu0 %2728
    %v2730 = vsel %vm603, %v2696, 0.0
    %2731 = vadd.xlane.f32.xlu0 %v2730
    %v2732 = vpop.xlane.xlu0 %2731
    %v2733 = vsel %vm603, %v2698, 0.0
    %2734 = vadd.xlane.f32.xlu0 %v2733
    %v2735 = vpop.xlane.xlu0 %2734
    %v2736 = vsel %vm603, %v2700, 0.0
    %2737 = vadd.xlane.f32.xlu0 %v2736
    %v2738 = vpop.xlane.xlu0 %2737
    %v2739 = vsel %vm603, %v2702, 0.0
    %2740 = vadd.xlane.f32.xlu0 %v2739
    %v2741 = vpop.xlane.xlu0 %2740
    %v2742 = vsel %vm603, %v2704, 0.0
    %2743 = vadd.xlane.f32.xlu0 %v2742
    %v2744 = vpop.xlane.xlu0 %2743
    %v2745 = vsel %vm603, %v2706, 0.0
    %2746 = vadd.xlane.f32.xlu0 %v2745
    %v2747 = vpop.xlane.xlu0 %2746
    %v2748 = vsel %vm603, %v2708, 0.0
    %2749 = vadd.xlane.f32.xlu0 %v2748
    %v2750 = vpop.xlane.xlu0 %2749
    %v2751 = vsel %vm603, %v2710, 0.0
    %2752 = vadd.xlane.f32.xlu0 %v2751
    %v2753 = vpop.xlane.xlu0 %2752
    %v2754 = vsel %vm603, %v2712, 0.0
    %2755 = vadd.xlane.f32.xlu0 %v2754
    %v2756 = vpop.xlane.xlu0 %2755
    %v2757 = vsel %vm603, %v2714, 0.0
    %2758 = vadd.xlane.f32.xlu0 %v2757
    %v2759 = vpop.xlane.xlu0 %2758
    %v2760 = vsel %vm603, %v2716, 0.0
    %2761 = vadd.xlane.f32.xlu0 %v2760
    %v2762 = vpop.xlane.xlu0 %2761
    %v2763 = vsel %vm603, %v2718, 0.0
    %2764 = vadd.xlane.f32.xlu0 %v2763
    %v2765 = vpop.xlane.xlu0 %2764
    %v2766 = vsel %vm603, %v2720, 0.0
    %2767 = vadd.xlane.f32.xlu0 %v2766
    %v2768 = vpop.xlane.xlu0 %2767
    %v2769 = vrcp.pop %v2723
    %v2770 = vrcp.pop %v2726
    %v2771 = vrcp.pop %v2729
    %v2772 = vrcp.pop %v2732
    %v2773 = vrcp.pop %v2735
    %v2774 = vrcp.pop %v2738
    %v2775 = vrcp.pop %v2741
    %v2776 = vrcp.pop %v2744
    %v2777 = vrcp.pop %v2747
    %v2778 = vrcp.pop %v2750
    %v2779 = vrcp.pop %v2753
    %v2780 = vrcp.pop %v2756
    %v2781 = vrcp.pop %v2759
    %v2782 = vrcp.pop %v2762
    %v2783 = vrcp.pop %v2765
    %v2784 = vrcp.pop %v2768
    %v2785 = vmul.f32 %v2690, %v2769
    %v2786 = vmul.f32 %v2692, %v2770
    %v2787 = vmul.f32 %v2694, %v2771
    %v2788 = vmul.f32 %v2696, %v2772
    %v2789 = vmul.f32 %v2698, %v2773
    %v2790 = vmul.f32 %v2700, %v2774
    %v2791 = vmul.f32 %v2702, %v2775
    %v2792 = vmul.f32 %v2704, %v2776
    %v2793 = vmul.f32 %v2706, %v2777
    %v2794 = vmul.f32 %v2708, %v2778
    %v2795 = vmul.f32 %v2710, %v2779
    %v2796 = vmul.f32 %v2712, %v2780
    %v2797 = vmul.f32 %v2714, %v2781
    %v2798 = vmul.f32 %v2716, %v2782
    %v2799 = vmul.f32 %v2718, %v2783
    %v2800 = vmul.f32 %v2720, %v2784
    %v2801 = vpack.c.bf16 %v2785, %v2785
    %v2802 = vpack.c.bf16 %v2786, %v2786
    %v2803 = vpack.c.bf16 %v2787, %v2787
    %v2804 = vpack.c.bf16 %v2788, %v2788
    %v2805 = vpack.c.bf16 %v2789, %v2789
    %v2806 = vpack.c.bf16 %v2790, %v2790
    %v2807 = vpack.c.bf16 %v2791, %v2791
    %v2808 = vpack.c.bf16 %v2792, %v2792
    %v2809 = vpack.c.bf16 %v2793, %v2793
    %v2810 = vpack.c.bf16 %v2794, %v2794
    %v2811 = vpack.c.bf16 %v2795, %v2795
    %v2812 = vpack.c.bf16 %v2796, %v2796
    %v2813 = vpack.c.bf16 %v2797, %v2797
    %v2814 = vpack.c.bf16 %v2798, %v2798
    %v2815 = vpack.c.bf16 %v2799, %v2799
    %v2816 = vpack.c.bf16 %v2800, %v2800
    %v2819 = vunpack.c.l.b16 %v2801
    %v2820 = vunpack.c.l.b16 %v2802
    %v2821 = vpack.c.b16 %v2820, %v2819
    %2822 = vrot.lane.b32.xlu0 %v390, 40
    %v2823 = vpop.permute.xlu0 %2822
    %v2826 = vsel %vm603, %v2821, 0
    %2828 = vmatpush.bf16.msra.mxu0 0
    %2829 = vmatpush.bf16.msra.mxu0 0
    %2830 = vmatpush.bf16.msra.mxu0 0
    %2831 = vmatpush.bf16.msra.mxu0 0
    %2832 = vmatpush.bf16.msra.mxu0 0
    %2833 = vmatpush.bf16.msra.mxu0 0
    %2834 = vmatpush.bf16.msra.mxu0 0
    %2835 = vmatpush.bf16.msra.mxu0 %v2823
    %2836 = vmatmul.bf16.gmra.mxu0 %v2826
    %v2837 = vpop.f32.mrf.mxu0
    %v2838 = vadd.f32 0.0, %v2837
    %v2839 = vpop.f32.mrf.mxu0
    %v2840 = vadd.f32 0.0, %v2839
    %2841 = vdwg.mxu0
    %v2844 = vunpack.c.l.b16 %v2803
    %v2845 = vunpack.c.l.b16 %v2804
    %v2846 = vpack.c.b16 %v2845, %v2844
    %2847 = vrot.lane.b32.xlu0 %v418, 40
    %v2848 = vpop.permute.xlu0 %2847
    %v2851 = vsel %vm603, %v2846, 0
    %2853 = vmatpush.bf16.msra.mxu0 0
    %2854 = vmatpush.bf16.msra.mxu0 0
    %2855 = vmatpush.bf16.msra.mxu0 0
    %2856 = vmatpush.bf16.msra.mxu0 0
    %2857 = vmatpush.bf16.msra.mxu0 0
    %2858 = vmatpush.bf16.msra.mxu0 0
    %2859 = vmatpush.bf16.msra.mxu0 0
    %2860 = vmatpush.bf16.msra.mxu0 %v2848
    %2861 = vmatmul.bf16.gmra.mxu0 %v2851
    %v2862 = vpop.f32.mrf.mxu0
    %v2863 = vadd.f32 0.0, %v2862
    %v2864 = vpop.f32.mrf.mxu0
    %v2865 = vadd.f32 0.0, %v2864
    %2866 = vdwg.mxu0
    %v2869 = vunpack.c.l.b16 %v2805
    %v2870 = vunpack.c.l.b16 %v2806
    %v2871 = vpack.c.b16 %v2870, %v2869
    %2872 = vrot.lane.b32.xlu0 %v445, 40
    %v2873 = vpop.permute.xlu0 %2872
    %v2876 = vsel %vm603, %v2871, 0
    %2878 = vmatpush.bf16.msra.mxu0 0
    %2879 = vmatpush.bf16.msra.mxu0 0
    %2880 = vmatpush.bf16.msra.mxu0 0
    %2881 = vmatpush.bf16.msra.mxu0 0
    %2882 = vmatpush.bf16.msra.mxu0 0
    %2883 = vmatpush.bf16.msra.mxu0 0
    %2884 = vmatpush.bf16.msra.mxu0 0
    %2885 = vmatpush.bf16.msra.mxu0 %v2873
    %2886 = vmatmul.bf16.gmra.mxu0 %v2876
    %v2887 = vpop.f32.mrf.mxu0
    %v2888 = vadd.f32 0.0, %v2887
    %v2889 = vpop.f32.mrf.mxu0
    %v2890 = vadd.f32 0.0, %v2889
    %2891 = vdwg.mxu0
    %v2894 = vunpack.c.l.b16 %v2807
    %v2895 = vunpack.c.l.b16 %v2808
    %v2896 = vpack.c.b16 %v2895, %v2894
    %2897 = vrot.lane.b32.xlu0 %v472, 40
    %v2898 = vpop.permute.xlu0 %2897
    %v2901 = vsel %vm603, %v2896, 0
    %2903 = vmatpush.bf16.msra.mxu0 0
    %2904 = vmatpush.bf16.msra.mxu0 0
    %2905 = vmatpush.bf16.msra.mxu0 0
    %2906 = vmatpush.bf16.msra.mxu0 0
    %2907 = vmatpush.bf16.msra.mxu0 0
    %2908 = vmatpush.bf16.msra.mxu0 0
    %2909 = vmatpush.bf16.msra.mxu0 0
    %2910 = vmatpush.bf16.msra.mxu0 %v2898
    %2911 = vmatmul.bf16.gmra.mxu0 %v2901
    %v2912 = vpop.f32.mrf.mxu0
    %v2913 = vadd.f32 0.0, %v2912
    %v2914 = vpop.f32.mrf.mxu0
    %v2915 = vadd.f32 0.0, %v2914
    %2916 = vdwg.mxu0
    %v2919 = vunpack.c.l.b16 %v2809
    %v2920 = vunpack.c.l.b16 %v2810
    %v2921 = vpack.c.b16 %v2920, %v2919
    %2922 = vrot.lane.b32.xlu0 %v499, 40
    %v2923 = vpop.permute.xlu0 %2922
    %v2926 = vsel %vm603, %v2921, 0
    %2928 = vmatpush.bf16.msra.mxu0 0
    %2929 = vmatpush.bf16.msra.mxu0 0
    %2930 = vmatpush.bf16.msra.mxu0 0
    %2931 = vmatpush.bf16.msra.mxu0 0
    %2932 = vmatpush.bf16.msra.mxu0 0
    %2933 = vmatpush.bf16.msra.mxu0 0
    %2934 = vmatpush.bf16.msra.mxu0 0
    %2935 = vmatpush.bf16.msra.mxu0 %v2923
    %2936 = vmatmul.bf16.gmra.mxu0 %v2926
    %v2937 = vpop.f32.mrf.mxu0
    %v2938 = vadd.f32 0.0, %v2937
    %v2939 = vpop.f32.mrf.mxu0
    %v2940 = vadd.f32 0.0, %v2939
    %2941 = vdwg.mxu0
    %v2944 = vunpack.c.l.b16 %v2811
    %v2945 = vunpack.c.l.b16 %v2812
    %v2946 = vpack.c.b16 %v2945, %v2944
    %2947 = vrot.lane.b32.xlu0 %v526, 40
    %v2948 = vpop.permute.xlu0 %2947
    %v2951 = vsel %vm603, %v2946, 0
    %2953 = vmatpush.bf16.msra.mxu0 0
    %2954 = vmatpush.bf16.msra.mxu0 0
    %2955 = vmatpush.bf16.msra.mxu0 0
    %2956 = vmatpush.bf16.msra.mxu0 0
    %2957 = vmatpush.bf16.msra.mxu0 0
    %2958 = vmatpush.bf16.msra.mxu0 0
    %2959 = vmatpush.bf16.msra.mxu0 0
    %2960 = vmatpush.bf16.msra.mxu0 %v2948
    %2961 = vmatmul.bf16.gmra.mxu0 %v2951
    %v2962 = vpop.f32.mrf.mxu0
    %v2963 = vadd.f32 0.0, %v2962
    %v2964 = vpop.f32.mrf.mxu0
    %v2965 = vadd.f32 0.0, %v2964
    %2966 = vdwg.mxu0
    %v2969 = vunpack.c.l.b16 %v2813
    %v2970 = vunpack.c.l.b16 %v2814
    %v2971 = vpack.c.b16 %v2970, %v2969
    %2972 = vrot.lane.b32.xlu0 %v553, 40
    %v2973 = vpop.permute.xlu0 %2972
    %v2976 = vsel %vm603, %v2971, 0
    %2978 = vmatpush.bf16.msra.mxu0 0
    %2979 = vmatpush.bf16.msra.mxu0 0
    %2980 = vmatpush.bf16.msra.mxu0 0
    %2981 = vmatpush.bf16.msra.mxu0 0
    %2982 = vmatpush.bf16.msra.mxu0 0
    %2983 = vmatpush.bf16.msra.mxu0 0
    %2984 = vmatpush.bf16.msra.mxu0 0
    %2985 = vmatpush.bf16.msra.mxu0 %v2973
    %2986 = vmatmul.bf16.gmra.mxu0 %v2976
    %v2987 = vpop.f32.mrf.mxu0
    %v2988 = vadd.f32 0.0, %v2987
    %v2989 = vpop.f32.mrf.mxu0
    %v2990 = vadd.f32 0.0, %v2989
    %2991 = vdwg.mxu0
    %v2994 = vunpack.c.l.b16 %v2815
    %v2995 = vunpack.c.l.b16 %v2816
    %v2996 = vpack.c.b16 %v2995, %v2994
    %2997 = vrot.lane.b32.xlu0 %v580, 40
    %v2998 = vpop.permute.xlu0 %2997
    %v3001 = vsel %vm603, %v2996, 0
    %3003 = vmatpush.bf16.msra.mxu0 0
    %3004 = vmatpush.bf16.msra.mxu0 0
    %3005 = vmatpush.bf16.msra.mxu0 0
    %3006 = vmatpush.bf16.msra.mxu0 0
    %3007 = vmatpush.bf16.msra.mxu0 0
    %3008 = vmatpush.bf16.msra.mxu0 0
    %3009 = vmatpush.bf16.msra.mxu0 0
    %3010 = vmatpush.bf16.msra.mxu0 %v2998
    %3011 = vmatmul.bf16.gmra.mxu0 %v3001
    %v3012 = vpop.f32.mrf.mxu0
    %v3013 = vadd.f32 0.0, %v3012
    %v3014 = vpop.f32.mrf.mxu0
    %v3015 = vadd.f32 0.0, %v3014
    %3016 = vdwg.mxu0
    %v3017 = vpack.c.bf16 %v2840, %v2838
    %v3018 = vpack.c.bf16 %v2865, %v2863
    %v3019 = vpack.c.bf16 %v2890, %v2888
    %v3020 = vpack.c.bf16 %v2915, %v2913
    %v3021 = vpack.c.bf16 %v2940, %v2938
    %v3022 = vpack.c.bf16 %v2965, %v2963
    %v3023 = vpack.c.bf16 %v2990, %v2988
    %v3024 = vpack.c.bf16 %v3015, %v3013
    %v3026 = vsel %vm393, %v3017, 0
    %v3029 = vsel %vm393, %v3018, 0
    %v3032 = vsel %vm393, %v3019, 0
    %v3035 = vsel %vm393, %v3020, 0
    %v3038 = vsel %vm393, %v3021, 0
    %v3041 = vsel %vm393, %v3022, 0
    %v3044 = vsel %vm393, %v3023, 0
    %v3047 = vsel %vm393, %v3024, 0
    %v3050 = vsel %vm1620, %v385, 0
    %3052 = vmatpush.bf16.msra.mxu0 0
    %3053 = vmatpush.bf16.msra.mxu0 0
    %3054 = vmatpush.bf16.msra.mxu0 0
    %3055 = vmatpush.bf16.msra.mxu0 0
    %3056 = vmatpush.bf16.msra.mxu0 0
    %3057 = vmatpush.bf16.msra.mxu0 0
    %3058 = vmatpush.bf16.msra.mxu0 0
    %3059 = vmatpush.bf16.msra.mxu0 %v3050
    %3060 = vmatmul.bf16.gmra.mxu0 %v3026
    %v3061 = vpop.f32.mrf.mxu0
    %v3062 = vadd.f32 0.0, %v3061
    %v3063 = vpop.f32.mrf.mxu0
    %v3064 = vadd.f32 0.0, %v3063
    %3065 = vmatmul.bf16.gmra.mxu0 %v3029
    %v3066 = vpop.f32.mrf.mxu0
    %v3067 = vadd.f32 0.0, %v3066
    %v3068 = vpop.f32.mrf.mxu0
    %v3069 = vadd.f32 0.0, %v3068
    %3070 = vmatmul.bf16.gmra.mxu0 %v3032
    %v3071 = vpop.f32.mrf.mxu0
    %v3072 = vadd.f32 0.0, %v3071
    %v3073 = vpop.f32.mrf.mxu0
    %v3074 = vadd.f32 0.0, %v3073
    %3075 = vmatmul.bf16.gmra.mxu0 %v3035
    %v3076 = vpop.f32.mrf.mxu0
    %v3077 = vadd.f32 0.0, %v3076
    %v3078 = vpop.f32.mrf.mxu0
    %v3079 = vadd.f32 0.0, %v3078
    %3080 = vmatmul.bf16.gmra.mxu0 %v3038
    %v3081 = vpop.f32.mrf.mxu0
    %v3082 = vadd.f32 0.0, %v3081
    %v3083 = vpop.f32.mrf.mxu0
    %v3084 = vadd.f32 0.0, %v3083
    %3085 = vmatmul.bf16.gmra.mxu0 %v3041
    %v3086 = vpop.f32.mrf.mxu0
    %v3087 = vadd.f32 0.0, %v3086
    %v3088 = vpop.f32.mrf.mxu0
    %v3089 = vadd.f32 0.0, %v3088
    %3090 = vmatmul.bf16.gmra.mxu0 %v3044
    %v3091 = vpop.f32.mrf.mxu0
    %v3092 = vadd.f32 0.0, %v3091
    %v3093 = vpop.f32.mrf.mxu0
    %v3094 = vadd.f32 0.0, %v3093
    %3095 = vmatmul.bf16.gmra.mxu0 %v3047
    %v3096 = vpop.f32.mrf.mxu0
    %v3097 = vadd.f32 0.0, %v3096
    %v3098 = vpop.f32.mrf.mxu0
    %v3099 = vadd.f32 0.0, %v3098
    %3100 = vdwg.mxu0
    %v3101 = vadd.f32 %v2417, %v3062
    %v3102 = vadd.f32 %v2418, %v3064
    %v3103 = vadd.f32 %v2419, %v3067
    %v3104 = vadd.f32 %v2420, %v3069
    %v3105 = vadd.f32 %v2421, %v3072
    %v3106 = vadd.f32 %v2422, %v3074
    %v3107 = vadd.f32 %v2423, %v3077
    %v3108 = vadd.f32 %v2424, %v3079
    %v3109 = vadd.f32 %v2425, %v3082
    %v3110 = vadd.f32 %v2426, %v3084
    %v3111 = vadd.f32 %v2427, %v3087
    %v3112 = vadd.f32 %v2428, %v3089
    %v3113 = vadd.f32 %v2429, %v3092
    %v3114 = vadd.f32 %v2430, %v3094
    %v3115 = vadd.f32 %v2431, %v3097
    %v3116 = vadd.f32 %v2432, %v3099
    %v3117 = vld [vmem:[%s5] sm:$0x1]
    %v3119 = vperm.slane %v3117, 0
    %3120 = vrot.lane.b32.xlu0 %v3119, 32
    %v3121 = vpop.permute.xlu0 %3120
    %v3123 = vadd.f32 %v3101, %v3121
    %v3124 = vadd.f32 %v3102, %v3121
    %v3125 = vadd.f32 %v3103, %v3121
    %v3126 = vadd.f32 %v3104, %v3121
    %v3127 = vadd.f32 %v3105, %v3121
    %v3128 = vadd.f32 %v3106, %v3121
    %v3129 = vadd.f32 %v3107, %v3121
    %v3130 = vadd.f32 %v3108, %v3121
    %v3131 = vadd.f32 %v3109, %v3121
    %v3132 = vadd.f32 %v3110, %v3121
    %v3133 = vadd.f32 %v3111, %v3121
    %v3134 = vadd.f32 %v3112, %v3121
    %v3135 = vadd.f32 %v3113, %v3121
    %v3136 = vadd.f32 %v3114, %v3121
    %v3137 = vadd.f32 %v3115, %v3121
    %v3138 = vadd.f32 %v3116, %v3121
    %v3139 = vmax.f32 %v3123, 0.0
    %v3140 = vmax.f32 %v3124, 0.0
    %v3141 = vmax.f32 %v3125, 0.0
    %v3142 = vmax.f32 %v3126, 0.0
    %v3143 = vmax.f32 %v3127, 0.0
    %v3144 = vmax.f32 %v3128, 0.0
    %v3145 = vmax.f32 %v3129, 0.0
    %v3146 = vmax.f32 %v3130, 0.0
    %v3147 = vmax.f32 %v3131, 0.0
    %v3148 = vmax.f32 %v3132, 0.0
    %v3149 = vmax.f32 %v3133, 0.0
    %v3150 = vmax.f32 %v3134, 0.0
    %v3151 = vmax.f32 %v3135, 0.0
    %v3152 = vmax.f32 %v3136, 0.0
    %v3153 = vmax.f32 %v3137, 0.0
    %v3154 = vmax.f32 %v3138, 0.0
    %v3155 = vpack.c.bf16 %v3140, %v3139
    %v3156 = vpack.c.bf16 %v3142, %v3141
    %v3157 = vpack.c.bf16 %v3144, %v3143
    %v3158 = vpack.c.bf16 %v3146, %v3145
    %v3159 = vpack.c.bf16 %v3148, %v3147
    %v3160 = vpack.c.bf16 %v3150, %v3149
    %v3161 = vpack.c.bf16 %v3152, %v3151
    %v3162 = vpack.c.bf16 %v3154, %v3153
    %v3163 = vld [vmem:[%s5 + $0x1] sm:$0x1]
    %v3165 = vperm.slane %v3163, 0
    %v3171 = vunpack.c.l.b16 %v382
    %v3172 = vunpack.c.l.b16 %v383
    %v3173 = vunpack.c.l.b16 %v384
    %v3174 = vunpack.c.l.b16 %v385
    %v3175 = vpack.c.b16 %v3172, %v3171
    %v3176 = vpack.c.b16 %v3174, %v3173
    %3177 = vrot.lane.b32.xlu0 %v3175, 96
    %v3178 = vpop.permute.xlu0 %3177
    %3179 = vrot.lane.b32.xlu0 %v3176, 96
    %v3180 = vpop.permute.xlu0 %3179
    %v3184 = vsel %vm171, %v3155, 0
    %v3187 = vsel %vm171, %v3156, 0
    %v3190 = vsel %vm171, %v3157, 0
    %v3193 = vsel %vm171, %v3158, 0
    %v3196 = vsel %vm171, %v3159, 0
    %v3199 = vsel %vm171, %v3160, 0
    %v3202 = vsel %vm171, %v3161, 0
    %v3205 = vsel %vm171, %v3162, 0
    %3207 = vmatpush.bf16.msra.mxu0 0
    %3208 = vmatpush.bf16.msra.mxu0 0
    %3209 = vmatpush.bf16.msra.mxu0 0
    %3210 = vmatpush.bf16.msra.mxu0 0
    %3211 = vmatpush.bf16.msra.mxu0 0
    %3212 = vmatpush.bf16.msra.mxu0 0
    %3213 = vmatpush.bf16.msra.mxu0 %v3180
    %3214 = vmatpush.bf16.msra.mxu0 %v3178
    %3215 = vmatmul.bf16.gmra.mxu0 %v3184
    %v3216 = vpop.f32.mrf.mxu0
    %v3217 = vadd.f32 %v3165, %v3216
    %v3218 = vpop.f32.mrf.mxu0
    %v3219 = vadd.f32 %v3165, %v3218
    %3220 = vmatmul.bf16.gmra.mxu0 %v3187
    %v3221 = vpop.f32.mrf.mxu0
    %v3222 = vadd.f32 %v3165, %v3221
    %v3223 = vpop.f32.mrf.mxu0
    %v3224 = vadd.f32 %v3165, %v3223
    %3225 = vmatmul.bf16.gmra.mxu0 %v3190
    %v3226 = vpop.f32.mrf.mxu0
    %v3227 = vadd.f32 %v3165, %v3226
    %v3228 = vpop.f32.mrf.mxu0
    %v3229 = vadd.f32 %v3165, %v3228
    %3230 = vmatmul.bf16.gmra.mxu0 %v3193
    %v3231 = vpop.f32.mrf.mxu0
    %v3232 = vadd.f32 %v3165, %v3231
    %v3233 = vpop.f32.mrf.mxu0
    %v3234 = vadd.f32 %v3165, %v3233
    %3235 = vmatmul.bf16.gmra.mxu0 %v3196
    %v3236 = vpop.f32.mrf.mxu0
    %v3237 = vadd.f32 %v3165, %v3236
    %v3238 = vpop.f32.mrf.mxu0
    %v3239 = vadd.f32 %v3165, %v3238
    %3240 = vmatmul.bf16.gmra.mxu0 %v3199
    %v3241 = vpop.f32.mrf.mxu0
    %v3242 = vadd.f32 %v3165, %v3241
    %v3243 = vpop.f32.mrf.mxu0
    %v3244 = vadd.f32 %v3165, %v3243
    %3245 = vmatmul.bf16.gmra.mxu0 %v3202
    %v3246 = vpop.f32.mrf.mxu0
    %v3247 = vadd.f32 %v3165, %v3246
    %v3248 = vpop.f32.mrf.mxu0
    %v3249 = vadd.f32 %v3165, %v3248
    %3250 = vmatmul.bf16.gmra.mxu0 %v3205
    %v3251 = vpop.f32.mrf.mxu0
    %v3252 = vadd.f32 %v3165, %v3251
    %v3253 = vpop.f32.mrf.mxu0
    %v3254 = vadd.f32 %v3165, %v3253
    %3255 = vdwg.mxu0
    %3256 = vst.msk [vmem:[#allocation11] sm:$0xff] %vm171, %v3217
    %3257 = vst.msk [vmem:[#allocation11 + $0x8] sm:$0xff] %vm171, %v3219
    %3258 = vst.msk [vmem:[#allocation11 + $0x10] sm:$0xff] %vm171, %v3222
    %3259 = vst.msk [vmem:[#allocation11 + $0x18] sm:$0xff] %vm171, %v3224
    %3260 = vst.msk [vmem:[#allocation11 + $0x20] sm:$0xff] %vm171, %v3227
    %3261 = vst.msk [vmem:[#allocation11 + $0x28] sm:$0xff] %vm171, %v3229
    %3262 = vst.msk [vmem:[#allocation11 + $0x30] sm:$0xff] %vm171, %v3232
    %3263 = vst.msk [vmem:[#allocation11 + $0x38] sm:$0xff] %vm171, %v3234
    %3264 = vst.msk [vmem:[#allocation11 + $0x40] sm:$0xff] %vm171, %v3237
    %3265 = vst.msk [vmem:[#allocation11 + $0x48] sm:$0xff] %vm171, %v3239
    %3266 = vst.msk [vmem:[#allocation11 + $0x50] sm:$0xff] %vm171, %v3242
    %3267 = vst.msk [vmem:[#allocation11 + $0x58] sm:$0xff] %vm171, %v3244
    %3268 = vst.msk [vmem:[#allocation11 + $0x60] sm:$0xff] %vm171, %v3247
    %3269 = vst.msk [vmem:[#allocation11 + $0x68] sm:$0xff] %vm171, %v3249
    %3270 = vst.msk [vmem:[#allocation11 + $0x70] sm:$0xff] %vm171, %v3252
    %3271 = vst.msk [vmem:[#allocation11 + $0x78] sm:$0xff] %vm171, %v3254
    // Predicated region
    $region46: #{tpu_custom_call.1} parent=1 // pred_check
      _
    $region47: #{tpu_custom_call.1} parent=1 // pred_check_branch
      %3273 = sbr.rel (0) target = $region49
    $region48: #{tpu_custom_call.1} parent=1 // pred_region
      %3275 = vsyncadd [#allocation4], 0
      %s3276 = sshll.u32 [#allocation11], 4
      %s3277 = int_to_ptr.vmem [resolvable:$true] %s3276
      %s3278 = sshll.u32 %s6, 4
      %s3279 = int_to_ptr.hbm [resolvable:$true] %s3278
      %3284 = dma.vmem_to_hbm [thread:$0]  %s3277, 2048, %s3279, [#allocation4], 128, 128, 8
    $region49: #{tpu_custom_call.1} parent=1 // pred_fallthru
      _
    // Predicated region
    $region50: #{tpu_custom_call.1} parent=1 // pred_check
      _
    $region51: #{tpu_custom_call.1} parent=1 // pred_check_branch
      %3286 = sbr.rel (0) target = $region53
    $region52: #{tpu_custom_call.1} parent=1 // pred_region
      %3288 = dma.done [#allocation4], 2048
    $region53: #{tpu_custom_call.1} parent=1 // pred_fallthru
      _
    %3289 = vsyncpa [#allocation3], 1
    %3290 = vsyncpa [#allocation6], 1
    %3291 = vsyncpa [#allocation9], 1
    %3292 = vsyncpa [#allocation4], 1

</llo_original>
